<compile_context>
chip_gen: v7x
topology: tpu7x:2x2x1
jax: 0.10.0
libtpu: 0.0.40
codegen_flags: <defaults>
</compile_context>

<pallas_src>
import functools

import jax
import jax.numpy as jnp
from jax.experimental import pallas as pl
from jax.experimental.pallas import tpu as pltpu

HIDDEN = 100   # nn.GRU(hidden_size=100, num_layers=2)
HP = 128       # lane-padded hidden size
SUB = 8        # sublane tile rows: batch padded to this, biases tiled to this


def _rup8(n):
    return ((n + 7) // 8) * 8


# ---------------------------------------------------------------------------
# Fused kernel: interleaved 2-layer GRU over time + dense head, one invocation.
# Weight layout (prepared in the wrapper, all weights bf16, biases f32):
#   wi0:   (FP,  3*HP)   layer-0 fused [r|z|n] input weights
#   wh0:   (HP,  3*HP)   layer-0 fused recurrent weights
#   bi0:   (1,   3*HP)   layer-0 input bias (added to the batched projection)
#   bh0:   (SUB, 3*HP)   layer-0 recurrent bias (row-tiled)
#   wcat1: (2HP, 3*HP)   layer-1 stacked [Wi1; Wh1] for the concat matmul
#   whn1:  (HP,  HP)     layer-1 recurrent n-gate weights (for the r* term)
#   bsum1: (SUB, 3*HP)   bi1 + bh1 (row-tiled)
#   bhn1:  (SUB, HP)     bh1 n-gate slice (row-tiled)
# ---------------------------------------------------------------------------
def fused_kernel(mask_ref, x_ref, s_ref,
                 wi0_ref, wh0_ref, bi0_ref, bh0_ref,
                 wcat1_ref, whn1_ref, bsum1_ref, bhn1_ref,
                 w1_ref, b1_ref, w2_ref, b2_ref, w3a_ref, w3b_ref, b3_ref,
                 w4_ref, b4_ref, wo_ref, bo_ref,
                 out_ref, xp0_sc, *, T, BP):
    H = HP
    dot = lambda a, b: jnp.dot(a.astype(jnp.bfloat16), b,
                               preferred_element_type=jnp.float32)

    # Layer-0 input projection for ALL timesteps: one batched matmul, stored to
    # VMEM scratch so per-step reads are streamed, aligned (8,128)-tile loads.
    xp0_sc[...] = dot(x_ref[...], wi0_ref[...]) + bi0_ref[...]

    # Small per-step biases (pre-tiled to BP rows -> same-shape adds in-loop).
    bh0 = bh0_ref[...]
    bs1 = bsum1_ref[...]
    bn1 = bhn1_ref[...]

    h0 = jnp.zeros((BP, H), jnp.float32)
    h1 = jnp.zeros((BP, H), jnp.float32)

    # Interleaved 2-layer recurrence (matches PyTorch per-timestep semantics).
    for t in range(T):                                   # static unroll, small T
        lo, hi = t * BP, (t + 1) * BP
        xp0 = xp0_sc[lo:hi, :]                           # (BP, 3H) f32, aligned
        m = mask_ref[lo:hi, :] != 0                      # packed-seq freeze mask

        # -- layer 0: only h @ Wh on the serial chain (input proj hoisted) ----
        hp0 = dot(h0, wh0_ref[...]) + bh0
        r0 = jax.nn.sigmoid(xp0[:, :H] + hp0[:, :H])
        z0 = jax.nn.sigmoid(xp0[:, H:2 * H] + hp0[:, H:2 * H])
        n0 = jnp.tanh(xp0[:, 2 * H:] + r0 * hp0[:, 2 * H:])
        h0 = jnp.where(m, (1.0 - z0) * n0 + z0 * h0, h0)

        # -- layer 1: input + recurrent matmuls fused into one K=2*HP dot -----
        gf = dot(jnp.concatenate([h0, h1], axis=1), wcat1_ref[...]) + bs1
        gn = dot(h1, whn1_ref[...]) + bn1                # recurrent n-gate term
        r1 = jax.nn.sigmoid(gf[:, :H])
        z1 = jax.nn.sigmoid(gf[:, H:2 * H])
        # gf_n - gn + r1*gn == x@Wi_n + bi_n + r1*(h@Wh_n + bh_n)  (PyTorch GRU)
        n1 = jnp.tanh(gf[:, 2 * H:] - gn + r1 * gn)
        h1 = jnp.where(m, (1.0 - z1) * n1 + z1 * h1, h1)

    # -- fused dense head (128-lane padded; dense3 concat = split matmul) -----
    d1 = jnp.tanh(dot(h1, w1_ref[...]) + b1_ref[...])
    d2 = jnp.tanh(dot(s_ref[...], w2_ref[...]) + b2_ref[...])
    x3 = jnp.maximum(dot(d1, w3a_ref[...]) + dot(d2, w3b_ref[...])
                     + b3_ref[...], 0.0)
    x4 = jnp.maximum(dot(x3, w4_ref[...]) + b4_ref[...], 0.0)
    out_ref[...] = (dot(x4, wo_ref[...]) + bo_ref[...]).astype(out_ref.dtype)


# ---------------------------------------------------------------------------
# Wrapper
# ---------------------------------------------------------------------------
def gru_plus_md_forward(x_ts, lengths, x_static, gru_params, head_params,
                        out_dim):
    B, T, F = x_ts.shape
    S = x_static.shape[1]
    assert B <= SUB, "pad/grid over batch blocks for B > 8"
    BP, FP, SP = SUB, _rup8(F), _rup8(S)

    # Batch padded to a full sublane tile; time-major (T, BP, FP) -> (T*BP, FP)
    # so per-step slabs start at multiples-of-8 row offsets.
    x_pad = jnp.zeros((BP, T, FP), jnp.float32).at[:B, :, :F].set(
        x_ts.astype(jnp.float32))
    x_flat = jnp.transpose(x_pad, (1, 0, 2)).reshape(T * BP, FP)
    s_pad = jnp.zeros((BP, SP), jnp.float32).at[:B, :S].set(
        x_static.astype(jnp.float32))

    # Packed-sequence freeze mask precomputed once (hoists per-step
    # iota/compare/broadcast off the recurrent critical path).
    len_pad = jnp.zeros((BP,), jnp.int32).at[:B].set(lengths.astype(jnp.int32))
    step = jnp.arange(T, dtype=jnp.int32)
    mask = (step[:, None] < len_pad[None, :]).astype(jnp.int32)     # (T, BP)
    mask_full = jnp.broadcast_to(mask[:, :, None], (T, BP, HP)).reshape(
        T * BP, HP)

    vmem = pltpu.MemorySpace.VMEM
    n_in = 3 + len(gru_params) + len(head_params)
    kernel = functools.partial(fused_kernel, T=T, BP=BP)

    out = pl.pallas_call(
        kernel,
        out_shape=jax.ShapeDtypeStruct((BP, HP), jnp.float32),
        in_specs=[pl.BlockSpec(memory_space=vmem)] * n_in,
        out_specs=pl.BlockSpec(memory_space=vmem),
        scratch_shapes=[pltpu.VMEM((T * BP, 3 * HP), jnp.float32)],  # xp0 slab
    )(mask_full, x_flat, s_pad, *gru_params, *head_params)
    return out[:B, :out_dim]


# ---------------------------------------------------------------------------
# Parameter preparation: PyTorch-shaped weights -> fused / padded kernel form.
# ---------------------------------------------------------------------------
def _pad2(a, rows, cols, dtype=jnp.float32):
    a = jnp.asarray(a, jnp.float32)
    out = jnp.zeros((rows, cols), jnp.float32)
    out = out.at[:a.shape[0], :a.shape[1]].set(a)
    return out.astype(dtype)


def _fuse_gate_cols(w, in_rows, dtype=jnp.bfloat16):
    # PyTorch (3H, in) -> (in_rows, 3*HP), gate-major columns [r | z | n].
    H = HIDDEN
    w = jnp.asarray(w, jnp.float32)
    return jnp.concatenate(
        [_pad2(w[i * H:(i + 1) * H].T, in_rows, HP, dtype) for i in range(3)],
        axis=1)


def _fuse_gate_bias(b):
    H = HIDDEN
    b = jnp.asarray(b, jnp.float32)
    return jnp.concatenate(
        [_pad2(b[i * H:(i + 1) * H].reshape(1, H), 1, HP) for i in range(3)],
        axis=1)


def _rows(b_1xn):
    return jnp.tile(b_1xn, (SUB, 1))        # tile bias to the 8 padded rows


def prepare_params(p):
    H = HIDDEN
    F = p['w_ih_l0'].shape[1]
    S = p['W2'].shape[1]
    FP, SP = _rup8(F), _rup8(S)
    bf = jnp.bfloat16

    # layer 0
    wi0 = _fuse_gate_cols(p['w_ih_l0'], FP)
    wh0 = _fuse_gate_cols(p['w_hh_l0'], HP)
    bi0 = _fuse_gate_bias(p['b_ih_l0'])                        # (1, 3HP)
    bh0 = _rows(_fuse_gate_bias(p['b_hh_l0']))
    # layer 1: stack [Wi1; Wh1] so the in-loop matmul is concat([h0,h1]) @ wcat1
    wi1 = _fuse_gate_cols(p['w_ih_l1'], HP)
    wh1 = _fuse_gate_cols(p['w_hh_l1'], HP)
    wcat1 = jnp.concatenate([wi1, wh1], axis=0)                # (2HP, 3HP)
    whn1 = _pad2(jnp.asarray(p['w_hh_l1'])[2 * H:3 * H].T, HP, HP, bf)
    bsum1 = _rows(_fuse_gate_bias(p['b_ih_l1']) + _fuse_gate_bias(p['b_hh_l1']))
    bhn1 = _rows(_pad2(jnp.asarray(p['b_hh_l1'])[2 * H:3 * H].reshape(1, H),
                       1, HP))
    gru_params = [wi0, wh0, bi0, bh0, wcat1, whn1, bsum1, bhn1]

    head_params = [
        _pad2(p['W1'].T, HP, HP, bf), _rows(_pad2(p['b1'].reshape(1, -1), 1, HP)),
        _pad2(p['W2'].T, SP, HP, bf), _rows(_pad2(p['b2'].reshape(1, -1), 1, HP)),
        _pad2(p['W3'][:, :H].T, HP, HP, bf),                   # dense3 gru branch
        _pad2(p['W3'][:, H:].T, HP, HP, bf),                   # dense3 static branch
        _rows(_pad2(p['b3'].reshape(1, -1), 1, HP)),
        _pad2(p['W4'].T, HP, HP, bf), _rows(_pad2(p['b4'].reshape(1, -1), 1, HP)),
        _pad2(p['Wo'].T, HP, HP, bf), _rows(_pad2(p['bo'].reshape(1, -1), 1, HP)),
    ]
    return gru_params, head_params


def init_torch_params(key, output_dim, ts_feature_dim=5, static_feature_dim=18):
    H = HIDDEN
    keys = iter(jax.random.split(key, 24))
    uni = lambda shape, k: jax.random.uniform(next(keys), shape, jnp.float32, -k, k)
    kg = 1.0 / (H ** 0.5)
    p = {
        'w_ih_l0': uni((3 * H, ts_feature_dim), kg),
        'w_hh_l0': uni((3 * H, H), kg),
        'b_ih_l0': uni((3 * H,), kg),
        'b_hh_l0': uni((3 * H,), kg),
        'w_ih_l1': uni((3 * H, H), kg),
        'w_hh_l1': uni((3 * H, H), kg),
        'b_ih_l1': uni((3 * H,), kg),
        'b_hh_l1': uni((3 * H,), kg),
    }

    def linear(out_f, in_f):
        k = 1.0 / (in_f ** 0.5)
        return uni((out_f, in_f), k), uni((out_f,), k)

    p['W1'], p['b1'] = linear(100, 100)
    p['W2'], p['b2'] = linear(10, static_feature_dim)
    p['W3'], p['b3'] = linear(100, 100 + 10)
    p['W4'], p['b4'] = linear(64, 100)
    p['Wo'], p['bo'] = linear(output_dim, 64)
    return p


# ---------------------------------------------------------------------------
# Pure-JAX f32 reference with PyTorch-shaped weights (unpadded, unfused).
# ---------------------------------------------------------------------------
def ref_forward(x_ts, lengths, x_static, p):
    H = HIDDEN
    B, T, _ = x_ts.shape

    def cell(x, h, w_ih, w_hh, b_ih, b_hh):
        gi = x @ w_ih.T + b_ih
        gh = h @ w_hh.T + b_hh
        r = jax.nn.sigmoid(gi[:, :H] + gh[:, :H])
        z = jax.nn.sigmoid(gi[:, H:2 * H] + gh[:, H:2 * H])
        n = jnp.tanh(gi[:, 2 * H:] + r * gh[:, 2 * H:])
        return (1.0 - z) * n + z * h

    h0 = jnp.zeros((B, H), jnp.float32)
    h1 = jnp.zeros((B, H), jnp.float32)
    for t in range(T):
        m = (t < lengths)[:, None]
        h0 = jnp.where(m, cell(x_ts[:, t, :], h0, p['w_ih_l0'], p['w_hh_l0'],
                               p['b_ih_l0'], p['b_hh_l0']), h0)
        h1 = jnp.where(m, cell(h0, h1, p['w_ih_l1'], p['w_hh_l1'],
                               p['b_ih_l1'], p['b_hh_l1']), h1)
    d1 = jnp.tanh(h1 @ p['W1'].T + p['b1'])
    d2 = jnp.tanh(x_static @ p['W2'].T + p['b2'])
    x = jnp.concatenate([d1, d2], axis=1)
    x = jax.nn.relu(x @ p['W3'].T + p['b3'])
    x = jax.nn.relu(x @ p['W4'].T + p['b4'])
    return x @ p['Wo'].T + p['bo']


if __name__ == "__main__":
    B, T = 2, 8
    TS_F, ST_F, OUT_DIM = 5, 18, 8

    kp, k1, k2 = jax.random.split(jax.random.PRNGKey(0), 3)
    torch_params = init_torch_params(kp, OUT_DIM, TS_F, ST_F)
    gru_params, head_params = prepare_params(torch_params)

    x_ts = jax.random.normal(k1, (B, T, TS_F), jnp.float32)      # batch['ts']
    x_static = jax.random.normal(k2, (B, ST_F), jnp.float32)     # batch['static']
    lengths = jnp.array([T, 5], jnp.int32)                       # batch['length']

    logits = gru_plus_md_forward(x_ts, lengths, x_static,
                                 gru_params, head_params, OUT_DIM)
    logits = jax.block_until_ready(logits)

    ref = ref_forward(x_ts, lengths, x_static, torch_params)
    assert logits.shape == (B, OUT_DIM)
    # bf16 MXU operands (f32 accumulation) -> tolerance relaxed vs all-f32 path.
    assert jnp.allclose(logits, ref, atol=2e-2, rtol=2e-2), (logits, ref)
    print("KERNEL_OK")
</pallas_src>

<mosaic_0001>
module attributes {stable_mosaic.version = 11 : i64} {
  func.func @fused_kernel(%arg0: memref<64x128xi32, #tpu.memory_space<vmem>>, %arg1: memref<64x8xf32, #tpu.memory_space<vmem>>, %arg2: memref<8x24xf32, #tpu.memory_space<vmem>>, %arg3: memref<8x384xbf16, #tpu.memory_space<vmem>>, %arg4: memref<128x384xbf16, #tpu.memory_space<vmem>>, %arg5: memref<1x384xf32, #tpu.memory_space<vmem>>, %arg6: memref<8x384xf32, #tpu.memory_space<vmem>>, %arg7: memref<256x384xbf16, #tpu.memory_space<vmem>>, %arg8: memref<128x128xbf16, #tpu.memory_space<vmem>>, %arg9: memref<8x384xf32, #tpu.memory_space<vmem>>, %arg10: memref<8x128xf32, #tpu.memory_space<vmem>>, %arg11: memref<128x128xbf16, #tpu.memory_space<vmem>>, %arg12: memref<8x128xf32, #tpu.memory_space<vmem>>, %arg13: memref<24x128xbf16, #tpu.memory_space<vmem>>, %arg14: memref<8x128xf32, #tpu.memory_space<vmem>>, %arg15: memref<128x128xbf16, #tpu.memory_space<vmem>>, %arg16: memref<128x128xbf16, #tpu.memory_space<vmem>>, %arg17: memref<8x128xf32, #tpu.memory_space<vmem>>, %arg18: memref<128x128xbf16, #tpu.memory_space<vmem>>, %arg19: memref<8x128xf32, #tpu.memory_space<vmem>>, %arg20: memref<128x128xbf16, #tpu.memory_space<vmem>>, %arg21: memref<8x128xf32, #tpu.memory_space<vmem>>, %arg22: memref<8x128xf32, #tpu.memory_space<vmem>>, %arg23: memref<64x384xf32, #tpu.memory_space<vmem>>) attributes {dimension_semantics = [], scalar_prefetch = 0 : i64, scratch_operands = 1 : i64, tpu.core_type = #tpu.core_type<tc>} {
    %c0 = arith.constant 0 : index
    %c0_0 = arith.constant 0 : index
    %0 = vector.load %arg1[%c0, %c0_0] : memref<64x8xf32, #tpu.memory_space<vmem>>, vector<64x8xf32>
    %c0_1 = arith.constant 0 : index
    %c0_2 = arith.constant 0 : index
    %1 = vector.load %arg3[%c0_1, %c0_2] : memref<8x384xbf16, #tpu.memory_space<vmem>>, vector<8x384xbf16>
    %2 = arith.truncf %0 : vector<64x8xf32> to vector<64x8xbf16>
    %cst = arith.constant dense<0.000000e+00> : vector<64x384xf32>
    %3 = tpu.matmul %2, %1, %cst {dimension_numbers = #tpu.dot_dimension_numbers<[1], [0], [0], [1], [0, 0, 1, 1], [], []>} : vector<64x8xbf16>, vector<8x384xbf16>, vector<64x384xf32> -> vector<64x384xf32>
    %c0_3 = arith.constant 0 : index
    %c0_4 = arith.constant 0 : index
    %4 = vector.load %arg5[%c0_3, %c0_4] : memref<1x384xf32, #tpu.memory_space<vmem>>, vector<1x384xf32>
    %5 = vector.broadcast %4 : vector<1x384xf32> to vector<64x384xf32>
    %6 = arith.addf %3, %5 : vector<64x384xf32>
    %c0_5 = arith.constant 0 : index
    %c0_6 = arith.constant 0 : index
    %7 = vector.load %arg23[%c0_5, %c0_6] : memref<64x384xf32, #tpu.memory_space<vmem>>, vector<64x384xf32>
    tpu.vector_store %arg23[%c0_5, %c0_6], %6 {strides = array<i32>} : memref<64x384xf32, #tpu.memory_space<vmem>>, vector<64x384xf32>,
    %c0_7 = arith.constant 0 : index
    %c0_8 = arith.constant 0 : index
    %8 = vector.load %arg6[%c0_7, %c0_8] : memref<8x384xf32, #tpu.memory_space<vmem>>, vector<8x384xf32>
    %c0_9 = arith.constant 0 : index
    %c0_10 = arith.constant 0 : index
    %9 = vector.load %arg9[%c0_9, %c0_10] : memref<8x384xf32, #tpu.memory_space<vmem>>, vector<8x384xf32>
    %c0_11 = arith.constant 0 : index
    %c0_12 = arith.constant 0 : index
    %10 = vector.load %arg10[%c0_11, %c0_12] : memref<8x128xf32, #tpu.memory_space<vmem>>, vector<8x128xf32>
    %cst_13 = arith.constant 0.000000e+00 : f32
    %11 = vector.broadcast %cst_13 : f32 to vector<8x128xf32>
    %cst_14 = arith.constant 0.000000e+00 : f32
    %12 = vector.broadcast %cst_14 : f32 to vector<8x128xf32>
    %c0_15 = arith.constant 0 : index
    %c0_16 = arith.constant 0 : index
    %13 = vector.load %arg23[%c0_15, %c0_16] : memref<64x384xf32, #tpu.memory_space<vmem>>, vector<8x384xf32>
    %c0_17 = arith.constant 0 : index
    %c0_18 = arith.constant 0 : index
    %14 = vector.load %arg0[%c0_17, %c0_18] : memref<64x128xi32, #tpu.memory_space<vmem>>, vector<8x128xi32>
    %c0_i32 = arith.constant 0 : i32
    %15 = vector.broadcast %c0_i32 : i32 to vector<8x128xi32>
    %16 = arith.cmpi ne, %14, %15 : vector<8x128xi32>
    %c0_19 = arith.constant 0 : index
    %c0_20 = arith.constant 0 : index
    %17 = vector.load %arg4[%c0_19, %c0_20] : memref<128x384xbf16, #tpu.memory_space<vmem>>, vector<128x384xbf16>
    %18 = arith.truncf %11 : vector<8x128xf32> to vector<8x128xbf16>
    %cst_21 = arith.constant dense<0.000000e+00> : vector<8x384xf32>
    %19 = tpu.matmul %18, %17, %cst_21 {dimension_numbers = #tpu.dot_dimension_numbers<[1], [0], [0], [1], [0, 0, 1, 1], [], []>} : vector<8x128xbf16>, vector<128x384xbf16>, vector<8x384xf32> -> vector<8x384xf32>
    %20 = arith.addf %19, %8 : vector<8x384xf32>
    %21 = vector.extract_strided_slice %13 {offsets = [0, 0], sizes = [8, 128], strides = [1, 1]} : vector<8x384xf32> to vector<8x128xf32>
    %22 = vector.extract_strided_slice %20 {offsets = [0, 0], sizes = [8, 128], strides = [1, 1]} : vector<8x384xf32> to vector<8x128xf32>
    %23 = arith.addf %21, %22 : vector<8x128xf32>
    %24 = arith.negf %23 : vector<8x128xf32>
    %25 = math.exp %24 : vector<8x128xf32>
    %cst_22 = arith.constant 1.000000e+00 : f32
    %26 = vector.broadcast %cst_22 : f32 to vector<8x128xf32>
    %27 = arith.addf %26, %25 : vector<8x128xf32>
    %28 = arith.divf %26, %27 : vector<8x128xf32>
    %29 = vector.extract_strided_slice %13 {offsets = [0, 128], sizes = [8, 128], strides = [1, 1]} : vector<8x384xf32> to vector<8x128xf32>
    %30 = vector.extract_strided_slice %20 {offsets = [0, 128], sizes = [8, 128], strides = [1, 1]} : vector<8x384xf32> to vector<8x128xf32>
    %31 = arith.addf %29, %30 : vector<8x128xf32>
    %32 = arith.negf %31 : vector<8x128xf32>
    %33 = math.exp %32 : vector<8x128xf32>
    %cst_23 = arith.constant 1.000000e+00 : f32
    %34 = vector.broadcast %cst_23 : f32 to vector<8x128xf32>
    %35 = arith.addf %34, %33 : vector<8x128xf32>
    %36 = arith.divf %34, %35 : vector<8x128xf32>
    %37 = vector.extract_strided_slice %13 {offsets = [0, 256], sizes = [8, 128], strides = [1, 1]} : vector<8x384xf32> to vector<8x128xf32>
    %38 = vector.extract_strided_slice %20 {offsets = [0, 256], sizes = [8, 128], strides = [1, 1]} : vector<8x384xf32> to vector<8x128xf32>
    %39 = arith.mulf %28, %38 : vector<8x128xf32>
    %40 = arith.addf %37, %39 : vector<8x128xf32>
    %41 = math.tanh %40 : vector<8x128xf32>
    %cst_24 = arith.constant 1.000000e+00 : f32
    %42 = vector.broadcast %cst_24 : f32 to vector<8x128xf32>
    %43 = arith.subf %42, %36 : vector<8x128xf32>
    %44 = arith.mulf %43, %41 : vector<8x128xf32>
    %45 = arith.mulf %36, %11 : vector<8x128xf32>
    %46 = arith.addf %44, %45 : vector<8x128xf32>
    %47 = arith.select %16, %46, %11 : vector<8x128xi1>, vector<8x128xf32>
    %48 = tpu.concatenate %47, %12 in 1 : vector<8x128xf32>, vector<8x128xf32> -> vector<8x256xf32>
    %c0_25 = arith.constant 0 : index
    %c0_26 = arith.constant 0 : index
    %49 = vector.load %arg7[%c0_25, %c0_26] : memref<256x384xbf16, #tpu.memory_space<vmem>>, vector<256x384xbf16>
    %50 = arith.truncf %48 : vector<8x256xf32> to vector<8x256xbf16>
    %cst_27 = arith.constant dense<0.000000e+00> : vector<8x384xf32>
    %51 = tpu.matmul %50, %49, %cst_27 {dimension_numbers = #tpu.dot_dimension_numbers<[1], [0], [0], [1], [0, 0, 1, 1], [], []>} : vector<8x256xbf16>, vector<256x384xbf16>, vector<8x384xf32> -> vector<8x384xf32>
    %52 = arith.addf %51, %9 : vector<8x384xf32>
    %c0_28 = arith.constant 0 : index
    %c0_29 = arith.constant 0 : index
    %53 = vector.load %arg8[%c0_28, %c0_29] : memref<128x128xbf16, #tpu.memory_space<vmem>>, vector<128x128xbf16>
    %54 = arith.truncf %12 : vector<8x128xf32> to vector<8x128xbf16>
    %cst_30 = arith.constant dense<0.000000e+00> : vector<8x128xf32>
    %55 = tpu.matmul %54, %53, %cst_30 {dimension_numbers = #tpu.dot_dimension_numbers<[1], [0], [0], [1], [0, 0, 1, 1], [], []>} : vector<8x128xbf16>, vector<128x128xbf16>, vector<8x128xf32> -> vector<8x128xf32>
    %56 = arith.addf %55, %10 : vector<8x128xf32>
    %57 = vector.extract_strided_slice %52 {offsets = [0, 0], sizes = [8, 128], strides = [1, 1]} : vector<8x384xf32> to vector<8x128xf32>
    %58 = arith.negf %57 : vector<8x128xf32>
    %59 = math.exp %58 : vector<8x128xf32>
    %cst_31 = arith.constant 1.000000e+00 : f32
    %60 = vector.broadcast %cst_31 : f32 to vector<8x128xf32>
    %61 = arith.addf %60, %59 : vector<8x128xf32>
    %62 = arith.divf %60, %61 : vector<8x128xf32>
    %63 = vector.extract_strided_slice %52 {offsets = [0, 128], sizes = [8, 128], strides = [1, 1]} : vector<8x384xf32> to vector<8x128xf32>
    %64 = arith.negf %63 : vector<8x128xf32>
    %65 = math.exp %64 : vector<8x128xf32>
    %cst_32 = arith.constant 1.000000e+00 : f32
    %66 = vector.broadcast %cst_32 : f32 to vector<8x128xf32>
    %67 = arith.addf %66, %65 : vector<8x128xf32>
    %68 = arith.divf %66, %67 : vector<8x128xf32>
    %69 = vector.extract_strided_slice %52 {offsets = [0, 256], sizes = [8, 128], strides = [1, 1]} : vector<8x384xf32> to vector<8x128xf32>
    %70 = arith.subf %69, %56 : vector<8x128xf32>
    %71 = arith.mulf %62, %56 : vector<8x128xf32>
    %72 = arith.addf %70, %71 : vector<8x128xf32>
    %73 = math.tanh %72 : vector<8x128xf32>
    %cst_33 = arith.constant 1.000000e+00 : f32
    %74 = vector.broadcast %cst_33 : f32 to vector<8x128xf32>
    %75 = arith.subf %74, %68 : vector<8x128xf32>
    %76 = arith.mulf %75, %73 : vector<8x128xf32>
    %77 = arith.mulf %68, %12 : vector<8x128xf32>
    %78 = arith.addf %76, %77 : vector<8x128xf32>
    %79 = arith.select %16, %78, %12 : vector<8x128xi1>, vector<8x128xf32>
    %c8 = arith.constant 8 : index
    %c0_34 = arith.constant 0 : index
    %80 = vector.load %arg23[%c8, %c0_34] : memref<64x384xf32, #tpu.memory_space<vmem>>, vector<8x384xf32>
    %c8_35 = arith.constant 8 : index
    %c0_36 = arith.constant 0 : index
    %81 = vector.load %arg0[%c8_35, %c0_36] : memref<64x128xi32, #tpu.memory_space<vmem>>, vector<8x128xi32>
    %c0_i32_37 = arith.constant 0 : i32
    %82 = vector.broadcast %c0_i32_37 : i32 to vector<8x128xi32>
    %83 = arith.cmpi ne, %81, %82 : vector<8x128xi32>
    %c0_38 = arith.constant 0 : index
    %c0_39 = arith.constant 0 : index
    %84 = vector.load %arg4[%c0_38, %c0_39] : memref<128x384xbf16, #tpu.memory_space<vmem>>, vector<128x384xbf16>
    %85 = arith.truncf %47 : vector<8x128xf32> to vector<8x128xbf16>
    %cst_40 = arith.constant dense<0.000000e+00> : vector<8x384xf32>
    %86 = tpu.matmul %85, %84, %cst_40 {dimension_numbers = #tpu.dot_dimension_numbers<[1], [0], [0], [1], [0, 0, 1, 1], [], []>} : vector<8x128xbf16>, vector<128x384xbf16>, vector<8x384xf32> -> vector<8x384xf32>
    %87 = arith.addf %86, %8 : vector<8x384xf32>
    %88 = vector.extract_strided_slice %80 {offsets = [0, 0], sizes = [8, 128], strides = [1, 1]} : vector<8x384xf32> to vector<8x128xf32>
    %89 = vector.extract_strided_slice %87 {offsets = [0, 0], sizes = [8, 128], strides = [1, 1]} : vector<8x384xf32> to vector<8x128xf32>
    %90 = arith.addf %88, %89 : vector<8x128xf32>
    %91 = arith.negf %90 : vector<8x128xf32>
    %92 = math.exp %91 : vector<8x128xf32>
    %cst_41 = arith.constant 1.000000e+00 : f32
    %93 = vector.broadcast %cst_41 : f32 to vector<8x128xf32>
    %94 = arith.addf %93, %92 : vector<8x128xf32>
    %95 = arith.divf %93, %94 : vector<8x128xf32>
    %96 = vector.extract_strided_slice %80 {offsets = [0, 128], sizes = [8, 128], strides = [1, 1]} : vector<8x384xf32> to vector<8x128xf32>
    %97 = vector.extract_strided_slice %87 {offsets = [0, 128], sizes = [8, 128], strides = [1, 1]} : vector<8x384xf32> to vector<8x128xf32>
    %98 = arith.addf %96, %97 : vector<8x128xf32>
    %99 = arith.negf %98 : vector<8x128xf32>
    %100 = math.exp %99 : vector<8x128xf32>
    %cst_42 = arith.constant 1.000000e+00 : f32
    %101 = vector.broadcast %cst_42 : f32 to vector<8x128xf32>
    %102 = arith.addf %101, %100 : vector<8x128xf32>
    %103 = arith.divf %101, %102 : vector<8x128xf32>
    %104 = vector.extract_strided_slice %80 {offsets = [0, 256], sizes = [8, 128], strides = [1, 1]} : vector<8x384xf32> to vector<8x128xf32>
    %105 = vector.extract_strided_slice %87 {offsets = [0, 256], sizes = [8, 128], strides = [1, 1]} : vector<8x384xf32> to vector<8x128xf32>
    %106 = arith.mulf %95, %105 : vector<8x128xf32>
    %107 = arith.addf %104, %106 : vector<8x128xf32>
    %108 = math.tanh %107 : vector<8x128xf32>
    %cst_43 = arith.constant 1.000000e+00 : f32
    %109 = vector.broadcast %cst_43 : f32 to vector<8x128xf32>
    %110 = arith.subf %109, %103 : vector<8x128xf32>
    %111 = arith.mulf %110, %108 : vector<8x128xf32>
    %112 = arith.mulf %103, %47 : vector<8x128xf32>
    %113 = arith.addf %111, %112 : vector<8x128xf32>
    %114 = arith.select %83, %113, %47 : vector<8x128xi1>, vector<8x128xf32>
    %115 = tpu.concatenate %114, %79 in 1 : vector<8x128xf32>, vector<8x128xf32> -> vector<8x256xf32>
    %c0_44 = arith.constant 0 : index
    %c0_45 = arith.constant 0 : index
    %116 = vector.load %arg7[%c0_44, %c0_45] : memref<256x384xbf16, #tpu.memory_space<vmem>>, vector<256x384xbf16>
    %117 = arith.truncf %115 : vector<8x256xf32> to vector<8x256xbf16>
    %cst_46 = arith.constant dense<0.000000e+00> : vector<8x384xf32>
    %118 = tpu.matmul %117, %116, %cst_46 {dimension_numbers = #tpu.dot_dimension_numbers<[1], [0], [0], [1], [0, 0, 1, 1], [], []>} : vector<8x256xbf16>, vector<256x384xbf16>, vector<8x384xf32> -> vector<8x384xf32>
    %119 = arith.addf %118, %9 : vector<8x384xf32>
    %c0_47 = arith.constant 0 : index
    %c0_48 = arith.constant 0 : index
    %120 = vector.load %arg8[%c0_47, %c0_48] : memref<128x128xbf16, #tpu.memory_space<vmem>>, vector<128x128xbf16>
    %121 = arith.truncf %79 : vector<8x128xf32> to vector<8x128xbf16>
    %cst_49 = arith.constant dense<0.000000e+00> : vector<8x128xf32>
    %122 = tpu.matmul %121, %120, %cst_49 {dimension_numbers = #tpu.dot_dimension_numbers<[1], [0], [0], [1], [0, 0, 1, 1], [], []>} : vector<8x128xbf16>, vector<128x128xbf16>, vector<8x128xf32> -> vector<8x128xf32>
    %123 = arith.addf %122, %10 : vector<8x128xf32>
    %124 = vector.extract_strided_slice %119 {offsets = [0, 0], sizes = [8, 128], strides = [1, 1]} : vector<8x384xf32> to vector<8x128xf32>
    %125 = arith.negf %124 : vector<8x128xf32>
    %126 = math.exp %125 : vector<8x128xf32>
    %cst_50 = arith.constant 1.000000e+00 : f32
    %127 = vector.broadcast %cst_50 : f32 to vector<8x128xf32>
    %128 = arith.addf %127, %126 : vector<8x128xf32>
    %129 = arith.divf %127, %128 : vector<8x128xf32>
    %130 = vector.extract_strided_slice %119 {offsets = [0, 128], sizes = [8, 128], strides = [1, 1]} : vector<8x384xf32> to vector<8x128xf32>
    %131 = arith.negf %130 : vector<8x128xf32>
    %132 = math.exp %131 : vector<8x128xf32>
    %cst_51 = arith.constant 1.000000e+00 : f32
    %133 = vector.broadcast %cst_51 : f32 to vector<8x128xf32>
    %134 = arith.addf %133, %132 : vector<8x128xf32>
    %135 = arith.divf %133, %134 : vector<8x128xf32>
    %136 = vector.extract_strided_slice %119 {offsets = [0, 256], sizes = [8, 128], strides = [1, 1]} : vector<8x384xf32> to vector<8x128xf32>
    %137 = arith.subf %136, %123 : vector<8x128xf32>
    %138 = arith.mulf %129, %123 : vector<8x128xf32>
    %139 = arith.addf %137, %138 : vector<8x128xf32>
    %140 = math.tanh %139 : vector<8x128xf32>
    %cst_52 = arith.constant 1.000000e+00 : f32
    %141 = vector.broadcast %cst_52 : f32 to vector<8x128xf32>
    %142 = arith.subf %141, %135 : vector<8x128xf32>
    %143 = arith.mulf %142, %140 : vector<8x128xf32>
    %144 = arith.mulf %135, %79 : vector<8x128xf32>
    %145 = arith.addf %143, %144 : vector<8x128xf32>
    %146 = arith.select %83, %145, %79 : vector<8x128xi1>, vector<8x128xf32>
    %c16 = arith.constant 16 : index
    %c0_53 = arith.constant 0 : index
    %147 = vector.load %arg23[%c16, %c0_53] : memref<64x384xf32, #tpu.memory_space<vmem>>, vector<8x384xf32>
    %c16_54 = arith.constant 16 : index
    %c0_55 = arith.constant 0 : index
    %148 = vector.load %arg0[%c16_54, %c0_55] : memref<64x128xi32, #tpu.memory_space<vmem>>, vector<8x128xi32>
    %c0_i32_56 = arith.constant 0 : i32
    %149 = vector.broadcast %c0_i32_56 : i32 to vector<8x128xi32>
    %150 = arith.cmpi ne, %148, %149 : vector<8x128xi32>
    %c0_57 = arith.constant 0 : index
    %c0_58 = arith.constant 0 : index
    %151 = vector.load %arg4[%c0_57, %c0_58] : memref<128x384xbf16, #tpu.memory_space<vmem>>, vector<128x384xbf16>
    %152 = arith.truncf %114 : vector<8x128xf32> to vector<8x128xbf16>
    %cst_59 = arith.constant dense<0.000000e+00> : vector<8x384xf32>
    %153 = tpu.matmul %152, %151, %cst_59 {dimension_numbers = #tpu.dot_dimension_numbers<[1], [0], [0], [1], [0, 0, 1, 1], [], []>} : vector<8x128xbf16>, vector<128x384xbf16>, vector<8x384xf32> -> vector<8x384xf32>
    %154 = arith.addf %153, %8 : vector<8x384xf32>
    %155 = vector.extract_strided_slice %147 {offsets = [0, 0], sizes = [8, 128], strides = [1, 1]} : vector<8x384xf32> to vector<8x128xf32>
    %156 = vector.extract_strided_slice %154 {offsets = [0, 0], sizes = [8, 128], strides = [1, 1]} : vector<8x384xf32> to vector<8x128xf32>
    %157 = arith.addf %155, %156 : vector<8x128xf32>
    %158 = arith.negf %157 : vector<8x128xf32>
    %159 = math.exp %158 : vector<8x128xf32>
    %cst_60 = arith.constant 1.000000e+00 : f32
    %160 = vector.broadcast %cst_60 : f32 to vector<8x128xf32>
    %161 = arith.addf %160, %159 : vector<8x128xf32>
    %162 = arith.divf %160, %161 : vector<8x128xf32>
    %163 = vector.extract_strided_slice %147 {offsets = [0, 128], sizes = [8, 128], strides = [1, 1]} : vector<8x384xf32> to vector<8x128xf32>
    %164 = vector.extract_strided_slice %154 {offsets = [0, 128], sizes = [8, 128], strides = [1, 1]} : vector<8x384xf32> to vector<8x128xf32>
    %165 = arith.addf %163, %164 : vector<8x128xf32>
    %166 = arith.negf %165 : vector<8x128xf32>
    %167 = math.exp %166 : vector<8x128xf32>
    %cst_61 = arith.constant 1.000000e+00 : f32
    %168 = vector.broadcast %cst_61 : f32 to vector<8x128xf32>
    %169 = arith.addf %168, %167 : vector<8x128xf32>
    %170 = arith.divf %168, %169 : vector<8x128xf32>
    %171 = vector.extract_strided_slice %147 {offsets = [0, 256], sizes = [8, 128], strides = [1, 1]} : vector<8x384xf32> to vector<8x128xf32>
    %172 = vector.extract_strided_slice %154 {offsets = [0, 256], sizes = [8, 128], strides = [1, 1]} : vector<8x384xf32> to vector<8x128xf32>
    %173 = arith.mulf %162, %172 : vector<8x128xf32>
    %174 = arith.addf %171, %173 : vector<8x128xf32>
    %175 = math.tanh %174 : vector<8x128xf32>
    %cst_62 = arith.constant 1.000000e+00 : f32
    %176 = vector.broadcast %cst_62 : f32 to vector<8x128xf32>
    %177 = arith.subf %176, %170 : vector<8x128xf32>
    %178 = arith.mulf %177, %175 : vector<8x128xf32>
    %179 = arith.mulf %170, %114 : vector<8x128xf32>
    %180 = arith.addf %178, %179 : vector<8x128xf32>
    %181 = arith.select %150, %180, %114 : vector<8x128xi1>, vector<8x128xf32>
    %182 = tpu.concatenate %181, %146 in 1 : vector<8x128xf32>, vector<8x128xf32> -> vector<8x256xf32>
    %c0_63 = arith.constant 0 : index
    %c0_64 = arith.constant 0 : index
    %183 = vector.load %arg7[%c0_63, %c0_64] : memref<256x384xbf16, #tpu.memory_space<vmem>>, vector<256x384xbf16>
    %184 = arith.truncf %182 : vector<8x256xf32> to vector<8x256xbf16>
    %cst_65 = arith.constant dense<0.000000e+00> : vector<8x384xf32>
    %185 = tpu.matmul %184, %183, %cst_65 {dimension_numbers = #tpu.dot_dimension_numbers<[1], [0], [0], [1], [0, 0, 1, 1], [], []>} : vector<8x256xbf16>, vector<256x384xbf16>, vector<8x384xf32> -> vector<8x384xf32>
    %186 = arith.addf %185, %9 : vector<8x384xf32>
    %c0_66 = arith.constant 0 : index
    %c0_67 = arith.constant 0 : index
    %187 = vector.load %arg8[%c0_66, %c0_67] : memref<128x128xbf16, #tpu.memory_space<vmem>>, vector<128x128xbf16>
    %188 = arith.truncf %146 : vector<8x128xf32> to vector<8x128xbf16>
    %cst_68 = arith.constant dense<0.000000e+00> : vector<8x128xf32>
    %189 = tpu.matmul %188, %187, %cst_68 {dimension_numbers = #tpu.dot_dimension_numbers<[1], [0], [0], [1], [0, 0, 1, 1], [], []>} : vector<8x128xbf16>, vector<128x128xbf16>, vector<8x128xf32> -> vector<8x128xf32>
    %190 = arith.addf %189, %10 : vector<8x128xf32>
    %191 = vector.extract_strided_slice %186 {offsets = [0, 0], sizes = [8, 128], strides = [1, 1]} : vector<8x384xf32> to vector<8x128xf32>
    %192 = arith.negf %191 : vector<8x128xf32>
    %193 = math.exp %192 : vector<8x128xf32>
    %cst_69 = arith.constant 1.000000e+00 : f32
    %194 = vector.broadcast %cst_69 : f32 to vector<8x128xf32>
    %195 = arith.addf %194, %193 : vector<8x128xf32>
    %196 = arith.divf %194, %195 : vector<8x128xf32>
    %197 = vector.extract_strided_slice %186 {offsets = [0, 128], sizes = [8, 128], strides = [1, 1]} : vector<8x384xf32> to vector<8x128xf32>
    %198 = arith.negf %197 : vector<8x128xf32>
    %199 = math.exp %198 : vector<8x128xf32>
    %cst_70 = arith.constant 1.000000e+00 : f32
    %200 = vector.broadcast %cst_70 : f32 to vector<8x128xf32>
    %201 = arith.addf %200, %199 : vector<8x128xf32>
    %202 = arith.divf %200, %201 : vector<8x128xf32>
    %203 = vector.extract_strided_slice %186 {offsets = [0, 256], sizes = [8, 128], strides = [1, 1]} : vector<8x384xf32> to vector<8x128xf32>
    %204 = arith.subf %203, %190 : vector<8x128xf32>
    %205 = arith.mulf %196, %190 : vector<8x128xf32>
    %206 = arith.addf %204, %205 : vector<8x128xf32>
    %207 = math.tanh %206 : vector<8x128xf32>
    %cst_71 = arith.constant 1.000000e+00 : f32
    %208 = vector.broadcast %cst_71 : f32 to vector<8x128xf32>
    %209 = arith.subf %208, %202 : vector<8x128xf32>
    %210 = arith.mulf %209, %207 : vector<8x128xf32>
    %211 = arith.mulf %202, %146 : vector<8x128xf32>
    %212 = arith.addf %210, %211 : vector<8x128xf32>
    %213 = arith.select %150, %212, %146 : vector<8x128xi1>, vector<8x128xf32>
    %c24 = arith.constant 24 : index
    %c0_72 = arith.constant 0 : index
    %214 = vector.load %arg23[%c24, %c0_72] : memref<64x384xf32, #tpu.memory_space<vmem>>, vector<8x384xf32>
    %c24_73 = arith.constant 24 : index
    %c0_74 = arith.constant 0 : index
    %215 = vector.load %arg0[%c24_73, %c0_74] : memref<64x128xi32, #tpu.memory_space<vmem>>, vector<8x128xi32>
    %c0_i32_75 = arith.constant 0 : i32
    %216 = vector.broadcast %c0_i32_75 : i32 to vector<8x128xi32>
    %217 = arith.cmpi ne, %215, %216 : vector<8x128xi32>
    %c0_76 = arith.constant 0 : index
    %c0_77 = arith.constant 0 : index
    %218 = vector.load %arg4[%c0_76, %c0_77] : memref<128x384xbf16, #tpu.memory_space<vmem>>, vector<128x384xbf16>
    %219 = arith.truncf %181 : vector<8x128xf32> to vector<8x128xbf16>
    %cst_78 = arith.constant dense<0.000000e+00> : vector<8x384xf32>
    %220 = tpu.matmul %219, %218, %cst_78 {dimension_numbers = #tpu.dot_dimension_numbers<[1], [0], [0], [1], [0, 0, 1, 1], [], []>} : vector<8x128xbf16>, vector<128x384xbf16>, vector<8x384xf32> -> vector<8x384xf32>
    %221 = arith.addf %220, %8 : vector<8x384xf32>
    %222 = vector.extract_strided_slice %214 {offsets = [0, 0], sizes = [8, 128], strides = [1, 1]} : vector<8x384xf32> to vector<8x128xf32>
    %223 = vector.extract_strided_slice %221 {offsets = [0, 0], sizes = [8, 128], strides = [1, 1]} : vector<8x384xf32> to vector<8x128xf32>
    %224 = arith.addf %222, %223 : vector<8x128xf32>
    %225 = arith.negf %224 : vector<8x128xf32>
    %226 = math.exp %225 : vector<8x128xf32>
    %cst_79 = arith.constant 1.000000e+00 : f32
    %227 = vector.broadcast %cst_79 : f32 to vector<8x128xf32>
    %228 = arith.addf %227, %226 : vector<8x128xf32>
    %229 = arith.divf %227, %228 : vector<8x128xf32>
    %230 = vector.extract_strided_slice %214 {offsets = [0, 128], sizes = [8, 128], strides = [1, 1]} : vector<8x384xf32> to vector<8x128xf32>
    %231 = vector.extract_strided_slice %221 {offsets = [0, 128], sizes = [8, 128], strides = [1, 1]} : vector<8x384xf32> to vector<8x128xf32>
    %232 = arith.addf %230, %231 : vector<8x128xf32>
    %233 = arith.negf %232 : vector<8x128xf32>
    %234 = math.exp %233 : vector<8x128xf32>
    %cst_80 = arith.constant 1.000000e+00 : f32
    %235 = vector.broadcast %cst_80 : f32 to vector<8x128xf32>
    %236 = arith.addf %235, %234 : vector<8x128xf32>
    %237 = arith.divf %235, %236 : vector<8x128xf32>
    %238 = vector.extract_strided_slice %214 {offsets = [0, 256], sizes = [8, 128], strides = [1, 1]} : vector<8x384xf32> to vector<8x128xf32>
    %239 = vector.extract_strided_slice %221 {offsets = [0, 256], sizes = [8, 128], strides = [1, 1]} : vector<8x384xf32> to vector<8x128xf32>
    %240 = arith.mulf %229, %239 : vector<8x128xf32>
    %241 = arith.addf %238, %240 : vector<8x128xf32>
    %242 = math.tanh %241 : vector<8x128xf32>
    %cst_81 = arith.constant 1.000000e+00 : f32
    %243 = vector.broadcast %cst_81 : f32 to vector<8x128xf32>
    %244 = arith.subf %243, %237 : vector<8x128xf32>
    %245 = arith.mulf %244, %242 : vector<8x128xf32>
    %246 = arith.mulf %237, %181 : vector<8x128xf32>
    %247 = arith.addf %245, %246 : vector<8x128xf32>
    %248 = arith.select %217, %247, %181 : vector<8x128xi1>, vector<8x128xf32>
    %249 = tpu.concatenate %248, %213 in 1 : vector<8x128xf32>, vector<8x128xf32> -> vector<8x256xf32>
    %c0_82 = arith.constant 0 : index
    %c0_83 = arith.constant 0 : index
    %250 = vector.load %arg7[%c0_82, %c0_83] : memref<256x384xbf16, #tpu.memory_space<vmem>>, vector<256x384xbf16>
    %251 = arith.truncf %249 : vector<8x256xf32> to vector<8x256xbf16>
    %cst_84 = arith.constant dense<0.000000e+00> : vector<8x384xf32>
    %252 = tpu.matmul %251, %250, %cst_84 {dimension_numbers = #tpu.dot_dimension_numbers<[1], [0], [0], [1], [0, 0, 1, 1], [], []>} : vector<8x256xbf16>, vector<256x384xbf16>, vector<8x384xf32> -> vector<8x384xf32>
    %253 = arith.addf %252, %9 : vector<8x384xf32>
    %c0_85 = arith.constant 0 : index
    %c0_86 = arith.constant 0 : index
    %254 = vector.load %arg8[%c0_85, %c0_86] : memref<128x128xbf16, #tpu.memory_space<vmem>>, vector<128x128xbf16>
    %255 = arith.truncf %213 : vector<8x128xf32> to vector<8x128xbf16>
    %cst_87 = arith.constant dense<0.000000e+00> : vector<8x128xf32>
    %256 = tpu.matmul %255, %254, %cst_87 {dimension_numbers = #tpu.dot_dimension_numbers<[1], [0], [0], [1], [0, 0, 1, 1], [], []>} : vector<8x128xbf16>, vector<128x128xbf16>, vector<8x128xf32> -> vector<8x128xf32>
    %257 = arith.addf %256, %10 : vector<8x128xf32>
    %258 = vector.extract_strided_slice %253 {offsets = [0, 0], sizes = [8, 128], strides = [1, 1]} : vector<8x384xf32> to vector<8x128xf32>
    %259 = arith.negf %258 : vector<8x128xf32>
    %260 = math.exp %259 : vector<8x128xf32>
    %cst_88 = arith.constant 1.000000e+00 : f32
    %261 = vector.broadcast %cst_88 : f32 to vector<8x128xf32>
    %262 = arith.addf %261, %260 : vector<8x128xf32>
    %263 = arith.divf %261, %262 : vector<8x128xf32>
    %264 = vector.extract_strided_slice %253 {offsets = [0, 128], sizes = [8, 128], strides = [1, 1]} : vector<8x384xf32> to vector<8x128xf32>
    %265 = arith.negf %264 : vector<8x128xf32>
    %266 = math.exp %265 : vector<8x128xf32>
    %cst_89 = arith.constant 1.000000e+00 : f32
    %267 = vector.broadcast %cst_89 : f32 to vector<8x128xf32>
    %268 = arith.addf %267, %266 : vector<8x128xf32>
    %269 = arith.divf %267, %268 : vector<8x128xf32>
    %270 = vector.extract_strided_slice %253 {offsets = [0, 256], sizes = [8, 128], strides = [1, 1]} : vector<8x384xf32> to vector<8x128xf32>
    %271 = arith.subf %270, %257 : vector<8x128xf32>
    %272 = arith.mulf %263, %257 : vector<8x128xf32>
    %273 = arith.addf %271, %272 : vector<8x128xf32>
    %274 = math.tanh %273 : vector<8x128xf32>
    %cst_90 = arith.constant 1.000000e+00 : f32
    %275 = vector.broadcast %cst_90 : f32 to vector<8x128xf32>
    %276 = arith.subf %275, %269 : vector<8x128xf32>
    %277 = arith.mulf %276, %274 : vector<8x128xf32>
    %278 = arith.mulf %269, %213 : vector<8x128xf32>
    %279 = arith.addf %277, %278 : vector<8x128xf32>
    %280 = arith.select %217, %279, %213 : vector<8x128xi1>, vector<8x128xf32>
    %c32 = arith.constant 32 : index
    %c0_91 = arith.constant 0 : index
    %281 = vector.load %arg23[%c32, %c0_91] : memref<64x384xf32, #tpu.memory_space<vmem>>, vector<8x384xf32>
    %c32_92 = arith.constant 32 : index
    %c0_93 = arith.constant 0 : index
    %282 = vector.load %arg0[%c32_92, %c0_93] : memref<64x128xi32, #tpu.memory_space<vmem>>, vector<8x128xi32>
    %c0_i32_94 = arith.constant 0 : i32
    %283 = vector.broadcast %c0_i32_94 : i32 to vector<8x128xi32>
    %284 = arith.cmpi ne, %282, %283 : vector<8x128xi32>
    %c0_95 = arith.constant 0 : index
    %c0_96 = arith.constant 0 : index
    %285 = vector.load %arg4[%c0_95, %c0_96] : memref<128x384xbf16, #tpu.memory_space<vmem>>, vector<128x384xbf16>
    %286 = arith.truncf %248 : vector<8x128xf32> to vector<8x128xbf16>
    %cst_97 = arith.constant dense<0.000000e+00> : vector<8x384xf32>
    %287 = tpu.matmul %286, %285, %cst_97 {dimension_numbers = #tpu.dot_dimension_numbers<[1], [0], [0], [1], [0, 0, 1, 1], [], []>} : vector<8x128xbf16>, vector<128x384xbf16>, vector<8x384xf32> -> vector<8x384xf32>
    %288 = arith.addf %287, %8 : vector<8x384xf32>
    %289 = vector.extract_strided_slice %281 {offsets = [0, 0], sizes = [8, 128], strides = [1, 1]} : vector<8x384xf32> to vector<8x128xf32>
    %290 = vector.extract_strided_slice %288 {offsets = [0, 0], sizes = [8, 128], strides = [1, 1]} : vector<8x384xf32> to vector<8x128xf32>
    %291 = arith.addf %289, %290 : vector<8x128xf32>
    %292 = arith.negf %291 : vector<8x128xf32>
    %293 = math.exp %292 : vector<8x128xf32>
    %cst_98 = arith.constant 1.000000e+00 : f32
    %294 = vector.broadcast %cst_98 : f32 to vector<8x128xf32>
    %295 = arith.addf %294, %293 : vector<8x128xf32>
    %296 = arith.divf %294, %295 : vector<8x128xf32>
    %297 = vector.extract_strided_slice %281 {offsets = [0, 128], sizes = [8, 128], strides = [1, 1]} : vector<8x384xf32> to vector<8x128xf32>
    %298 = vector.extract_strided_slice %288 {offsets = [0, 128], sizes = [8, 128], strides = [1, 1]} : vector<8x384xf32> to vector<8x128xf32>
    %299 = arith.addf %297, %298 : vector<8x128xf32>
    %300 = arith.negf %299 : vector<8x128xf32>
    %301 = math.exp %300 : vector<8x128xf32>
    %cst_99 = arith.constant 1.000000e+00 : f32
    %302 = vector.broadcast %cst_99 : f32 to vector<8x128xf32>
    %303 = arith.addf %302, %301 : vector<8x128xf32>
    %304 = arith.divf %302, %303 : vector<8x128xf32>
    %305 = vector.extract_strided_slice %281 {offsets = [0, 256], sizes = [8, 128], strides = [1, 1]} : vector<8x384xf32> to vector<8x128xf32>
    %306 = vector.extract_strided_slice %288 {offsets = [0, 256], sizes = [8, 128], strides = [1, 1]} : vector<8x384xf32> to vector<8x128xf32>
    %307 = arith.mulf %296, %306 : vector<8x128xf32>
    %308 = arith.addf %305, %307 : vector<8x128xf32>
    %309 = math.tanh %308 : vector<8x128xf32>
    %cst_100 = arith.constant 1.000000e+00 : f32
    %310 = vector.broadcast %cst_100 : f32 to vector<8x128xf32>
    %311 = arith.subf %310, %304 : vector<8x128xf32>
    %312 = arith.mulf %311, %309 : vector<8x128xf32>
    %313 = arith.mulf %304, %248 : vector<8x128xf32>
    %314 = arith.addf %312, %313 : vector<8x128xf32>
    %315 = arith.select %284, %314, %248 : vector<8x128xi1>, vector<8x128xf32>
    %316 = tpu.concatenate %315, %280 in 1 : vector<8x128xf32>, vector<8x128xf32> -> vector<8x256xf32>
    %c0_101 = arith.constant 0 : index
    %c0_102 = arith.constant 0 : index
    %317 = vector.load %arg7[%c0_101, %c0_102] : memref<256x384xbf16, #tpu.memory_space<vmem>>, vector<256x384xbf16>
    %318 = arith.truncf %316 : vector<8x256xf32> to vector<8x256xbf16>
    %cst_103 = arith.constant dense<0.000000e+00> : vector<8x384xf32>
    %319 = tpu.matmul %318, %317, %cst_103 {dimension_numbers = #tpu.dot_dimension_numbers<[1], [0], [0], [1], [0, 0, 1, 1], [], []>} : vector<8x256xbf16>, vector<256x384xbf16>, vector<8x384xf32> -> vector<8x384xf32>
    %320 = arith.addf %319, %9 : vector<8x384xf32>
    %c0_104 = arith.constant 0 : index
    %c0_105 = arith.constant 0 : index
    %321 = vector.load %arg8[%c0_104, %c0_105] : memref<128x128xbf16, #tpu.memory_space<vmem>>, vector<128x128xbf16>
    %322 = arith.truncf %280 : vector<8x128xf32> to vector<8x128xbf16>
    %cst_106 = arith.constant dense<0.000000e+00> : vector<8x128xf32>
    %323 = tpu.matmul %322, %321, %cst_106 {dimension_numbers = #tpu.dot_dimension_numbers<[1], [0], [0], [1], [0, 0, 1, 1], [], []>} : vector<8x128xbf16>, vector<128x128xbf16>, vector<8x128xf32> -> vector<8x128xf32>
    %324 = arith.addf %323, %10 : vector<8x128xf32>
    %325 = vector.extract_strided_slice %320 {offsets = [0, 0], sizes = [8, 128], strides = [1, 1]} : vector<8x384xf32> to vector<8x128xf32>
    %326 = arith.negf %325 : vector<8x128xf32>
    %327 = math.exp %326 : vector<8x128xf32>
    %cst_107 = arith.constant 1.000000e+00 : f32
    %328 = vector.broadcast %cst_107 : f32 to vector<8x128xf32>
    %329 = arith.addf %328, %327 : vector<8x128xf32>
    %330 = arith.divf %328, %329 : vector<8x128xf32>
    %331 = vector.extract_strided_slice %320 {offsets = [0, 128], sizes = [8, 128], strides = [1, 1]} : vector<8x384xf32> to vector<8x128xf32>
    %332 = arith.negf %331 : vector<8x128xf32>
    %333 = math.exp %332 : vector<8x128xf32>
    %cst_108 = arith.constant 1.000000e+00 : f32
    %334 = vector.broadcast %cst_108 : f32 to vector<8x128xf32>
    %335 = arith.addf %334, %333 : vector<8x128xf32>
    %336 = arith.divf %334, %335 : vector<8x128xf32>
    %337 = vector.extract_strided_slice %320 {offsets = [0, 256], sizes = [8, 128], strides = [1, 1]} : vector<8x384xf32> to vector<8x128xf32>
    %338 = arith.subf %337, %324 : vector<8x128xf32>
    %339 = arith.mulf %330, %324 : vector<8x128xf32>
    %340 = arith.addf %338, %339 : vector<8x128xf32>
    %341 = math.tanh %340 : vector<8x128xf32>
    %cst_109 = arith.constant 1.000000e+00 : f32
    %342 = vector.broadcast %cst_109 : f32 to vector<8x128xf32>
    %343 = arith.subf %342, %336 : vector<8x128xf32>
    %344 = arith.mulf %343, %341 : vector<8x128xf32>
    %345 = arith.mulf %336, %280 : vector<8x128xf32>
    %346 = arith.addf %344, %345 : vector<8x128xf32>
    %347 = arith.select %284, %346, %280 : vector<8x128xi1>, vector<8x128xf32>
    %c40 = arith.constant 40 : index
    %c0_110 = arith.constant 0 : index
    %348 = vector.load %arg23[%c40, %c0_110] : memref<64x384xf32, #tpu.memory_space<vmem>>, vector<8x384xf32>
    %c40_111 = arith.constant 40 : index
    %c0_112 = arith.constant 0 : index
    %349 = vector.load %arg0[%c40_111, %c0_112] : memref<64x128xi32, #tpu.memory_space<vmem>>, vector<8x128xi32>
    %c0_i32_113 = arith.constant 0 : i32
    %350 = vector.broadcast %c0_i32_113 : i32 to vector<8x128xi32>
    %351 = arith.cmpi ne, %349, %350 : vector<8x128xi32>
    %c0_114 = arith.constant 0 : index
    %c0_115 = arith.constant 0 : index
    %352 = vector.load %arg4[%c0_114, %c0_115] : memref<128x384xbf16, #tpu.memory_space<vmem>>, vector<128x384xbf16>
    %353 = arith.truncf %315 : vector<8x128xf32> to vector<8x128xbf16>
    %cst_116 = arith.constant dense<0.000000e+00> : vector<8x384xf32>
    %354 = tpu.matmul %353, %352, %cst_116 {dimension_numbers = #tpu.dot_dimension_numbers<[1], [0], [0], [1], [0, 0, 1, 1], [], []>} : vector<8x128xbf16>, vector<128x384xbf16>, vector<8x384xf32> -> vector<8x384xf32>
    %355 = arith.addf %354, %8 : vector<8x384xf32>
    %356 = vector.extract_strided_slice %348 {offsets = [0, 0], sizes = [8, 128], strides = [1, 1]} : vector<8x384xf32> to vector<8x128xf32>
    %357 = vector.extract_strided_slice %355 {offsets = [0, 0], sizes = [8, 128], strides = [1, 1]} : vector<8x384xf32> to vector<8x128xf32>
    %358 = arith.addf %356, %357 : vector<8x128xf32>
    %359 = arith.negf %358 : vector<8x128xf32>
    %360 = math.exp %359 : vector<8x128xf32>
    %cst_117 = arith.constant 1.000000e+00 : f32
    %361 = vector.broadcast %cst_117 : f32 to vector<8x128xf32>
    %362 = arith.addf %361, %360 : vector<8x128xf32>
    %363 = arith.divf %361, %362 : vector<8x128xf32>
    %364 = vector.extract_strided_slice %348 {offsets = [0, 128], sizes = [8, 128], strides = [1, 1]} : vector<8x384xf32> to vector<8x128xf32>
    %365 = vector.extract_strided_slice %355 {offsets = [0, 128], sizes = [8, 128], strides = [1, 1]} : vector<8x384xf32> to vector<8x128xf32>
    %366 = arith.addf %364, %365 : vector<8x128xf32>
    %367 = arith.negf %366 : vector<8x128xf32>
    %368 = math.exp %367 : vector<8x128xf32>
    %cst_118 = arith.constant 1.000000e+00 : f32
    %369 = vector.broadcast %cst_118 : f32 to vector<8x128xf32>
    %370 = arith.addf %369, %368 : vector<8x128xf32>
    %371 = arith.divf %369, %370 : vector<8x128xf32>
    %372 = vector.extract_strided_slice %348 {offsets = [0, 256], sizes = [8, 128], strides = [1, 1]} : vector<8x384xf32> to vector<8x128xf32>
    %373 = vector.extract_strided_slice %355 {offsets = [0, 256], sizes = [8, 128], strides = [1, 1]} : vector<8x384xf32> to vector<8x128xf32>
    %374 = arith.mulf %363, %373 : vector<8x128xf32>
    %375 = arith.addf %372, %374 : vector<8x128xf32>
    %376 = math.tanh %375 : vector<8x128xf32>
    %cst_119 = arith.constant 1.000000e+00 : f32
    %377 = vector.broadcast %cst_119 : f32 to vector<8x128xf32>
    %378 = arith.subf %377, %371 : vector<8x128xf32>
    %379 = arith.mulf %378, %376 : vector<8x128xf32>
    %380 = arith.mulf %371, %315 : vector<8x128xf32>
    %381 = arith.addf %379, %380 : vector<8x128xf32>
    %382 = arith.select %351, %381, %315 : vector<8x128xi1>, vector<8x128xf32>
    %383 = tpu.concatenate %382, %347 in 1 : vector<8x128xf32>, vector<8x128xf32> -> vector<8x256xf32>
    %c0_120 = arith.constant 0 : index
    %c0_121 = arith.constant 0 : index
    %384 = vector.load %arg7[%c0_120, %c0_121] : memref<256x384xbf16, #tpu.memory_space<vmem>>, vector<256x384xbf16>
    %385 = arith.truncf %383 : vector<8x256xf32> to vector<8x256xbf16>
    %cst_122 = arith.constant dense<0.000000e+00> : vector<8x384xf32>
    %386 = tpu.matmul %385, %384, %cst_122 {dimension_numbers = #tpu.dot_dimension_numbers<[1], [0], [0], [1], [0, 0, 1, 1], [], []>} : vector<8x256xbf16>, vector<256x384xbf16>, vector<8x384xf32> -> vector<8x384xf32>
    %387 = arith.addf %386, %9 : vector<8x384xf32>
    %c0_123 = arith.constant 0 : index
    %c0_124 = arith.constant 0 : index
    %388 = vector.load %arg8[%c0_123, %c0_124] : memref<128x128xbf16, #tpu.memory_space<vmem>>, vector<128x128xbf16>
    %389 = arith.truncf %347 : vector<8x128xf32> to vector<8x128xbf16>
    %cst_125 = arith.constant dense<0.000000e+00> : vector<8x128xf32>
    %390 = tpu.matmul %389, %388, %cst_125 {dimension_numbers = #tpu.dot_dimension_numbers<[1], [0], [0], [1], [0, 0, 1, 1], [], []>} : vector<8x128xbf16>, vector<128x128xbf16>, vector<8x128xf32> -> vector<8x128xf32>
    %391 = arith.addf %390, %10 : vector<8x128xf32>
    %392 = vector.extract_strided_slice %387 {offsets = [0, 0], sizes = [8, 128], strides = [1, 1]} : vector<8x384xf32> to vector<8x128xf32>
    %393 = arith.negf %392 : vector<8x128xf32>
    %394 = math.exp %393 : vector<8x128xf32>
    %cst_126 = arith.constant 1.000000e+00 : f32
    %395 = vector.broadcast %cst_126 : f32 to vector<8x128xf32>
    %396 = arith.addf %395, %394 : vector<8x128xf32>
    %397 = arith.divf %395, %396 : vector<8x128xf32>
    %398 = vector.extract_strided_slice %387 {offsets = [0, 128], sizes = [8, 128], strides = [1, 1]} : vector<8x384xf32> to vector<8x128xf32>
    %399 = arith.negf %398 : vector<8x128xf32>
    %400 = math.exp %399 : vector<8x128xf32>
    %cst_127 = arith.constant 1.000000e+00 : f32
    %401 = vector.broadcast %cst_127 : f32 to vector<8x128xf32>
    %402 = arith.addf %401, %400 : vector<8x128xf32>
    %403 = arith.divf %401, %402 : vector<8x128xf32>
    %404 = vector.extract_strided_slice %387 {offsets = [0, 256], sizes = [8, 128], strides = [1, 1]} : vector<8x384xf32> to vector<8x128xf32>
    %405 = arith.subf %404, %391 : vector<8x128xf32>
    %406 = arith.mulf %397, %391 : vector<8x128xf32>
    %407 = arith.addf %405, %406 : vector<8x128xf32>
    %408 = math.tanh %407 : vector<8x128xf32>
    %cst_128 = arith.constant 1.000000e+00 : f32
    %409 = vector.broadcast %cst_128 : f32 to vector<8x128xf32>
    %410 = arith.subf %409, %403 : vector<8x128xf32>
    %411 = arith.mulf %410, %408 : vector<8x128xf32>
    %412 = arith.mulf %403, %347 : vector<8x128xf32>
    %413 = arith.addf %411, %412 : vector<8x128xf32>
    %414 = arith.select %351, %413, %347 : vector<8x128xi1>, vector<8x128xf32>
    %c48 = arith.constant 48 : index
    %c0_129 = arith.constant 0 : index
    %415 = vector.load %arg23[%c48, %c0_129] : memref<64x384xf32, #tpu.memory_space<vmem>>, vector<8x384xf32>
    %c48_130 = arith.constant 48 : index
    %c0_131 = arith.constant 0 : index
    %416 = vector.load %arg0[%c48_130, %c0_131] : memref<64x128xi32, #tpu.memory_space<vmem>>, vector<8x128xi32>
    %c0_i32_132 = arith.constant 0 : i32
    %417 = vector.broadcast %c0_i32_132 : i32 to vector<8x128xi32>
    %418 = arith.cmpi ne, %416, %417 : vector<8x128xi32>
    %c0_133 = arith.constant 0 : index
    %c0_134 = arith.constant 0 : index
    %419 = vector.load %arg4[%c0_133, %c0_134] : memref<128x384xbf16, #tpu.memory_space<vmem>>, vector<128x384xbf16>
    %420 = arith.truncf %382 : vector<8x128xf32> to vector<8x128xbf16>
    %cst_135 = arith.constant dense<0.000000e+00> : vector<8x384xf32>
    %421 = tpu.matmul %420, %419, %cst_135 {dimension_numbers = #tpu.dot_dimension_numbers<[1], [0], [0], [1], [0, 0, 1, 1], [], []>} : vector<8x128xbf16>, vector<128x384xbf16>, vector<8x384xf32> -> vector<8x384xf32>
    %422 = arith.addf %421, %8 : vector<8x384xf32>
    %423 = vector.extract_strided_slice %415 {offsets = [0, 0], sizes = [8, 128], strides = [1, 1]} : vector<8x384xf32> to vector<8x128xf32>
    %424 = vector.extract_strided_slice %422 {offsets = [0, 0], sizes = [8, 128], strides = [1, 1]} : vector<8x384xf32> to vector<8x128xf32>
    %425 = arith.addf %423, %424 : vector<8x128xf32>
    %426 = arith.negf %425 : vector<8x128xf32>
    %427 = math.exp %426 : vector<8x128xf32>
    %cst_136 = arith.constant 1.000000e+00 : f32
    %428 = vector.broadcast %cst_136 : f32 to vector<8x128xf32>
    %429 = arith.addf %428, %427 : vector<8x128xf32>
    %430 = arith.divf %428, %429 : vector<8x128xf32>
    %431 = vector.extract_strided_slice %415 {offsets = [0, 128], sizes = [8, 128], strides = [1, 1]} : vector<8x384xf32> to vector<8x128xf32>
    %432 = vector.extract_strided_slice %422 {offsets = [0, 128], sizes = [8, 128], strides = [1, 1]} : vector<8x384xf32> to vector<8x128xf32>
    %433 = arith.addf %431, %432 : vector<8x128xf32>
    %434 = arith.negf %433 : vector<8x128xf32>
    %435 = math.exp %434 : vector<8x128xf32>
    %cst_137 = arith.constant 1.000000e+00 : f32
    %436 = vector.broadcast %cst_137 : f32 to vector<8x128xf32>
    %437 = arith.addf %436, %435 : vector<8x128xf32>
    %438 = arith.divf %436, %437 : vector<8x128xf32>
    %439 = vector.extract_strided_slice %415 {offsets = [0, 256], sizes = [8, 128], strides = [1, 1]} : vector<8x384xf32> to vector<8x128xf32>
    %440 = vector.extract_strided_slice %422 {offsets = [0, 256], sizes = [8, 128], strides = [1, 1]} : vector<8x384xf32> to vector<8x128xf32>
    %441 = arith.mulf %430, %440 : vector<8x128xf32>
    %442 = arith.addf %439, %441 : vector<8x128xf32>
    %443 = math.tanh %442 : vector<8x128xf32>
    %cst_138 = arith.constant 1.000000e+00 : f32
    %444 = vector.broadcast %cst_138 : f32 to vector<8x128xf32>
    %445 = arith.subf %444, %438 : vector<8x128xf32>
    %446 = arith.mulf %445, %443 : vector<8x128xf32>
    %447 = arith.mulf %438, %382 : vector<8x128xf32>
    %448 = arith.addf %446, %447 : vector<8x128xf32>
    %449 = arith.select %418, %448, %382 : vector<8x128xi1>, vector<8x128xf32>
    %450 = tpu.concatenate %449, %414 in 1 : vector<8x128xf32>, vector<8x128xf32> -> vector<8x256xf32>
    %c0_139 = arith.constant 0 : index
    %c0_140 = arith.constant 0 : index
    %451 = vector.load %arg7[%c0_139, %c0_140] : memref<256x384xbf16, #tpu.memory_space<vmem>>, vector<256x384xbf16>
    %452 = arith.truncf %450 : vector<8x256xf32> to vector<8x256xbf16>
    %cst_141 = arith.constant dense<0.000000e+00> : vector<8x384xf32>
    %453 = tpu.matmul %452, %451, %cst_141 {dimension_numbers = #tpu.dot_dimension_numbers<[1], [0], [0], [1], [0, 0, 1, 1], [], []>} : vector<8x256xbf16>, vector<256x384xbf16>, vector<8x384xf32> -> vector<8x384xf32>
    %454 = arith.addf %453, %9 : vector<8x384xf32>
    %c0_142 = arith.constant 0 : index
    %c0_143 = arith.constant 0 : index
    %455 = vector.load %arg8[%c0_142, %c0_143] : memref<128x128xbf16, #tpu.memory_space<vmem>>, vector<128x128xbf16>
    %456 = arith.truncf %414 : vector<8x128xf32> to vector<8x128xbf16>
    %cst_144 = arith.constant dense<0.000000e+00> : vector<8x128xf32>
    %457 = tpu.matmul %456, %455, %cst_144 {dimension_numbers = #tpu.dot_dimension_numbers<[1], [0], [0], [1], [0, 0, 1, 1], [], []>} : vector<8x128xbf16>, vector<128x128xbf16>, vector<8x128xf32> -> vector<8x128xf32>
    %458 = arith.addf %457, %10 : vector<8x128xf32>
    %459 = vector.extract_strided_slice %454 {offsets = [0, 0], sizes = [8, 128], strides = [1, 1]} : vector<8x384xf32> to vector<8x128xf32>
    %460 = arith.negf %459 : vector<8x128xf32>
    %461 = math.exp %460 : vector<8x128xf32>
    %cst_145 = arith.constant 1.000000e+00 : f32
    %462 = vector.broadcast %cst_145 : f32 to vector<8x128xf32>
    %463 = arith.addf %462, %461 : vector<8x128xf32>
    %464 = arith.divf %462, %463 : vector<8x128xf32>
    %465 = vector.extract_strided_slice %454 {offsets = [0, 128], sizes = [8, 128], strides = [1, 1]} : vector<8x384xf32> to vector<8x128xf32>
    %466 = arith.negf %465 : vector<8x128xf32>
    %467 = math.exp %466 : vector<8x128xf32>
    %cst_146 = arith.constant 1.000000e+00 : f32
    %468 = vector.broadcast %cst_146 : f32 to vector<8x128xf32>
    %469 = arith.addf %468, %467 : vector<8x128xf32>
    %470 = arith.divf %468, %469 : vector<8x128xf32>
    %471 = vector.extract_strided_slice %454 {offsets = [0, 256], sizes = [8, 128], strides = [1, 1]} : vector<8x384xf32> to vector<8x128xf32>
    %472 = arith.subf %471, %458 : vector<8x128xf32>
    %473 = arith.mulf %464, %458 : vector<8x128xf32>
    %474 = arith.addf %472, %473 : vector<8x128xf32>
    %475 = math.tanh %474 : vector<8x128xf32>
    %cst_147 = arith.constant 1.000000e+00 : f32
    %476 = vector.broadcast %cst_147 : f32 to vector<8x128xf32>
    %477 = arith.subf %476, %470 : vector<8x128xf32>
    %478 = arith.mulf %477, %475 : vector<8x128xf32>
    %479 = arith.mulf %470, %414 : vector<8x128xf32>
    %480 = arith.addf %478, %479 : vector<8x128xf32>
    %481 = arith.select %418, %480, %414 : vector<8x128xi1>, vector<8x128xf32>
    %c56 = arith.constant 56 : index
    %c0_148 = arith.constant 0 : index
    %482 = vector.load %arg23[%c56, %c0_148] : memref<64x384xf32, #tpu.memory_space<vmem>>, vector<8x384xf32>
    %c56_149 = arith.constant 56 : index
    %c0_150 = arith.constant 0 : index
    %483 = vector.load %arg0[%c56_149, %c0_150] : memref<64x128xi32, #tpu.memory_space<vmem>>, vector<8x128xi32>
    %c0_i32_151 = arith.constant 0 : i32
    %484 = vector.broadcast %c0_i32_151 : i32 to vector<8x128xi32>
    %485 = arith.cmpi ne, %483, %484 : vector<8x128xi32>
    %c0_152 = arith.constant 0 : index
    %c0_153 = arith.constant 0 : index
    %486 = vector.load %arg4[%c0_152, %c0_153] : memref<128x384xbf16, #tpu.memory_space<vmem>>, vector<128x384xbf16>
    %487 = arith.truncf %449 : vector<8x128xf32> to vector<8x128xbf16>
    %cst_154 = arith.constant dense<0.000000e+00> : vector<8x384xf32>
    %488 = tpu.matmul %487, %486, %cst_154 {dimension_numbers = #tpu.dot_dimension_numbers<[1], [0], [0], [1], [0, 0, 1, 1], [], []>} : vector<8x128xbf16>, vector<128x384xbf16>, vector<8x384xf32> -> vector<8x384xf32>
    %489 = arith.addf %488, %8 : vector<8x384xf32>
    %490 = vector.extract_strided_slice %482 {offsets = [0, 0], sizes = [8, 128], strides = [1, 1]} : vector<8x384xf32> to vector<8x128xf32>
    %491 = vector.extract_strided_slice %489 {offsets = [0, 0], sizes = [8, 128], strides = [1, 1]} : vector<8x384xf32> to vector<8x128xf32>
    %492 = arith.addf %490, %491 : vector<8x128xf32>
    %493 = arith.negf %492 : vector<8x128xf32>
    %494 = math.exp %493 : vector<8x128xf32>
    %cst_155 = arith.constant 1.000000e+00 : f32
    %495 = vector.broadcast %cst_155 : f32 to vector<8x128xf32>
    %496 = arith.addf %495, %494 : vector<8x128xf32>
    %497 = arith.divf %495, %496 : vector<8x128xf32>
    %498 = vector.extract_strided_slice %482 {offsets = [0, 128], sizes = [8, 128], strides = [1, 1]} : vector<8x384xf32> to vector<8x128xf32>
    %499 = vector.extract_strided_slice %489 {offsets = [0, 128], sizes = [8, 128], strides = [1, 1]} : vector<8x384xf32> to vector<8x128xf32>
    %500 = arith.addf %498, %499 : vector<8x128xf32>
    %501 = arith.negf %500 : vector<8x128xf32>
    %502 = math.exp %501 : vector<8x128xf32>
    %cst_156 = arith.constant 1.000000e+00 : f32
    %503 = vector.broadcast %cst_156 : f32 to vector<8x128xf32>
    %504 = arith.addf %503, %502 : vector<8x128xf32>
    %505 = arith.divf %503, %504 : vector<8x128xf32>
    %506 = vector.extract_strided_slice %482 {offsets = [0, 256], sizes = [8, 128], strides = [1, 1]} : vector<8x384xf32> to vector<8x128xf32>
    %507 = vector.extract_strided_slice %489 {offsets = [0, 256], sizes = [8, 128], strides = [1, 1]} : vector<8x384xf32> to vector<8x128xf32>
    %508 = arith.mulf %497, %507 : vector<8x128xf32>
    %509 = arith.addf %506, %508 : vector<8x128xf32>
    %510 = math.tanh %509 : vector<8x128xf32>
    %cst_157 = arith.constant 1.000000e+00 : f32
    %511 = vector.broadcast %cst_157 : f32 to vector<8x128xf32>
    %512 = arith.subf %511, %505 : vector<8x128xf32>
    %513 = arith.mulf %512, %510 : vector<8x128xf32>
    %514 = arith.mulf %505, %449 : vector<8x128xf32>
    %515 = arith.addf %513, %514 : vector<8x128xf32>
    %516 = arith.select %485, %515, %449 : vector<8x128xi1>, vector<8x128xf32>
    %517 = tpu.concatenate %516, %481 in 1 : vector<8x128xf32>, vector<8x128xf32> -> vector<8x256xf32>
    %c0_158 = arith.constant 0 : index
    %c0_159 = arith.constant 0 : index
    %518 = vector.load %arg7[%c0_158, %c0_159] : memref<256x384xbf16, #tpu.memory_space<vmem>>, vector<256x384xbf16>
    %519 = arith.truncf %517 : vector<8x256xf32> to vector<8x256xbf16>
    %cst_160 = arith.constant dense<0.000000e+00> : vector<8x384xf32>
    %520 = tpu.matmul %519, %518, %cst_160 {dimension_numbers = #tpu.dot_dimension_numbers<[1], [0], [0], [1], [0, 0, 1, 1], [], []>} : vector<8x256xbf16>, vector<256x384xbf16>, vector<8x384xf32> -> vector<8x384xf32>
    %521 = arith.addf %520, %9 : vector<8x384xf32>
    %c0_161 = arith.constant 0 : index
    %c0_162 = arith.constant 0 : index
    %522 = vector.load %arg8[%c0_161, %c0_162] : memref<128x128xbf16, #tpu.memory_space<vmem>>, vector<128x128xbf16>
    %523 = arith.truncf %481 : vector<8x128xf32> to vector<8x128xbf16>
    %cst_163 = arith.constant dense<0.000000e+00> : vector<8x128xf32>
    %524 = tpu.matmul %523, %522, %cst_163 {dimension_numbers = #tpu.dot_dimension_numbers<[1], [0], [0], [1], [0, 0, 1, 1], [], []>} : vector<8x128xbf16>, vector<128x128xbf16>, vector<8x128xf32> -> vector<8x128xf32>
    %525 = arith.addf %524, %10 : vector<8x128xf32>
    %526 = vector.extract_strided_slice %521 {offsets = [0, 0], sizes = [8, 128], strides = [1, 1]} : vector<8x384xf32> to vector<8x128xf32>
    %527 = arith.negf %526 : vector<8x128xf32>
    %528 = math.exp %527 : vector<8x128xf32>
    %cst_164 = arith.constant 1.000000e+00 : f32
    %529 = vector.broadcast %cst_164 : f32 to vector<8x128xf32>
    %530 = arith.addf %529, %528 : vector<8x128xf32>
    %531 = arith.divf %529, %530 : vector<8x128xf32>
    %532 = vector.extract_strided_slice %521 {offsets = [0, 128], sizes = [8, 128], strides = [1, 1]} : vector<8x384xf32> to vector<8x128xf32>
    %533 = arith.negf %532 : vector<8x128xf32>
    %534 = math.exp %533 : vector<8x128xf32>
    %cst_165 = arith.constant 1.000000e+00 : f32
    %535 = vector.broadcast %cst_165 : f32 to vector<8x128xf32>
    %536 = arith.addf %535, %534 : vector<8x128xf32>
    %537 = arith.divf %535, %536 : vector<8x128xf32>
    %538 = vector.extract_strided_slice %521 {offsets = [0, 256], sizes = [8, 128], strides = [1, 1]} : vector<8x384xf32> to vector<8x128xf32>
    %539 = arith.subf %538, %525 : vector<8x128xf32>
    %540 = arith.mulf %531, %525 : vector<8x128xf32>
    %541 = arith.addf %539, %540 : vector<8x128xf32>
    %542 = math.tanh %541 : vector<8x128xf32>
    %cst_166 = arith.constant 1.000000e+00 : f32
    %543 = vector.broadcast %cst_166 : f32 to vector<8x128xf32>
    %544 = arith.subf %543, %537 : vector<8x128xf32>
    %545 = arith.mulf %544, %542 : vector<8x128xf32>
    %546 = arith.mulf %537, %481 : vector<8x128xf32>
    %547 = arith.addf %545, %546 : vector<8x128xf32>
    %548 = arith.select %485, %547, %481 : vector<8x128xi1>, vector<8x128xf32>
    %c0_167 = arith.constant 0 : index
    %c0_168 = arith.constant 0 : index
    %549 = vector.load %arg11[%c0_167, %c0_168] : memref<128x128xbf16, #tpu.memory_space<vmem>>, vector<128x128xbf16>
    %550 = arith.truncf %548 : vector<8x128xf32> to vector<8x128xbf16>
    %cst_169 = arith.constant dense<0.000000e+00> : vector<8x128xf32>
    %551 = tpu.matmul %550, %549, %cst_169 {dimension_numbers = #tpu.dot_dimension_numbers<[1], [0], [0], [1], [0, 0, 1, 1], [], []>} : vector<8x128xbf16>, vector<128x128xbf16>, vector<8x128xf32> -> vector<8x128xf32>
    %c0_170 = arith.constant 0 : index
    %c0_171 = arith.constant 0 : index
    %552 = vector.load %arg12[%c0_170, %c0_171] : memref<8x128xf32, #tpu.memory_space<vmem>>, vector<8x128xf32>
    %553 = arith.addf %551, %552 : vector<8x128xf32>
    %554 = math.tanh %553 : vector<8x128xf32>
    %c0_172 = arith.constant 0 : index
    %c0_173 = arith.constant 0 : index
    %555 = vector.load %arg2[%c0_172, %c0_173] : memref<8x24xf32, #tpu.memory_space<vmem>>, vector<8x24xf32>
    %c0_174 = arith.constant 0 : index
    %c0_175 = arith.constant 0 : index
    %556 = vector.load %arg13[%c0_174, %c0_175] : memref<24x128xbf16, #tpu.memory_space<vmem>>, vector<24x128xbf16>
    %557 = arith.truncf %555 : vector<8x24xf32> to vector<8x24xbf16>
    %cst_176 = arith.constant dense<0.000000e+00> : vector<8x128xf32>
    %558 = tpu.matmul %557, %556, %cst_176 {dimension_numbers = #tpu.dot_dimension_numbers<[1], [0], [0], [1], [0, 0, 1, 1], [], []>} : vector<8x24xbf16>, vector<24x128xbf16>, vector<8x128xf32> -> vector<8x128xf32>
    %c0_177 = arith.constant 0 : index
    %c0_178 = arith.constant 0 : index
    %559 = vector.load %arg14[%c0_177, %c0_178] : memref<8x128xf32, #tpu.memory_space<vmem>>, vector<8x128xf32>
    %560 = arith.addf %558, %559 : vector<8x128xf32>
    %561 = math.tanh %560 : vector<8x128xf32>
    %c0_179 = arith.constant 0 : index
    %c0_180 = arith.constant 0 : index
    %562 = vector.load %arg15[%c0_179, %c0_180] : memref<128x128xbf16, #tpu.memory_space<vmem>>, vector<128x128xbf16>
    %563 = arith.truncf %554 : vector<8x128xf32> to vector<8x128xbf16>
    %cst_181 = arith.constant dense<0.000000e+00> : vector<8x128xf32>
    %564 = tpu.matmul %563, %562, %cst_181 {dimension_numbers = #tpu.dot_dimension_numbers<[1], [0], [0], [1], [0, 0, 1, 1], [], []>} : vector<8x128xbf16>, vector<128x128xbf16>, vector<8x128xf32> -> vector<8x128xf32>
    %c0_182 = arith.constant 0 : index
    %c0_183 = arith.constant 0 : index
    %565 = vector.load %arg16[%c0_182, %c0_183] : memref<128x128xbf16, #tpu.memory_space<vmem>>, vector<128x128xbf16>
    %566 = arith.truncf %561 : vector<8x128xf32> to vector<8x128xbf16>
    %cst_184 = arith.constant dense<0.000000e+00> : vector<8x128xf32>
    %567 = tpu.matmul %566, %565, %cst_184 {dimension_numbers = #tpu.dot_dimension_numbers<[1], [0], [0], [1], [0, 0, 1, 1], [], []>} : vector<8x128xbf16>, vector<128x128xbf16>, vector<8x128xf32> -> vector<8x128xf32>
    %568 = arith.addf %564, %567 : vector<8x128xf32>
    %c0_185 = arith.constant 0 : index
    %c0_186 = arith.constant 0 : index
    %569 = vector.load %arg17[%c0_185, %c0_186] : memref<8x128xf32, #tpu.memory_space<vmem>>, vector<8x128xf32>
    %570 = arith.addf %568, %569 : vector<8x128xf32>
    %cst_187 = arith.constant 0.000000e+00 : f32
    %571 = vector.broadcast %cst_187 : f32 to vector<8x128xf32>
    %572 = arith.maximumf %570, %571 : vector<8x128xf32>
    %c0_188 = arith.constant 0 : index
    %c0_189 = arith.constant 0 : index
    %573 = vector.load %arg18[%c0_188, %c0_189] : memref<128x128xbf16, #tpu.memory_space<vmem>>, vector<128x128xbf16>
    %574 = arith.truncf %572 : vector<8x128xf32> to vector<8x128xbf16>
    %cst_190 = arith.constant dense<0.000000e+00> : vector<8x128xf32>
    %575 = tpu.matmul %574, %573, %cst_190 {dimension_numbers = #tpu.dot_dimension_numbers<[1], [0], [0], [1], [0, 0, 1, 1], [], []>} : vector<8x128xbf16>, vector<128x128xbf16>, vector<8x128xf32> -> vector<8x128xf32>
    %c0_191 = arith.constant 0 : index
    %c0_192 = arith.constant 0 : index
    %576 = vector.load %arg19[%c0_191, %c0_192] : memref<8x128xf32, #tpu.memory_space<vmem>>, vector<8x128xf32>
    %577 = arith.addf %575, %576 : vector<8x128xf32>
    %cst_193 = arith.constant 0.000000e+00 : f32
    %578 = vector.broadcast %cst_193 : f32 to vector<8x128xf32>
    %579 = arith.maximumf %577, %578 : vector<8x128xf32>
    %c0_194 = arith.constant 0 : index
    %c0_195 = arith.constant 0 : index
    %580 = vector.load %arg20[%c0_194, %c0_195] : memref<128x128xbf16, #tpu.memory_space<vmem>>, vector<128x128xbf16>
    %581 = arith.truncf %579 : vector<8x128xf32> to vector<8x128xbf16>
    %cst_196 = arith.constant dense<0.000000e+00> : vector<8x128xf32>
    %582 = tpu.matmul %581, %580, %cst_196 {dimension_numbers = #tpu.dot_dimension_numbers<[1], [0], [0], [1], [0, 0, 1, 1], [], []>} : vector<8x128xbf16>, vector<128x128xbf16>, vector<8x128xf32> -> vector<8x128xf32>
    %c0_197 = arith.constant 0 : index
    %c0_198 = arith.constant 0 : index
    %583 = vector.load %arg21[%c0_197, %c0_198] : memref<8x128xf32, #tpu.memory_space<vmem>>, vector<8x128xf32>
    %584 = arith.addf %582, %583 : vector<8x128xf32>
    %c0_199 = arith.constant 0 : index
    %c0_200 = arith.constant 0 : index
    %585 = vector.load %arg22[%c0_199, %c0_200] : memref<8x128xf32, #tpu.memory_space<vmem>>, vector<8x128xf32>
    tpu.vector_store %arg22[%c0_199, %c0_200], %584 {strides = array<i32>} : memref<8x128xf32, #tpu.memory_space<vmem>>, vector<8x128xf32>,
    return
  }
}

</mosaic_0001>

<llo_original>
// kernel: tpu_custom_call.1
$region0: #{tpu_custom_call.1}
  #allocation0 [shape = 'u32[]', space=smem, size = 0x4, offset = 0x4, fixed_abs, tag = 'smem constant byte address 0x4 - core index']
  #allocation1 [shape = 'u32[144,128]{1,0:T(1,128)}', space=vmem, size = 0x12000, scoped, tag = 'internal scratch']
  #allocation2 [shape = 'f32[64,384]{1,0:T(8,128)}', space=vmem, size = 0x18000, scoped, tag = 'scratch operand']
  %s0 = inlined_call_operand.vmem [shape: s32[64,128], index: 0, kind: input, shape index: {}]
  %s1 = inlined_call_operand.vmem [shape: f32[64,8], index: 1, kind: input, shape index: {}]
  %s2 = inlined_call_operand.hbm [shape: f32[8,24], index: 2, kind: input, shape index: {}]
  %s3 = inlined_call_operand.hbm [shape: bf16[8,384], index: 3, kind: input, shape index: {}]
  %s4 = inlined_call_operand.hbm [shape: bf16[128,384], index: 4, kind: input, shape index: {}]
  %s5 = inlined_call_operand.hbm [shape: f32[1,384], index: 5, kind: input, shape index: {}]
  %s6 = inlined_call_operand.hbm [shape: f32[8,384], index: 6, kind: input, shape index: {}]
  %s7 = inlined_call_operand.hbm [shape: bf16[256,384], index: 7, kind: input, shape index: {}]
  %s8 = inlined_call_operand.hbm [shape: bf16[128,128], index: 8, kind: input, shape index: {}]
  %s9 = inlined_call_operand.hbm [shape: f32[8,384], index: 9, kind: input, shape index: {}]
  %s10 = inlined_call_operand.hbm [shape: f32[8,128], index: 10, kind: input, shape index: {}]
  %s11 = inlined_call_operand.hbm [shape: bf16[128,128], index: 11, kind: input, shape index: {}]
  %s12 = inlined_call_operand.hbm [shape: f32[8,128], index: 12, kind: input, shape index: {}]
  %s13 = inlined_call_operand.hbm [shape: bf16[24,128], index: 13, kind: input, shape index: {}]
  %s14 = inlined_call_operand.hbm [shape: f32[8,128], index: 14, kind: input, shape index: {}]
  %s15 = inlined_call_operand.vmem [shape: bf16[128,128], index: 15, kind: input, shape index: {}]
  %s16 = inlined_call_operand.hbm [shape: bf16[128,128], index: 16, kind: input, shape index: {}]
  %s17 = inlined_call_operand.vmem [shape: f32[8,128], index: 17, kind: input, shape index: {}]
  %s18 = inlined_call_operand.hbm [shape: bf16[128,128], index: 18, kind: input, shape index: {}]
  %s19 = inlined_call_operand.hbm [shape: f32[8,128], index: 19, kind: input, shape index: {}]
  %s20 = inlined_call_operand.hbm [shape: bf16[128,128], index: 20, kind: input, shape index: {}]
  %s21 = inlined_call_operand.vmem [shape: f32[8,128], index: 21, kind: input, shape index: {}]
  %s22 = inlined_call_operand.hbm [shape: f32[8,128], index: 22, kind: output, shape index: {}]
  %s23 = sld [smem:[#allocation0]]
  $region166: #{tpu_custom_call.1} parent=0
    _
  %s25 = ssub.s32 1, %s23
  %s26 = scalar_select 0, %s25, %s23
  $region1: #{tpu_custom_call.1} parent=0
    #allocation3 [shape = 'u8[4096]{0}', space=vmem, size = 0x1000, scoped, tag = 'input window, operand 2, single buffered']
    #allocation4 [shape = 's32[1]{0}', space=sflag, size = 0x4, scoped, tag = 'scoped memory for tpu_custom_call.1']
    #allocation5 [shape = 's32[1]{0}', space=sflag, size = 0x4, scoped, tag = 'scoped memory for tpu_custom_call.1']
    #allocation6 [shape = 'u8[6144]{0}', space=vmem, size = 0x1800, scoped, tag = 'input window, operand 3, single buffered']
    #allocation7 [shape = 's32[1]{0}', space=sflag, size = 0x4, scoped, tag = 'scoped memory for tpu_custom_call.1']
    #allocation8 [shape = 'u8[98304]{0}', space=vmem, size = 0x18000, scoped, tag = 'input window, operand 4, single buffered']
    #allocation9 [shape = 'u8[1536]{0}', space=vmem, size = 0x800, scoped, tag = 'input window, operand 5, single buffered']
    #allocation10 [shape = 's32[1]{0}', space=sflag, size = 0x4, scoped, tag = 'scoped memory for tpu_custom_call.1']
    #allocation11 [shape = 'u8[12288]{0}', space=vmem, size = 0x3000, scoped, tag = 'input window, operand 6, single buffered']
    #allocation12 [shape = 'u8[196608]{0}', space=vmem, size = 0x30000, scoped, tag = 'input window, operand 7, single buffered']
    #allocation13 [shape = 's32[1]{0}', space=sflag, size = 0x4, scoped, tag = 'scoped memory for tpu_custom_call.1']
    #allocation14 [shape = 'u8[32768]{0}', space=vmem, size = 0x8000, scoped, tag = 'input window, operand 8, single buffered']
    #allocation15 [shape = 'u8[12288]{0}', space=vmem, size = 0x3000, scoped, tag = 'input window, operand 9, single buffered']
    #allocation16 [shape = 's32[1]{0}', space=sflag, size = 0x4, scoped, tag = 'scoped memory for tpu_custom_call.1']
    #allocation17 [shape = 'u8[4096]{0}', space=vmem, size = 0x1000, scoped, tag = 'input window, operand 10, single buffered']
    #allocation18 [shape = 'u8[32768]{0}', space=vmem, size = 0x8000, scoped, tag = 'input window, operand 11, single buffered']
    #allocation19 [shape = 's32[1]{0}', space=sflag, size = 0x4, scoped, tag = 'scoped memory for tpu_custom_call.1']
    #allocation20 [shape = 'u8[4096]{0}', space=vmem, size = 0x1000, scoped, tag = 'input window, operand 12, single buffered']
    #allocation21 [shape = 'u8[6144]{0}', space=vmem, size = 0x1800, scoped, tag = 'input window, operand 13, single buffered']
    #allocation22 [shape = 's32[1]{0}', space=sflag, size = 0x4, scoped, tag = 'scoped memory for tpu_custom_call.1']
    #allocation23 [shape = 'u8[4096]{0}', space=vmem, size = 0x1000, scoped, tag = 'input window, operand 14, single buffered']
    #allocation24 [shape = 'u8[32768]{0}', space=vmem, size = 0x8000, scoped, tag = 'input window, operand 16, single buffered']
    #allocation25 [shape = 's32[1]{0}', space=sflag, size = 0x4, scoped, tag = 'scoped memory for tpu_custom_call.1']
    #allocation26 [shape = 'u8[32768]{0}', space=vmem, size = 0x8000, scoped, tag = 'input window, operand 18, single buffered']
    #allocation27 [shape = 'u8[4096]{0}', space=vmem, size = 0x1000, scoped, tag = 'input window, operand 19, single buffered']
    #allocation28 [shape = 's32[1]{0}', space=sflag, size = 0x4, scoped, tag = 'scoped memory for tpu_custom_call.1']
    #allocation29 [shape = 'u8[32768]{0}', space=vmem, size = 0x8000, scoped, tag = 'input window, operand 20, single buffered']
    #allocation30 [shape = 'u8[4096]{0}', space=vmem, size = 0x1000, scoped, tag = 'output window, operand 0, single buffered']
    %27 = vsyncpa [#allocation4], 0
    %28 = vsyncpa [#allocation7], 0
    %29 = vsyncpa [#allocation10], 0
    %30 = vsyncpa [#allocation13], 0
    %31 = vsyncpa [#allocation16], 0
    %32 = vsyncpa [#allocation19], 0
    %33 = vsyncpa [#allocation22], 0
    %34 = vsyncpa [#allocation25], 0
    %35 = vsyncpa [#allocation28], 0
    %36 = vsyncpa [#allocation5], 0
    // Predicated region
    $region2: #{tpu_custom_call.1} parent=1 // pred_check
      _
    $region3: #{tpu_custom_call.1} parent=1 // pred_check_branch
      %38 = sbr.rel (0) target = $region5
    $region4: #{tpu_custom_call.1} parent=1 // pred_region
      _
    $region5: #{tpu_custom_call.1} parent=1 // pred_fallthru
      _
    // Predicated region
    $region6: #{tpu_custom_call.1} parent=1 // pred_check
      _
    $region7: #{tpu_custom_call.1} parent=1 // pred_check_branch
      %40 = sbr.rel (0) target = $region9
    $region8: #{tpu_custom_call.1} parent=1 // pred_region
      _
    $region9: #{tpu_custom_call.1} parent=1 // pred_fallthru
      _
    // Predicated region
    $region10: #{tpu_custom_call.1} parent=1 // pred_check
      _
    $region11: #{tpu_custom_call.1} parent=1 // pred_check_branch
      %42 = sbr.rel (0) target = $region13
    $region12: #{tpu_custom_call.1} parent=1 // pred_region
      %s44 = ssub.s32 128, 128
      %45 = vsyncadd [#allocation4], %s44
      %s47 = sshll.u32 [#allocation3], 4
      %s48 = int_to_ptr.vmem [resolvable:$true] %s47
      %50 = dma.hbm_to_vmem [thread:$0]  %s2, 128, %s48, [#allocation4]
    $region13: #{tpu_custom_call.1} parent=1 // pred_fallthru
      _
    // Predicated region
    $region14: #{tpu_custom_call.1} parent=1 // pred_check
      _
    $region15: #{tpu_custom_call.1} parent=1 // pred_check_branch
      %52 = sbr.rel (0) target = $region17
    $region16: #{tpu_custom_call.1} parent=1 // pred_region
      %s54 = ssub.s32 192, 192
      %55 = vsyncadd [#allocation7], %s54
      %s57 = sshll.u32 [#allocation6], 4
      %s58 = int_to_ptr.vmem [resolvable:$true] %s57
      %60 = dma.hbm_to_vmem [thread:$0]  %s3, 192, %s58, [#allocation7]
    $region17: #{tpu_custom_call.1} parent=1 // pred_fallthru
      _
    // Predicated region
    $region18: #{tpu_custom_call.1} parent=1 // pred_check
      _
    $region19: #{tpu_custom_call.1} parent=1 // pred_check_branch
      %62 = sbr.rel (0) target = $region21
    $region20: #{tpu_custom_call.1} parent=1 // pred_region
      %s64 = ssub.s32 3072, 3072
      %65 = vsyncadd [#allocation7], %s64
      %s66 = sshll.u32 [#allocation8], 4
      %s67 = int_to_ptr.vmem [resolvable:$true] %s66
      %72 = dma.hbm_to_vmem [thread:$0]  %s4, 3072, %s67, [#allocation7], 192, 192, 12
    $region21: #{tpu_custom_call.1} parent=1 // pred_fallthru
      _
    // Predicated region
    $region22: #{tpu_custom_call.1} parent=1 // pred_check
      _
    $region23: #{tpu_custom_call.1} parent=1 // pred_check_branch
      %74 = sbr.rel (0) target = $region25
    $region24: #{tpu_custom_call.1} parent=1 // pred_region
      %s76 = ssub.s32 48, 48
      %77 = vsyncadd [#allocation10], %s76
      %s79 = sshll.u32 [#allocation9], 4
      %s80 = int_to_ptr.vmem [resolvable:$true] %s79
      %82 = dma.hbm_to_vmem [thread:$0]  %s5, 48, %s80, [#allocation10]
    $region25: #{tpu_custom_call.1} parent=1 // pred_fallthru
      _
    // Predicated region
    $region26: #{tpu_custom_call.1} parent=1 // pred_check
      _
    $region27: #{tpu_custom_call.1} parent=1 // pred_check_branch
      %84 = sbr.rel (0) target = $region29
    $region28: #{tpu_custom_call.1} parent=1 // pred_region
      %s86 = ssub.s32 384, 384
      %87 = vsyncadd [#allocation10], %s86
      %s89 = sshll.u32 [#allocation11], 4
      %s90 = int_to_ptr.vmem [resolvable:$true] %s89
      %92 = dma.hbm_to_vmem [thread:$0]  %s6, 384, %s90, [#allocation10]
    $region29: #{tpu_custom_call.1} parent=1 // pred_fallthru
      _
    // Predicated region
    $region30: #{tpu_custom_call.1} parent=1 // pred_check
      _
    $region31: #{tpu_custom_call.1} parent=1 // pred_check_branch
      %94 = sbr.rel (0) target = $region33
    $region32: #{tpu_custom_call.1} parent=1 // pred_region
      %s96 = ssub.s32 6144, 6144
      %97 = vsyncadd [#allocation13], %s96
      %s98 = sshll.u32 [#allocation12], 4
      %s99 = int_to_ptr.vmem [resolvable:$true] %s98
      %104 = dma.hbm_to_vmem [thread:$0]  %s7, 6144, %s99, [#allocation13], 192, 192, 12
    $region33: #{tpu_custom_call.1} parent=1 // pred_fallthru
      _
    // Predicated region
    $region34: #{tpu_custom_call.1} parent=1 // pred_check
      _
    $region35: #{tpu_custom_call.1} parent=1 // pred_check_branch
      %106 = sbr.rel (0) target = $region37
    $region36: #{tpu_custom_call.1} parent=1 // pred_region
      %s108 = ssub.s32 1024, 1024
      %109 = vsyncadd [#allocation13], %s108
      %s110 = sshll.u32 [#allocation14], 4
      %s111 = int_to_ptr.vmem [resolvable:$true] %s110
      %116 = dma.hbm_to_vmem [thread:$0]  %s8, 1024, %s111, [#allocation13], 64, 64, 4
    $region37: #{tpu_custom_call.1} parent=1 // pred_fallthru
      _
    // Predicated region
    $region38: #{tpu_custom_call.1} parent=1 // pred_check
      _
    $region39: #{tpu_custom_call.1} parent=1 // pred_check_branch
      %118 = sbr.rel (0) target = $region41
    $region40: #{tpu_custom_call.1} parent=1 // pred_region
      %s120 = ssub.s32 384, 384
      %121 = vsyncadd [#allocation16], %s120
      %s123 = sshll.u32 [#allocation15], 4
      %s124 = int_to_ptr.vmem [resolvable:$true] %s123
      %126 = dma.hbm_to_vmem [thread:$0]  %s9, 384, %s124, [#allocation16]
    $region41: #{tpu_custom_call.1} parent=1 // pred_fallthru
      _
    // Predicated region
    $region42: #{tpu_custom_call.1} parent=1 // pred_check
      _
    $region43: #{tpu_custom_call.1} parent=1 // pred_check_branch
      %128 = sbr.rel (0) target = $region45
    $region44: #{tpu_custom_call.1} parent=1 // pred_region
      %s130 = ssub.s32 128, 128
      %131 = vsyncadd [#allocation16], %s130
      %s133 = sshll.u32 [#allocation17], 4
      %s134 = int_to_ptr.vmem [resolvable:$true] %s133
      %136 = dma.hbm_to_vmem [thread:$0]  %s10, 128, %s134, [#allocation16]
    $region45: #{tpu_custom_call.1} parent=1 // pred_fallthru
      _
    // Predicated region
    $region46: #{tpu_custom_call.1} parent=1 // pred_check
      _
    $region47: #{tpu_custom_call.1} parent=1 // pred_check_branch
      %138 = sbr.rel (0) target = $region49
    $region48: #{tpu_custom_call.1} parent=1 // pred_region
      %s140 = ssub.s32 1024, 1024
      %141 = vsyncadd [#allocation19], %s140
      %s142 = sshll.u32 [#allocation18], 4
      %s143 = int_to_ptr.vmem [resolvable:$true] %s142
      %148 = dma.hbm_to_vmem [thread:$0]  %s11, 1024, %s143, [#allocation19], 64, 64, 4
    $region49: #{tpu_custom_call.1} parent=1 // pred_fallthru
      _
    // Predicated region
    $region50: #{tpu_custom_call.1} parent=1 // pred_check
      _
    $region51: #{tpu_custom_call.1} parent=1 // pred_check_branch
      %150 = sbr.rel (0) target = $region53
    $region52: #{tpu_custom_call.1} parent=1 // pred_region
      %s152 = ssub.s32 128, 128
      %153 = vsyncadd [#allocation19], %s152
      %s155 = sshll.u32 [#allocation20], 4
      %s156 = int_to_ptr.vmem [resolvable:$true] %s155
      %158 = dma.hbm_to_vmem [thread:$0]  %s12, 128, %s156, [#allocation19]
    $region53: #{tpu_custom_call.1} parent=1 // pred_fallthru
      _
    // Predicated region
    $region54: #{tpu_custom_call.1} parent=1 // pred_check
      _
    $region55: #{tpu_custom_call.1} parent=1 // pred_check_branch
      %160 = sbr.rel (0) target = $region57
    $region56: #{tpu_custom_call.1} parent=1 // pred_region
      %s162 = ssub.s32 192, 192
      %163 = vsyncadd [#allocation22], %s162
      %s164 = sshll.u32 [#allocation21], 4
      %s165 = int_to_ptr.vmem [resolvable:$true] %s164
      %170 = dma.hbm_to_vmem [thread:$0]  %s13, 192, %s165, [#allocation22], 64, 64, 4
    $region57: #{tpu_custom_call.1} parent=1 // pred_fallthru
      _
    // Predicated region
    $region58: #{tpu_custom_call.1} parent=1 // pred_check
      _
    $region59: #{tpu_custom_call.1} parent=1 // pred_check_branch
      %172 = sbr.rel (0) target = $region61
    $region60: #{tpu_custom_call.1} parent=1 // pred_region
      %s174 = ssub.s32 128, 128
      %175 = vsyncadd [#allocation22], %s174
      %s177 = sshll.u32 [#allocation23], 4
      %s178 = int_to_ptr.vmem [resolvable:$true] %s177
      %180 = dma.hbm_to_vmem [thread:$0]  %s14, 128, %s178, [#allocation22]
    $region61: #{tpu_custom_call.1} parent=1 // pred_fallthru
      _
    // Predicated region
    $region62: #{tpu_custom_call.1} parent=1 // pred_check
      _
    $region63: #{tpu_custom_call.1} parent=1 // pred_check_branch
      %182 = sbr.rel (0) target = $region65
    $region64: #{tpu_custom_call.1} parent=1 // pred_region
      _
    $region65: #{tpu_custom_call.1} parent=1 // pred_fallthru
      _
    // Predicated region
    $region66: #{tpu_custom_call.1} parent=1 // pred_check
      _
    $region67: #{tpu_custom_call.1} parent=1 // pred_check_branch
      %184 = sbr.rel (0) target = $region69
    $region68: #{tpu_custom_call.1} parent=1 // pred_region
      %s186 = ssub.s32 1024, 1024
      %187 = vsyncadd [#allocation25], %s186
      %s188 = sshll.u32 [#allocation24], 4
      %s189 = int_to_ptr.vmem [resolvable:$true] %s188
      %194 = dma.hbm_to_vmem [thread:$0]  %s16, 1024, %s189, [#allocation25], 64, 64, 4
    $region69: #{tpu_custom_call.1} parent=1 // pred_fallthru
      _
    // Predicated region
    $region70: #{tpu_custom_call.1} parent=1 // pred_check
      _
    $region71: #{tpu_custom_call.1} parent=1 // pred_check_branch
      %196 = sbr.rel (0) target = $region73
    $region72: #{tpu_custom_call.1} parent=1 // pred_region
      _
    $region73: #{tpu_custom_call.1} parent=1 // pred_fallthru
      _
    // Predicated region
    $region74: #{tpu_custom_call.1} parent=1 // pred_check
      _
    $region75: #{tpu_custom_call.1} parent=1 // pred_check_branch
      %198 = sbr.rel (0) target = $region77
    $region76: #{tpu_custom_call.1} parent=1 // pred_region
      %s200 = ssub.s32 1024, 1024
      %201 = vsyncadd [#allocation25], %s200
      %s202 = sshll.u32 [#allocation26], 4
      %s203 = int_to_ptr.vmem [resolvable:$true] %s202
      %208 = dma.hbm_to_vmem [thread:$0]  %s18, 1024, %s203, [#allocation25], 64, 64, 4
    $region77: #{tpu_custom_call.1} parent=1 // pred_fallthru
      _
    // Predicated region
    $region78: #{tpu_custom_call.1} parent=1 // pred_check
      _
    $region79: #{tpu_custom_call.1} parent=1 // pred_check_branch
      %210 = sbr.rel (0) target = $region81
    $region80: #{tpu_custom_call.1} parent=1 // pred_region
      %s212 = ssub.s32 128, 128
      %213 = vsyncadd [#allocation28], %s212
      %s215 = sshll.u32 [#allocation27], 4
      %s216 = int_to_ptr.vmem [resolvable:$true] %s215
      %218 = dma.hbm_to_vmem [thread:$0]  %s19, 128, %s216, [#allocation28]
    $region81: #{tpu_custom_call.1} parent=1 // pred_fallthru
      _
    // Predicated region
    $region82: #{tpu_custom_call.1} parent=1 // pred_check
      _
    $region83: #{tpu_custom_call.1} parent=1 // pred_check_branch
      %220 = sbr.rel (0) target = $region85
    $region84: #{tpu_custom_call.1} parent=1 // pred_region
      %s222 = ssub.s32 1024, 1024
      %223 = vsyncadd [#allocation28], %s222
      %s224 = sshll.u32 [#allocation29], 4
      %s225 = int_to_ptr.vmem [resolvable:$true] %s224
      %230 = dma.hbm_to_vmem [thread:$0]  %s20, 1024, %s225, [#allocation28], 64, 64, 4
    $region85: #{tpu_custom_call.1} parent=1 // pred_fallthru
      _
    // Predicated region
    $region86: #{tpu_custom_call.1} parent=1 // pred_check
      _
    $region87: #{tpu_custom_call.1} parent=1 // pred_check_branch
      %232 = sbr.rel (0) target = $region89
    $region88: #{tpu_custom_call.1} parent=1 // pred_region
      _
    $region89: #{tpu_custom_call.1} parent=1 // pred_fallthru
      _
    // Predicated region
    $region90: #{tpu_custom_call.1} parent=1 // pred_check
      _
    $region91: #{tpu_custom_call.1} parent=1 // pred_check_branch
      %234 = sbr.rel (0) target = $region93
    $region92: #{tpu_custom_call.1} parent=1 // pred_region
      %235 = dma.done [#allocation4], 128
    $region93: #{tpu_custom_call.1} parent=1 // pred_fallthru
      _
    // Predicated region
    $region94: #{tpu_custom_call.1} parent=1 // pred_check
      _
    $region95: #{tpu_custom_call.1} parent=1 // pred_check_branch
      %237 = sbr.rel (0) target = $region97
    $region96: #{tpu_custom_call.1} parent=1 // pred_region
      %238 = dma.done [#allocation7], 192
    $region97: #{tpu_custom_call.1} parent=1 // pred_fallthru
      _
    // Predicated region
    $region98: #{tpu_custom_call.1} parent=1 // pred_check
      _
    $region99: #{tpu_custom_call.1} parent=1 // pred_check_branch
      %240 = sbr.rel (0) target = $region101
    $region100: #{tpu_custom_call.1} parent=1 // pred_region
      %241 = dma.done [#allocation7], 3072
    $region101: #{tpu_custom_call.1} parent=1 // pred_fallthru
      _
    // Predicated region
    $region102: #{tpu_custom_call.1} parent=1 // pred_check
      _
    $region103: #{tpu_custom_call.1} parent=1 // pred_check_branch
      %243 = sbr.rel (0) target = $region105
    $region104: #{tpu_custom_call.1} parent=1 // pred_region
      %244 = dma.done [#allocation10], 48
    $region105: #{tpu_custom_call.1} parent=1 // pred_fallthru
      _
    // Predicated region
    $region106: #{tpu_custom_call.1} parent=1 // pred_check
      _
    $region107: #{tpu_custom_call.1} parent=1 // pred_check_branch
      %246 = sbr.rel (0) target = $region109
    $region108: #{tpu_custom_call.1} parent=1 // pred_region
      %247 = dma.done [#allocation10], 384
    $region109: #{tpu_custom_call.1} parent=1 // pred_fallthru
      _
    // Predicated region
    $region110: #{tpu_custom_call.1} parent=1 // pred_check
      _
    $region111: #{tpu_custom_call.1} parent=1 // pred_check_branch
      %249 = sbr.rel (0) target = $region113
    $region112: #{tpu_custom_call.1} parent=1 // pred_region
      %250 = dma.done [#allocation13], 6144
    $region113: #{tpu_custom_call.1} parent=1 // pred_fallthru
      _
    // Predicated region
    $region114: #{tpu_custom_call.1} parent=1 // pred_check
      _
    $region115: #{tpu_custom_call.1} parent=1 // pred_check_branch
      %252 = sbr.rel (0) target = $region117
    $region116: #{tpu_custom_call.1} parent=1 // pred_region
      %253 = dma.done [#allocation13], 1024
    $region117: #{tpu_custom_call.1} parent=1 // pred_fallthru
      _
    // Predicated region
    $region118: #{tpu_custom_call.1} parent=1 // pred_check
      _
    $region119: #{tpu_custom_call.1} parent=1 // pred_check_branch
      %255 = sbr.rel (0) target = $region121
    $region120: #{tpu_custom_call.1} parent=1 // pred_region
      %256 = dma.done [#allocation16], 384
    $region121: #{tpu_custom_call.1} parent=1 // pred_fallthru
      _
    // Predicated region
    $region122: #{tpu_custom_call.1} parent=1 // pred_check
      _
    $region123: #{tpu_custom_call.1} parent=1 // pred_check_branch
      %258 = sbr.rel (0) target = $region125
    $region124: #{tpu_custom_call.1} parent=1 // pred_region
      %259 = dma.done [#allocation16], 128
    $region125: #{tpu_custom_call.1} parent=1 // pred_fallthru
      _
    // Predicated region
    $region126: #{tpu_custom_call.1} parent=1 // pred_check
      _
    $region127: #{tpu_custom_call.1} parent=1 // pred_check_branch
      %261 = sbr.rel (0) target = $region129
    $region128: #{tpu_custom_call.1} parent=1 // pred_region
      %262 = dma.done [#allocation19], 1024
    $region129: #{tpu_custom_call.1} parent=1 // pred_fallthru
      _
    // Predicated region
    $region130: #{tpu_custom_call.1} parent=1 // pred_check
      _
    $region131: #{tpu_custom_call.1} parent=1 // pred_check_branch
      %264 = sbr.rel (0) target = $region133
    $region132: #{tpu_custom_call.1} parent=1 // pred_region
      %265 = dma.done [#allocation19], 128
    $region133: #{tpu_custom_call.1} parent=1 // pred_fallthru
      _
    // Predicated region
    $region134: #{tpu_custom_call.1} parent=1 // pred_check
      _
    $region135: #{tpu_custom_call.1} parent=1 // pred_check_branch
      %267 = sbr.rel (0) target = $region137
    $region136: #{tpu_custom_call.1} parent=1 // pred_region
      %268 = dma.done [#allocation22], 192
    $region137: #{tpu_custom_call.1} parent=1 // pred_fallthru
      _
    // Predicated region
    $region138: #{tpu_custom_call.1} parent=1 // pred_check
      _
    $region139: #{tpu_custom_call.1} parent=1 // pred_check_branch
      %270 = sbr.rel (0) target = $region141
    $region140: #{tpu_custom_call.1} parent=1 // pred_region
      %271 = dma.done [#allocation22], 128
    $region141: #{tpu_custom_call.1} parent=1 // pred_fallthru
      _
    // Predicated region
    $region142: #{tpu_custom_call.1} parent=1 // pred_check
      _
    $region143: #{tpu_custom_call.1} parent=1 // pred_check_branch
      %273 = sbr.rel (0) target = $region145
    $region144: #{tpu_custom_call.1} parent=1 // pred_region
      %274 = dma.done [#allocation25], 1024
    $region145: #{tpu_custom_call.1} parent=1 // pred_fallthru
      _
    // Predicated region
    $region146: #{tpu_custom_call.1} parent=1 // pred_check
      _
    $region147: #{tpu_custom_call.1} parent=1 // pred_check_branch
      %276 = sbr.rel (0) target = $region149
    $region148: #{tpu_custom_call.1} parent=1 // pred_region
      %277 = dma.done [#allocation25], 1024
    $region149: #{tpu_custom_call.1} parent=1 // pred_fallthru
      _
    // Predicated region
    $region150: #{tpu_custom_call.1} parent=1 // pred_check
      _
    $region151: #{tpu_custom_call.1} parent=1 // pred_check_branch
      %279 = sbr.rel (0) target = $region153
    $region152: #{tpu_custom_call.1} parent=1 // pred_region
      %280 = dma.done [#allocation28], 128
    $region153: #{tpu_custom_call.1} parent=1 // pred_fallthru
      _
    // Predicated region
    $region154: #{tpu_custom_call.1} parent=1 // pred_check
      _
    $region155: #{tpu_custom_call.1} parent=1 // pred_check_branch
      %282 = sbr.rel (0) target = $region157
    $region156: #{tpu_custom_call.1} parent=1 // pred_region
      %283 = dma.done [#allocation28], 1024
    $region157: #{tpu_custom_call.1} parent=1 // pred_fallthru
      _
    %v285 = vld [vmem:[%s1] sm:$0xff]
    %v286 = vld [vmem:[%s1 + $0x8] sm:$0xff]
    %v287 = vld [vmem:[%s1 + $0x10] sm:$0xff]
    %v288 = vld [vmem:[%s1 + $0x18] sm:$0xff]
    %v289 = vld [vmem:[%s1 + $0x20] sm:$0xff]
    %v290 = vld [vmem:[%s1 + $0x28] sm:$0xff]
    %v291 = vld [vmem:[%s1 + $0x30] sm:$0xff]
    %v292 = vld [vmem:[%s1 + $0x38] sm:$0xff]
    %v293 = vld [vmem:[#allocation6] sm:$0xff]
    %v294 = vld [vmem:[#allocation6 + $0x8] sm:$0xf]
    %v295 = vpack.c.bf16 %v286, %v285
    %v296 = vpack.c.bf16 %v288, %v287
    %v297 = vpack.c.bf16 %v290, %v289
    %v298 = vpack.c.bf16 %v292, %v291
    %v299 = vld [vmem:[#allocation9] sm:$0x7]
    %v301 = vlaneseq
    %v302 = vshrl.u32 %v301, 7
    %v303 = vsub.s32 0, %v302
    %v304 = vrot.slane %v299, %v303
    %v305 = vlaneseq
    %v306 = vshrl.u32 %v305, 7
    %v307 = vsub.s32 1, %v306
    %v308 = vrot.slane %v299, %v307
    %v309 = vlaneseq
    %v310 = vshrl.u32 %v309, 7
    %v311 = vsub.s32 2, %v310
    %v312 = vrot.slane %v299, %v311
    %v318 = vunpack.c.l.b16 %v293
    %v319 = vunpack.c.h.b16 %v293
    %v320 = vunpack.c.l.b16 %v294
    %v321 = vpack.c.b16 %v318, %v318
    %v322 = vpack.c.b16 %v319, %v319
    %v323 = vpack.c.b16 %v320, %v320
    %vm324 = vcmask 64512
    %v326 = vsel %vm324, %v295, 0
    %v329 = vsel %vm324, %v296, 0
    %v332 = vsel %vm324, %v297, 0
    %v335 = vsel %vm324, %v298, 0
    %vm337 = vcmask 1043456
    %v339 = vsel %vm337, %v321, 0
    %v342 = vsel %vm337, %v322, 0
    %v345 = vsel %vm337, %v323, 0
    %347 = vmatprep.subr.bf16.mxu0 %v342
    %348 = vmatpush1.bf16.msra.mxu0 %v339
    %349 = vmatprep.subr.bf16.mxu0 0
    %350 = vmatpush1.bf16.msra.mxu0 0
    %351 = vmatprep.subr.bf16.mxu0 0
    %352 = vmatpush1.bf16.msra.mxu0 0
    %353 = vmatprep.subr.bf16.mxu0 0
    %354 = vmatpush1.bf16.msra.mxu0 0
    %355 = vmatprep.subr.bf16.mxu0 0
    %356 = vmatpush1.bf16.msra.mxu0 0
    %357 = vmatprep.subr.bf16.mxu0 0
    %358 = vmatpush1.bf16.msra.mxu0 0
    %359 = vmatprep.subr.bf16.mxu0 0
    %360 = vmatpush1.bf16.msra.mxu0 0
    %361 = vmatprep.subr.bf16.mxu0 0
    %362 = vmatpush1.bf16.msra.mxu0 0
    %363 = vmatprep.subr.bf16.mxu0 0
    %364 = vmatpush1.bf16.msra.mxu0 0
    %365 = vmatprep.subr.bf16.mxu0 0
    %366 = vmatpush1.bf16.msra.mxu0 0
    %367 = vmatprep.subr.bf16.mxu0 0
    %368 = vmatpush1.bf16.msra.mxu0 0
    %369 = vmatprep.subr.bf16.mxu0 0
    %370 = vmatpush1.bf16.msra.mxu0 0
    %371 = vmatprep.subr.bf16.mxu0 0
    %372 = vmatpush1.bf16.msra.mxu0 0
    %373 = vmatprep.subr.bf16.mxu0 0
    %374 = vmatpush1.bf16.msra.mxu0 0
    %375 = vmatprep.subr.bf16.mxu0 0
    %376 = vmatpush1.bf16.msra.mxu0 0
    %377 = vmatprep.subr.bf16.mxu0 0
    %378 = vmatpush1.bf16.msra.mxu0 0
    %379 = vmatprep.mubr.bf16.mxu0 0
    %380 = vmatmul.mubr.bf16.gmra.mrb[0].mxu0 %v326
    %v381 = vpop.f32.mrb[0].mxu0
    %v382 = vadd.f32 %v304, %v381
    %v383 = vpop.f32.mrb[0].mxu0
    %v384 = vadd.f32 %v308, %v383
    %v385 = vpop.f32.mrb[0].mxu0
    %v386 = vadd.f32 %v304, %v385
    %v387 = vpop.f32.mrb[0].mxu0
    %v388 = vadd.f32 %v308, %v387
    %389 = vmatprep.mubr.bf16.mxu0 0
    %390 = vmatmul.mubr.bf16.gmra.mrb[0].mxu0 %v329
    %v391 = vpop.f32.mrb[0].mxu0
    %v392 = vadd.f32 %v304, %v391
    %v393 = vpop.f32.mrb[0].mxu0
    %v394 = vadd.f32 %v308, %v393
    %v395 = vpop.f32.mrb[0].mxu0
    %v396 = vadd.f32 %v304, %v395
    %v397 = vpop.f32.mrb[0].mxu0
    %v398 = vadd.f32 %v308, %v397
    %399 = vmatprep.mubr.bf16.mxu0 0
    %400 = vmatmul.mubr.bf16.gmra.mrb[0].mxu0 %v332
    %v401 = vpop.f32.mrb[0].mxu0
    %v402 = vadd.f32 %v304, %v401
    %v403 = vpop.f32.mrb[0].mxu0
    %v404 = vadd.f32 %v308, %v403
    %v405 = vpop.f32.mrb[0].mxu0
    %v406 = vadd.f32 %v304, %v405
    %v407 = vpop.f32.mrb[0].mxu0
    %v408 = vadd.f32 %v308, %v407
    %409 = vmatprep.mubr.bf16.mxu0 0
    %410 = vmatmul.mubr.bf16.gmra.mrb[0].mxu0 %v335
    %v411 = vpop.f32.mrb[0].mxu0
    %v412 = vadd.f32 %v304, %v411
    %v413 = vpop.f32.mrb[0].mxu0
    %v414 = vadd.f32 %v308, %v413
    %v415 = vpop.f32.mrb[0].mxu0
    %v416 = vadd.f32 %v304, %v415
    %v417 = vpop.f32.mrb[0].mxu0
    %v418 = vadd.f32 %v308, %v417
    %419 = vdwg.mxu0
    %420 = vmatprep.subr.bf16.mxu0 0
    %421 = vmatpush1.bf16.msra.mxu0 %v345
    %422 = vmatprep.subr.bf16.mxu0 0
    %423 = vmatpush1.bf16.msra.mxu0 0
    %424 = vmatprep.subr.bf16.mxu0 0
    %425 = vmatpush1.bf16.msra.mxu0 0
    %426 = vmatprep.subr.bf16.mxu0 0
    %427 = vmatpush1.bf16.msra.mxu0 0
    %428 = vmatprep.subr.bf16.mxu0 0
    %429 = vmatpush1.bf16.msra.mxu0 0
    %430 = vmatprep.subr.bf16.mxu0 0
    %431 = vmatpush1.bf16.msra.mxu0 0
    %432 = vmatprep.subr.bf16.mxu0 0
    %433 = vmatpush1.bf16.msra.mxu0 0
    %434 = vmatprep.subr.bf16.mxu0 0
    %435 = vmatpush1.bf16.msra.mxu0 0
    %436 = vmatprep.subr.bf16.mxu0 0
    %437 = vmatpush1.bf16.msra.mxu0 0
    %438 = vmatprep.subr.bf16.mxu0 0
    %439 = vmatpush1.bf16.msra.mxu0 0
    %440 = vmatprep.subr.bf16.mxu0 0
    %441 = vmatpush1.bf16.msra.mxu0 0
    %442 = vmatprep.subr.bf16.mxu0 0
    %443 = vmatpush1.bf16.msra.mxu0 0
    %444 = vmatprep.subr.bf16.mxu0 0
    %445 = vmatpush1.bf16.msra.mxu0 0
    %446 = vmatprep.subr.bf16.mxu0 0
    %447 = vmatpush1.bf16.msra.mxu0 0
    %448 = vmatprep.subr.bf16.mxu0 0
    %449 = vmatpush1.bf16.msra.mxu0 0
    %450 = vmatprep.subr.bf16.mxu0 0
    %451 = vmatpush1.bf16.msra.mxu0 0
    %452 = vmatprep.mubr.bf16.mxu0 0
    %453 = vmatmul.mubr.bf16.gmra.mrb[0].mxu0 %v326
    %v454 = vpop.f32.mrb[0].mxu0
    %v455 = vadd.f32 %v312, %v454
    %v456 = vpop.f32.mrb[0].mxu0
    %v457 = vpop.f32.mrb[0].mxu0
    %v458 = vadd.f32 %v312, %v457
    %v459 = vpop.f32.mrb[0].mxu0
    %460 = vmatprep.mubr.bf16.mxu0 0
    %461 = vmatmul.mubr.bf16.gmra.mrb[0].mxu0 %v329
    %v462 = vpop.f32.mrb[0].mxu0
    %v463 = vadd.f32 %v312, %v462
    %v464 = vpop.f32.mrb[0].mxu0
    %v465 = vpop.f32.mrb[0].mxu0
    %v466 = vadd.f32 %v312, %v465
    %v467 = vpop.f32.mrb[0].mxu0
    %468 = vmatprep.mubr.bf16.mxu0 0
    %469 = vmatmul.mubr.bf16.gmra.mrb[0].mxu0 %v332
    %v470 = vpop.f32.mrb[0].mxu0
    %v471 = vadd.f32 %v312, %v470
    %v472 = vpop.f32.mrb[0].mxu0
    %v473 = vpop.f32.mrb[0].mxu0
    %v474 = vadd.f32 %v312, %v473
    %v475 = vpop.f32.mrb[0].mxu0
    %476 = vmatprep.mubr.bf16.mxu0 0
    %477 = vmatmul.mubr.bf16.gmra.mrb[0].mxu0 %v335
    %v478 = vpop.f32.mrb[0].mxu0
    %v479 = vadd.f32 %v312, %v478
    %v480 = vpop.f32.mrb[0].mxu0
    %v481 = vpop.f32.mrb[0].mxu0
    %v482 = vadd.f32 %v312, %v481
    %v483 = vpop.f32.mrb[0].mxu0
    %484 = vdwg.mxu0
    %485 = vst [vmem:[#allocation2] sm:$0xff] %v382
    %486 = vst [vmem:[#allocation2 + $0x8] sm:$0xff] %v384
    %487 = vst [vmem:[#allocation2 + $0x10] sm:$0xff] %v455
    %488 = vst [vmem:[#allocation2 + $0x18] sm:$0xff] %v386
    %489 = vst [vmem:[#allocation2 + $0x20] sm:$0xff] %v388
    %490 = vst [vmem:[#allocation2 + $0x28] sm:$0xff] %v458
    %491 = vst [vmem:[#allocation2 + $0x30] sm:$0xff] %v392
    %492 = vst [vmem:[#allocation2 + $0x38] sm:$0xff] %v394
    %493 = vst [vmem:[#allocation2 + $0x40] sm:$0xff] %v463
    %494 = vst [vmem:[#allocation2 + $0x48] sm:$0xff] %v396
    %495 = vst [vmem:[#allocation2 + $0x50] sm:$0xff] %v398
    %496 = vst [vmem:[#allocation2 + $0x58] sm:$0xff] %v466
    %497 = vst [vmem:[#allocation2 + $0x60] sm:$0xff] %v402
    %498 = vst [vmem:[#allocation2 + $0x68] sm:$0xff] %v404
    %499 = vst [vmem:[#allocation2 + $0x70] sm:$0xff] %v471
    %500 = vst [vmem:[#allocation2 + $0x78] sm:$0xff] %v406
    %501 = vst [vmem:[#allocation2 + $0x80] sm:$0xff] %v408
    %502 = vst [vmem:[#allocation2 + $0x88] sm:$0xff] %v474
    %503 = vst [vmem:[#allocation2 + $0x90] sm:$0xff] %v412
    %504 = vst [vmem:[#allocation2 + $0x98] sm:$0xff] %v414
    %505 = vst [vmem:[#allocation2 + $0xa0] sm:$0xff] %v479
    %506 = vst [vmem:[#allocation2 + $0xa8] sm:$0xff] %v416
    %507 = vst [vmem:[#allocation2 + $0xb0] sm:$0xff] %v418
    %508 = vst [vmem:[#allocation2 + $0xb8] sm:$0xff] %v482
    %v509 = vld [vmem:[#allocation11] sm:$0xff]
    %v510 = vld [vmem:[#allocation11 + $0x8] sm:$0xff]
    %v511 = vld [vmem:[#allocation11 + $0x10] sm:$0xff]
    %v512 = vld [vmem:[#allocation15] sm:$0xff]
    %v513 = vld [vmem:[#allocation15 + $0x8] sm:$0xff]
    %v514 = vld [vmem:[#allocation15 + $0x10] sm:$0xff]
    %v515 = vld [vmem:[#allocation17] sm:$0xff]
    %v516 = vld [vmem:[#allocation2] sm:$0xff]
    %v517 = vld [vmem:[#allocation2 + $0x8] sm:$0xff]
    %v518 = vld [vmem:[#allocation2 + $0x10] sm:$0xff]
    %v519 = vld [vmem:[%s0] sm:$0xff]
    %vm520 = vcmp.ne.s32.totalorder %v519, 0
    %v521 = vld [vmem:[#allocation8] sm:$0xff]
    %v522 = vld [vmem:[#allocation8 + $0x8] sm:$0xf]
    %v523 = vld [vmem:[#allocation8 + $0xc] sm:$0xff]
    %v524 = vld [vmem:[#allocation8 + $0x14] sm:$0xf]
    %v525 = vld [vmem:[#allocation8 + $0x18] sm:$0xff]
    %v526 = vld [vmem:[#allocation8 + $0x20] sm:$0xf]
    %v527 = vld [vmem:[#allocation8 + $0x24] sm:$0xff]
    %v528 = vld [vmem:[#allocation8 + $0x2c] sm:$0xf]
    %v529 = vld [vmem:[#allocation8 + $0x30] sm:$0xff]
    %v530 = vld [vmem:[#allocation8 + $0x38] sm:$0xf]
    %v531 = vld [vmem:[#allocation8 + $0x3c] sm:$0xff]
    %v532 = vld [vmem:[#allocation8 + $0x44] sm:$0xf]
    %v533 = vld [vmem:[#allocation8 + $0x48] sm:$0xff]
    %v534 = vld [vmem:[#allocation8 + $0x50] sm:$0xf]
    %v535 = vld [vmem:[#allocation8 + $0x54] sm:$0xff]
    %v536 = vld [vmem:[#allocation8 + $0x5c] sm:$0xf]
    %v537 = vld [vmem:[#allocation8 + $0x60] sm:$0xff]
    %v538 = vld [vmem:[#allocation8 + $0x68] sm:$0xf]
    %v539 = vld [vmem:[#allocation8 + $0x6c] sm:$0xff]
    %v540 = vld [vmem:[#allocation8 + $0x74] sm:$0xf]
    %v541 = vld [vmem:[#allocation8 + $0x78] sm:$0xff]
    %v542 = vld [vmem:[#allocation8 + $0x80] sm:$0xf]
    %v543 = vld [vmem:[#allocation8 + $0x84] sm:$0xff]
    %v544 = vld [vmem:[#allocation8 + $0x8c] sm:$0xf]
    %v545 = vld [vmem:[#allocation8 + $0x90] sm:$0xff]
    %v546 = vld [vmem:[#allocation8 + $0x98] sm:$0xf]
    %v547 = vld [vmem:[#allocation8 + $0x9c] sm:$0xff]
    %v548 = vld [vmem:[#allocation8 + $0xa4] sm:$0xf]
    %v549 = vld [vmem:[#allocation8 + $0xa8] sm:$0xff]
    %v550 = vld [vmem:[#allocation8 + $0xb0] sm:$0xf]
    %v551 = vld [vmem:[#allocation8 + $0xb4] sm:$0xff]
    %v552 = vld [vmem:[#allocation8 + $0xbc] sm:$0xf]
    %v585 = vunpack.c.l.b16 %v521
    %v586 = vunpack.c.h.b16 %v521
    %v587 = vunpack.c.l.b16 %v522
    %v588 = vunpack.c.l.b16 %v523
    %v589 = vunpack.c.h.b16 %v523
    %v590 = vunpack.c.l.b16 %v524
    %v591 = vunpack.c.l.b16 %v525
    %v592 = vunpack.c.h.b16 %v525
    %v593 = vunpack.c.l.b16 %v526
    %v594 = vunpack.c.l.b16 %v527
    %v595 = vunpack.c.h.b16 %v527
    %v596 = vunpack.c.l.b16 %v528
    %v597 = vunpack.c.l.b16 %v529
    %v598 = vunpack.c.h.b16 %v529
    %v599 = vunpack.c.l.b16 %v530
    %v600 = vunpack.c.l.b16 %v531
    %v601 = vunpack.c.h.b16 %v531
    %v602 = vunpack.c.l.b16 %v532
    %v603 = vunpack.c.l.b16 %v533
    %v604 = vunpack.c.h.b16 %v533
    %v605 = vunpack.c.l.b16 %v534
    %v606 = vunpack.c.l.b16 %v535
    %v607 = vunpack.c.h.b16 %v535
    %v608 = vunpack.c.l.b16 %v536
    %v609 = vunpack.c.l.b16 %v537
    %v610 = vunpack.c.h.b16 %v537
    %v611 = vunpack.c.l.b16 %v538
    %v612 = vunpack.c.l.b16 %v539
    %v613 = vunpack.c.h.b16 %v539
    %v614 = vunpack.c.l.b16 %v540
    %v615 = vunpack.c.l.b16 %v541
    %v616 = vunpack.c.h.b16 %v541
    %v617 = vunpack.c.l.b16 %v542
    %v618 = vunpack.c.l.b16 %v543
    %v619 = vunpack.c.h.b16 %v543
    %v620 = vunpack.c.l.b16 %v544
    %v621 = vunpack.c.l.b16 %v545
    %v622 = vunpack.c.h.b16 %v545
    %v623 = vunpack.c.l.b16 %v546
    %v624 = vunpack.c.l.b16 %v547
    %v625 = vunpack.c.h.b16 %v547
    %v626 = vunpack.c.l.b16 %v548
    %v627 = vunpack.c.l.b16 %v549
    %v628 = vunpack.c.h.b16 %v549
    %v629 = vunpack.c.l.b16 %v550
    %v630 = vunpack.c.l.b16 %v551
    %v631 = vunpack.c.h.b16 %v551
    %v632 = vunpack.c.l.b16 %v552
    %v633 = vpack.c.b16 %v588, %v585
    %v634 = vpack.c.b16 %v589, %v586
    %v635 = vpack.c.b16 %v590, %v587
    %v636 = vpack.c.b16 %v594, %v591
    %v637 = vpack.c.b16 %v595, %v592
    %v638 = vpack.c.b16 %v596, %v593
    %v639 = vpack.c.b16 %v600, %v597
    %v640 = vpack.c.b16 %v601, %v598
    %v641 = vpack.c.b16 %v602, %v599
    %v642 = vpack.c.b16 %v606, %v603
    %v643 = vpack.c.b16 %v607, %v604
    %v644 = vpack.c.b16 %v608, %v605
    %v645 = vpack.c.b16 %v612, %v609
    %v646 = vpack.c.b16 %v613, %v610
    %v647 = vpack.c.b16 %v614, %v611
    %v648 = vpack.c.b16 %v618, %v615
    %v649 = vpack.c.b16 %v619, %v616
    %v650 = vpack.c.b16 %v620, %v617
    %v651 = vpack.c.b16 %v624, %v621
    %v652 = vpack.c.b16 %v625, %v622
    %v653 = vpack.c.b16 %v626, %v623
    %v654 = vpack.c.b16 %v630, %v627
    %v655 = vpack.c.b16 %v631, %v628
    %v656 = vpack.c.b16 %v632, %v629
    %681 = vmatprep.subr.bf16.mxu0 %v634
    %682 = vmatpush1.bf16.msra.mxu0 %v633
    %683 = vmatprep.subr.bf16.mxu0 %v637
    %684 = vmatpush1.bf16.msra.mxu0 %v636
    %685 = vmatprep.subr.bf16.mxu0 %v640
    %686 = vmatpush1.bf16.msra.mxu0 %v639
    %687 = vmatprep.subr.bf16.mxu0 %v643
    %688 = vmatpush1.bf16.msra.mxu0 %v642
    %689 = vmatprep.subr.bf16.mxu0 %v646
    %690 = vmatpush1.bf16.msra.mxu0 %v645
    %691 = vmatprep.subr.bf16.mxu0 %v649
    %692 = vmatpush1.bf16.msra.mxu0 %v648
    %693 = vmatprep.subr.bf16.mxu0 %v652
    %694 = vmatpush1.bf16.msra.mxu0 %v651
    %695 = vmatprep.subr.bf16.mxu0 %v655
    %696 = vmatpush1.bf16.msra.mxu0 %v654
    %697 = vmatprep.subr.bf16.mxu0 0
    %698 = vmatpush1.bf16.msra.mxu0 0
    %699 = vmatprep.subr.bf16.mxu0 0
    %700 = vmatpush1.bf16.msra.mxu0 0
    %701 = vmatprep.subr.bf16.mxu0 0
    %702 = vmatpush1.bf16.msra.mxu0 0
    %703 = vmatprep.subr.bf16.mxu0 0
    %704 = vmatpush1.bf16.msra.mxu0 0
    %705 = vmatprep.subr.bf16.mxu0 0
    %706 = vmatpush1.bf16.msra.mxu0 0
    %707 = vmatprep.subr.bf16.mxu0 0
    %708 = vmatpush1.bf16.msra.mxu0 0
    %709 = vmatprep.subr.bf16.mxu0 0
    %710 = vmatpush1.bf16.msra.mxu0 0
    %711 = vmatprep.subr.bf16.mxu0 0
    %712 = vmatpush1.bf16.msra.mxu0 0
    %713 = vmatprep.mubr.bf16.mxu0 0
    %714 = vmatmul.mubr.bf16.gmra.mrb[0].mxu0 0
    %v715 = vpop.f32.mrb[0].mxu0
    %v716 = vadd.f32 %v509, %v715
    %v717 = vpop.f32.mrb[0].mxu0
    %v718 = vadd.f32 %v510, %v717
    %v719 = vpop.f32.mrb[0].mxu0
    %v720 = vpop.f32.mrb[0].mxu0
    %721 = vdwg.mxu0
    %722 = vmatprep.subr.bf16.mxu0 0
    %723 = vmatpush1.bf16.msra.mxu0 %v635
    %724 = vmatprep.subr.bf16.mxu0 0
    %725 = vmatpush1.bf16.msra.mxu0 %v638
    %726 = vmatprep.subr.bf16.mxu0 0
    %727 = vmatpush1.bf16.msra.mxu0 %v641
    %728 = vmatprep.subr.bf16.mxu0 0
    %729 = vmatpush1.bf16.msra.mxu0 %v644
    %730 = vmatprep.subr.bf16.mxu0 0
    %731 = vmatpush1.bf16.msra.mxu0 %v647
    %732 = vmatprep.subr.bf16.mxu0 0
    %733 = vmatpush1.bf16.msra.mxu0 %v650
    %734 = vmatprep.subr.bf16.mxu0 0
    %735 = vmatpush1.bf16.msra.mxu0 %v653
    %736 = vmatprep.subr.bf16.mxu0 0
    %737 = vmatpush1.bf16.msra.mxu0 %v656
    %738 = vmatprep.subr.bf16.mxu0 0
    %739 = vmatpush1.bf16.msra.mxu0 0
    %740 = vmatprep.subr.bf16.mxu0 0
    %741 = vmatpush1.bf16.msra.mxu0 0
    %742 = vmatprep.subr.bf16.mxu0 0
    %743 = vmatpush1.bf16.msra.mxu0 0
    %744 = vmatprep.subr.bf16.mxu0 0
    %745 = vmatpush1.bf16.msra.mxu0 0
    %746 = vmatprep.subr.bf16.mxu0 0
    %747 = vmatpush1.bf16.msra.mxu0 0
    %748 = vmatprep.subr.bf16.mxu0 0
    %749 = vmatpush1.bf16.msra.mxu0 0
    %750 = vmatprep.subr.bf16.mxu0 0
    %751 = vmatpush1.bf16.msra.mxu0 0
    %752 = vmatprep.subr.bf16.mxu0 0
    %753 = vmatpush1.bf16.msra.mxu0 0
    %754 = vmatprep.mubr.bf16.mxu0 0
    %755 = vmatmul.mubr.bf16.gmra.mrb[0].mxu0 0
    %v756 = vpop.f32.mrb[0].mxu0
    %v757 = vadd.f32 %v511, %v756
    %v758 = vpop.f32.mrb[0].mxu0
    %v759 = vpop.f32.mrb[0].mxu0
    %v760 = vpop.f32.mrb[0].mxu0
    %761 = vdwg.mxu0
    %v762 = vadd.f32 %v516, %v716
    %v763 = vxor.u32 %v762, 2147483648
    %v764 = vmul.f32 %v763, 1.442695
    %v765 = vpow.pop %v764
    %v766 = vadd.f32 %v765, 1.0
    %v767 = vrcp.pop %v766
    %v768 = vmul.f32 1.0, %v767
    %v769 = vadd.f32 %v517, %v718
    %v770 = vxor.u32 %v769, 2147483648
    %v771 = vmul.f32 %v770, 1.442695
    %v772 = vpow.pop %v771
    %v773 = vadd.f32 %v772, 1.0
    %v774 = vrcp.pop %v773
    %v775 = vmul.f32 1.0, %v774
    %v776 = vmul.f32 %v768, %v757
    %v777 = vadd.f32 %v518, %v776
    %v778 = vtanh.pop %v777
    %v779 = vsub.f32 1.0, %v775
    %v780 = vmul.f32 %v779, %v778
    %v781 = vmul.f32 %v775, 0.0
    %v782 = vadd.f32 %v780, %v781
    %v783 = vsel %vm520, %v782, 0.0
    %v784 = vld [vmem:[#allocation12] sm:$0xff]
    %v785 = vld [vmem:[#allocation12 + $0x8] sm:$0xf]
    %v786 = vld [vmem:[#allocation12 + $0xc] sm:$0xff]
    %v787 = vld [vmem:[#allocation12 + $0x14] sm:$0xf]
    %v788 = vld [vmem:[#allocation12 + $0x18] sm:$0xff]
    %v789 = vld [vmem:[#allocation12 + $0x20] sm:$0xf]
    %v790 = vld [vmem:[#allocation12 + $0x24] sm:$0xff]
    %v791 = vld [vmem:[#allocation12 + $0x2c] sm:$0xf]
    %v792 = vld [vmem:[#allocation12 + $0x30] sm:$0xff]
    %v793 = vld [vmem:[#allocation12 + $0x38] sm:$0xf]
    %v794 = vld [vmem:[#allocation12 + $0x3c] sm:$0xff]
    %v795 = vld [vmem:[#allocation12 + $0x44] sm:$0xf]
    %v796 = vld [vmem:[#allocation12 + $0x48] sm:$0xff]
    %v797 = vld [vmem:[#allocation12 + $0x50] sm:$0xf]
    %v798 = vld [vmem:[#allocation12 + $0x54] sm:$0xff]
    %v799 = vld [vmem:[#allocation12 + $0x5c] sm:$0xf]
    %v800 = vld [vmem:[#allocation12 + $0x60] sm:$0xff]
    %v801 = vld [vmem:[#allocation12 + $0x68] sm:$0xf]
    %v802 = vld [vmem:[#allocation12 + $0x6c] sm:$0xff]
    %v803 = vld [vmem:[#allocation12 + $0x74] sm:$0xf]
    %v804 = vld [vmem:[#allocation12 + $0x78] sm:$0xff]
    %v805 = vld [vmem:[#allocation12 + $0x80] sm:$0xf]
    %v806 = vld [vmem:[#allocation12 + $0x84] sm:$0xff]
    %v807 = vld [vmem:[#allocation12 + $0x8c] sm:$0xf]
    %v808 = vld [vmem:[#allocation12 + $0x90] sm:$0xff]
    %v809 = vld [vmem:[#allocation12 + $0x98] sm:$0xf]
    %v810 = vld [vmem:[#allocation12 + $0x9c] sm:$0xff]
    %v811 = vld [vmem:[#allocation12 + $0xa4] sm:$0xf]
    %v812 = vld [vmem:[#allocation12 + $0xa8] sm:$0xff]
    %v813 = vld [vmem:[#allocation12 + $0xb0] sm:$0xf]
    %v814 = vld [vmem:[#allocation12 + $0xb4] sm:$0xff]
    %v815 = vld [vmem:[#allocation12 + $0xbc] sm:$0xf]
    %v816 = vld [vmem:[#allocation12 + $0xc0] sm:$0xff]
    %v817 = vld [vmem:[#allocation12 + $0xc8] sm:$0xf]
    %v818 = vld [vmem:[#allocation12 + $0xcc] sm:$0xff]
    %v819 = vld [vmem:[#allocation12 + $0xd4] sm:$0xf]
    %v820 = vld [vmem:[#allocation12 + $0xd8] sm:$0xff]
    %v821 = vld [vmem:[#allocation12 + $0xe0] sm:$0xf]
    %v822 = vld [vmem:[#allocation12 + $0xe4] sm:$0xff]
    %v823 = vld [vmem:[#allocation12 + $0xec] sm:$0xf]
    %v824 = vld [vmem:[#allocation12 + $0xf0] sm:$0xff]
    %v825 = vld [vmem:[#allocation12 + $0xf8] sm:$0xf]
    %v826 = vld [vmem:[#allocation12 + $0xfc] sm:$0xff]
    %v827 = vld [vmem:[#allocation12 + $0x104] sm:$0xf]
    %v828 = vld [vmem:[#allocation12 + $0x108] sm:$0xff]
    %v829 = vld [vmem:[#allocation12 + $0x110] sm:$0xf]
    %v830 = vld [vmem:[#allocation12 + $0x114] sm:$0xff]
    %v831 = vld [vmem:[#allocation12 + $0x11c] sm:$0xf]
    %v832 = vld [vmem:[#allocation12 + $0x120] sm:$0xff]
    %v833 = vld [vmem:[#allocation12 + $0x128] sm:$0xf]
    %v834 = vld [vmem:[#allocation12 + $0x12c] sm:$0xff]
    %v835 = vld [vmem:[#allocation12 + $0x134] sm:$0xf]
    %v836 = vld [vmem:[#allocation12 + $0x138] sm:$0xff]
    %v837 = vld [vmem:[#allocation12 + $0x140] sm:$0xf]
    %v838 = vld [vmem:[#allocation12 + $0x144] sm:$0xff]
    %v839 = vld [vmem:[#allocation12 + $0x14c] sm:$0xf]
    %v840 = vld [vmem:[#allocation12 + $0x150] sm:$0xff]
    %v841 = vld [vmem:[#allocation12 + $0x158] sm:$0xf]
    %v842 = vld [vmem:[#allocation12 + $0x15c] sm:$0xff]
    %v843 = vld [vmem:[#allocation12 + $0x164] sm:$0xf]
    %v844 = vld [vmem:[#allocation12 + $0x168] sm:$0xff]
    %v845 = vld [vmem:[#allocation12 + $0x170] sm:$0xf]
    %v846 = vld [vmem:[#allocation12 + $0x174] sm:$0xff]
    %v847 = vld [vmem:[#allocation12 + $0x17c] sm:$0xf]
    %v848 = vpack.c.bf16 %v783, %v783
    %v849 = vpack.c.bf16 0.0, 0.0
    %v914 = vunpack.c.l.b16 %v784
    %v915 = vunpack.c.h.b16 %v784
    %v916 = vunpack.c.l.b16 %v785
    %v917 = vunpack.c.l.b16 %v786
    %v918 = vunpack.c.h.b16 %v786
    %v919 = vunpack.c.l.b16 %v787
    %v920 = vunpack.c.l.b16 %v788
    %v921 = vunpack.c.h.b16 %v788
    %v922 = vunpack.c.l.b16 %v789
    %v923 = vunpack.c.l.b16 %v790
    %v924 = vunpack.c.h.b16 %v790
    %v925 = vunpack.c.l.b16 %v791
    %v926 = vunpack.c.l.b16 %v792
    %v927 = vunpack.c.h.b16 %v792
    %v928 = vunpack.c.l.b16 %v793
    %v929 = vunpack.c.l.b16 %v794
    %v930 = vunpack.c.h.b16 %v794
    %v931 = vunpack.c.l.b16 %v795
    %v932 = vunpack.c.l.b16 %v796
    %v933 = vunpack.c.h.b16 %v796
    %v934 = vunpack.c.l.b16 %v797
    %v935 = vunpack.c.l.b16 %v798
    %v936 = vunpack.c.h.b16 %v798
    %v937 = vunpack.c.l.b16 %v799
    %v938 = vunpack.c.l.b16 %v800
    %v939 = vunpack.c.h.b16 %v800
    %v940 = vunpack.c.l.b16 %v801
    %v941 = vunpack.c.l.b16 %v802
    %v942 = vunpack.c.h.b16 %v802
    %v943 = vunpack.c.l.b16 %v803
    %v944 = vunpack.c.l.b16 %v804
    %v945 = vunpack.c.h.b16 %v804
    %v946 = vunpack.c.l.b16 %v805
    %v947 = vunpack.c.l.b16 %v806
    %v948 = vunpack.c.h.b16 %v806
    %v949 = vunpack.c.l.b16 %v807
    %v950 = vunpack.c.l.b16 %v808
    %v951 = vunpack.c.h.b16 %v808
    %v952 = vunpack.c.l.b16 %v809
    %v953 = vunpack.c.l.b16 %v810
    %v954 = vunpack.c.h.b16 %v810
    %v955 = vunpack.c.l.b16 %v811
    %v956 = vunpack.c.l.b16 %v812
    %v957 = vunpack.c.h.b16 %v812
    %v958 = vunpack.c.l.b16 %v813
    %v959 = vunpack.c.l.b16 %v814
    %v960 = vunpack.c.h.b16 %v814
    %v961 = vunpack.c.l.b16 %v815
    %v962 = vunpack.c.l.b16 %v816
    %v963 = vunpack.c.h.b16 %v816
    %v964 = vunpack.c.l.b16 %v817
    %v965 = vunpack.c.l.b16 %v818
    %v966 = vunpack.c.h.b16 %v818
    %v967 = vunpack.c.l.b16 %v819
    %v968 = vunpack.c.l.b16 %v820
    %v969 = vunpack.c.h.b16 %v820
    %v970 = vunpack.c.l.b16 %v821
    %v971 = vunpack.c.l.b16 %v822
    %v972 = vunpack.c.h.b16 %v822
    %v973 = vunpack.c.l.b16 %v823
    %v974 = vunpack.c.l.b16 %v824
    %v975 = vunpack.c.h.b16 %v824
    %v976 = vunpack.c.l.b16 %v825
    %v977 = vunpack.c.l.b16 %v826
    %v978 = vunpack.c.h.b16 %v826
    %v979 = vunpack.c.l.b16 %v827
    %v980 = vunpack.c.l.b16 %v828
    %v981 = vunpack.c.h.b16 %v828
    %v982 = vunpack.c.l.b16 %v829
    %v983 = vunpack.c.l.b16 %v830
    %v984 = vunpack.c.h.b16 %v830
    %v985 = vunpack.c.l.b16 %v831
    %v986 = vunpack.c.l.b16 %v832
    %v987 = vunpack.c.h.b16 %v832
    %v988 = vunpack.c.l.b16 %v833
    %v989 = vunpack.c.l.b16 %v834
    %v990 = vunpack.c.h.b16 %v834
    %v991 = vunpack.c.l.b16 %v835
    %v992 = vunpack.c.l.b16 %v836
    %v993 = vunpack.c.h.b16 %v836
    %v994 = vunpack.c.l.b16 %v837
    %v995 = vunpack.c.l.b16 %v838
    %v996 = vunpack.c.h.b16 %v838
    %v997 = vunpack.c.l.b16 %v839
    %v998 = vunpack.c.l.b16 %v840
    %v999 = vunpack.c.h.b16 %v840
    %v1000 = vunpack.c.l.b16 %v841
    %v1001 = vunpack.c.l.b16 %v842
    %v1002 = vunpack.c.h.b16 %v842
    %v1003 = vunpack.c.l.b16 %v843
    %v1004 = vunpack.c.l.b16 %v844
    %v1005 = vunpack.c.h.b16 %v844
    %v1006 = vunpack.c.l.b16 %v845
    %v1007 = vunpack.c.l.b16 %v846
    %v1008 = vunpack.c.h.b16 %v846
    %v1009 = vunpack.c.l.b16 %v847
    %v1010 = vpack.c.b16 %v917, %v914
    %v1011 = vpack.c.b16 %v918, %v915
    %v1012 = vpack.c.b16 %v919, %v916
    %v1013 = vpack.c.b16 %v923, %v920
    %v1014 = vpack.c.b16 %v924, %v921
    %v1015 = vpack.c.b16 %v925, %v922
    %v1016 = vpack.c.b16 %v929, %v926
    %v1017 = vpack.c.b16 %v930, %v927
    %v1018 = vpack.c.b16 %v931, %v928
    %v1019 = vpack.c.b16 %v935, %v932
    %v1020 = vpack.c.b16 %v936, %v933
    %v1021 = vpack.c.b16 %v937, %v934
    %v1022 = vpack.c.b16 %v941, %v938
    %v1023 = vpack.c.b16 %v942, %v939
    %v1024 = vpack.c.b16 %v943, %v940
    %v1025 = vpack.c.b16 %v947, %v944
    %v1026 = vpack.c.b16 %v948, %v945
    %v1027 = vpack.c.b16 %v949, %v946
    %v1028 = vpack.c.b16 %v953, %v950
    %v1029 = vpack.c.b16 %v954, %v951
    %v1030 = vpack.c.b16 %v955, %v952
    %v1031 = vpack.c.b16 %v959, %v956
    %v1032 = vpack.c.b16 %v960, %v957
    %v1033 = vpack.c.b16 %v961, %v958
    %v1034 = vpack.c.b16 %v965, %v962
    %v1035 = vpack.c.b16 %v966, %v963
    %v1036 = vpack.c.b16 %v967, %v964
    %v1037 = vpack.c.b16 %v971, %v968
    %v1038 = vpack.c.b16 %v972, %v969
    %v1039 = vpack.c.b16 %v973, %v970
    %v1040 = vpack.c.b16 %v977, %v974
    %v1041 = vpack.c.b16 %v978, %v975
    %v1042 = vpack.c.b16 %v979, %v976
    %v1043 = vpack.c.b16 %v983, %v980
    %v1044 = vpack.c.b16 %v984, %v981
    %v1045 = vpack.c.b16 %v985, %v982
    %v1046 = vpack.c.b16 %v989, %v986
    %v1047 = vpack.c.b16 %v990, %v987
    %v1048 = vpack.c.b16 %v991, %v988
    %v1049 = vpack.c.b16 %v995, %v992
    %v1050 = vpack.c.b16 %v996, %v993
    %v1051 = vpack.c.b16 %v997, %v994
    %v1052 = vpack.c.b16 %v1001, %v998
    %v1053 = vpack.c.b16 %v1002, %v999
    %v1054 = vpack.c.b16 %v1003, %v1000
    %v1055 = vpack.c.b16 %v1007, %v1004
    %v1056 = vpack.c.b16 %v1008, %v1005
    %v1057 = vpack.c.b16 %v1009, %v1006
    %1106 = vmatprep.subr.bf16.mxu0 %v1011
    %1107 = vmatpush1.bf16.msra.mxu0 %v1010
    %1108 = vmatprep.subr.bf16.mxu0 %v1014
    %1109 = vmatpush1.bf16.msra.mxu0 %v1013
    %1110 = vmatprep.subr.bf16.mxu0 %v1017
    %1111 = vmatpush1.bf16.msra.mxu0 %v1016
    %1112 = vmatprep.subr.bf16.mxu0 %v1020
    %1113 = vmatpush1.bf16.msra.mxu0 %v1019
    %1114 = vmatprep.subr.bf16.mxu0 %v1023
    %1115 = vmatpush1.bf16.msra.mxu0 %v1022
    %1116 = vmatprep.subr.bf16.mxu0 %v1026
    %1117 = vmatpush1.bf16.msra.mxu0 %v1025
    %1118 = vmatprep.subr.bf16.mxu0 %v1029
    %1119 = vmatpush1.bf16.msra.mxu0 %v1028
    %1120 = vmatprep.subr.bf16.mxu0 %v1032
    %1121 = vmatpush1.bf16.msra.mxu0 %v1031
    %1122 = vmatprep.subr.bf16.mxu0 %v1035
    %1123 = vmatpush1.bf16.msra.mxu0 %v1034
    %1124 = vmatprep.subr.bf16.mxu0 %v1038
    %1125 = vmatpush1.bf16.msra.mxu0 %v1037
    %1126 = vmatprep.subr.bf16.mxu0 %v1041
    %1127 = vmatpush1.bf16.msra.mxu0 %v1040
    %1128 = vmatprep.subr.bf16.mxu0 %v1044
    %1129 = vmatpush1.bf16.msra.mxu0 %v1043
    %1130 = vmatprep.subr.bf16.mxu0 %v1047
    %1131 = vmatpush1.bf16.msra.mxu0 %v1046
    %1132 = vmatprep.subr.bf16.mxu0 %v1050
    %1133 = vmatpush1.bf16.msra.mxu0 %v1049
    %1134 = vmatprep.subr.bf16.mxu0 %v1053
    %1135 = vmatpush1.bf16.msra.mxu0 %v1052
    %1136 = vmatprep.subr.bf16.mxu0 %v1056
    %1137 = vmatpush1.bf16.msra.mxu0 %v1055
    %1138 = vmatprep.mubr.bf16.mxu0 %v849
    %1139 = vmatmul.mubr.bf16.gmra.mrb[0].mxu0 %v848
    %v1140 = vpop.f32.mrb[0].mxu0
    %v1141 = vadd.f32 %v512, %v1140
    %v1142 = vpop.f32.mrb[0].mxu0
    %v1143 = vadd.f32 %v513, %v1142
    %v1144 = vpop.f32.mrb[0].mxu0
    %v1145 = vpop.f32.mrb[0].mxu0
    %1146 = vdwg.mxu0
    %1147 = vmatprep.subr.bf16.mxu0 0
    %1148 = vmatpush1.bf16.msra.mxu0 %v1012
    %1149 = vmatprep.subr.bf16.mxu0 0
    %1150 = vmatpush1.bf16.msra.mxu0 %v1015
    %1151 = vmatprep.subr.bf16.mxu0 0
    %1152 = vmatpush1.bf16.msra.mxu0 %v1018
    %1153 = vmatprep.subr.bf16.mxu0 0
    %1154 = vmatpush1.bf16.msra.mxu0 %v1021
    %1155 = vmatprep.subr.bf16.mxu0 0
    %1156 = vmatpush1.bf16.msra.mxu0 %v1024
    %1157 = vmatprep.subr.bf16.mxu0 0
    %1158 = vmatpush1.bf16.msra.mxu0 %v1027
    %1159 = vmatprep.subr.bf16.mxu0 0
    %1160 = vmatpush1.bf16.msra.mxu0 %v1030
    %1161 = vmatprep.subr.bf16.mxu0 0
    %1162 = vmatpush1.bf16.msra.mxu0 %v1033
    %1163 = vmatprep.subr.bf16.mxu0 0
    %1164 = vmatpush1.bf16.msra.mxu0 %v1036
    %1165 = vmatprep.subr.bf16.mxu0 0
    %1166 = vmatpush1.bf16.msra.mxu0 %v1039
    %1167 = vmatprep.subr.bf16.mxu0 0
    %1168 = vmatpush1.bf16.msra.mxu0 %v1042
    %1169 = vmatprep.subr.bf16.mxu0 0
    %1170 = vmatpush1.bf16.msra.mxu0 %v1045
    %1171 = vmatprep.subr.bf16.mxu0 0
    %1172 = vmatpush1.bf16.msra.mxu0 %v1048
    %1173 = vmatprep.subr.bf16.mxu0 0
    %1174 = vmatpush1.bf16.msra.mxu0 %v1051
    %1175 = vmatprep.subr.bf16.mxu0 0
    %1176 = vmatpush1.bf16.msra.mxu0 %v1054
    %1177 = vmatprep.subr.bf16.mxu0 0
    %1178 = vmatpush1.bf16.msra.mxu0 %v1057
    %1179 = vmatprep.mubr.bf16.mxu0 %v849
    %1180 = vmatmul.mubr.bf16.gmra.mrb[0].mxu0 %v848
    %v1181 = vpop.f32.mrb[0].mxu0
    %v1182 = vadd.f32 %v514, %v1181
    %v1183 = vpop.f32.mrb[0].mxu0
    %v1184 = vpop.f32.mrb[0].mxu0
    %v1185 = vpop.f32.mrb[0].mxu0
    %1186 = vdwg.mxu0
    %v1187 = vld [vmem:[#allocation14] sm:$0xf]
    %v1188 = vld [vmem:[#allocation14 + $0x4] sm:$0xf]
    %v1189 = vld [vmem:[#allocation14 + $0x8] sm:$0xf]
    %v1190 = vld [vmem:[#allocation14 + $0xc] sm:$0xf]
    %v1191 = vld [vmem:[#allocation14 + $0x10] sm:$0xf]
    %v1192 = vld [vmem:[#allocation14 + $0x14] sm:$0xf]
    %v1193 = vld [vmem:[#allocation14 + $0x18] sm:$0xf]
    %v1194 = vld [vmem:[#allocation14 + $0x1c] sm:$0xf]
    %v1195 = vld [vmem:[#allocation14 + $0x20] sm:$0xf]
    %v1196 = vld [vmem:[#allocation14 + $0x24] sm:$0xf]
    %v1197 = vld [vmem:[#allocation14 + $0x28] sm:$0xf]
    %v1198 = vld [vmem:[#allocation14 + $0x2c] sm:$0xf]
    %v1199 = vld [vmem:[#allocation14 + $0x30] sm:$0xf]
    %v1200 = vld [vmem:[#allocation14 + $0x34] sm:$0xf]
    %v1201 = vld [vmem:[#allocation14 + $0x38] sm:$0xf]
    %v1202 = vld [vmem:[#allocation14 + $0x3c] sm:$0xf]
    %v1219 = vunpack.c.l.b16 %v1187
    %v1220 = vunpack.c.l.b16 %v1188
    %v1221 = vunpack.c.l.b16 %v1189
    %v1222 = vunpack.c.l.b16 %v1190
    %v1223 = vunpack.c.l.b16 %v1191
    %v1224 = vunpack.c.l.b16 %v1192
    %v1225 = vunpack.c.l.b16 %v1193
    %v1226 = vunpack.c.l.b16 %v1194
    %v1227 = vunpack.c.l.b16 %v1195
    %v1228 = vunpack.c.l.b16 %v1196
    %v1229 = vunpack.c.l.b16 %v1197
    %v1230 = vunpack.c.l.b16 %v1198
    %v1231 = vunpack.c.l.b16 %v1199
    %v1232 = vunpack.c.l.b16 %v1200
    %v1233 = vunpack.c.l.b16 %v1201
    %v1234 = vunpack.c.l.b16 %v1202
    %v1235 = vpack.c.b16 %v1220, %v1219
    %v1236 = vpack.c.b16 %v1222, %v1221
    %v1237 = vpack.c.b16 %v1224, %v1223
    %v1238 = vpack.c.b16 %v1226, %v1225
    %v1239 = vpack.c.b16 %v1228, %v1227
    %v1240 = vpack.c.b16 %v1230, %v1229
    %v1241 = vpack.c.b16 %v1232, %v1231
    %v1242 = vpack.c.b16 %v1234, %v1233
    %1251 = vmatprep.subr.bf16.mxu0 0
    %1252 = vmatpush1.bf16.msra.mxu0 %v1235
    %1253 = vmatprep.subr.bf16.mxu0 0
    %1254 = vmatpush1.bf16.msra.mxu0 %v1236
    %1255 = vmatprep.subr.bf16.mxu0 0
    %1256 = vmatpush1.bf16.msra.mxu0 %v1237
    %1257 = vmatprep.subr.bf16.mxu0 0
    %1258 = vmatpush1.bf16.msra.mxu0 %v1238
    %1259 = vmatprep.subr.bf16.mxu0 0
    %1260 = vmatpush1.bf16.msra.mxu0 %v1239
    %1261 = vmatprep.subr.bf16.mxu0 0
    %1262 = vmatpush1.bf16.msra.mxu0 %v1240
    %1263 = vmatprep.subr.bf16.mxu0 0
    %1264 = vmatpush1.bf16.msra.mxu0 %v1241
    %1265 = vmatprep.subr.bf16.mxu0 0
    %1266 = vmatpush1.bf16.msra.mxu0 %v1242
    %1267 = vmatprep.subr.bf16.mxu0 0
    %1268 = vmatpush1.bf16.msra.mxu0 0
    %1269 = vmatprep.subr.bf16.mxu0 0
    %1270 = vmatpush1.bf16.msra.mxu0 0
    %1271 = vmatprep.subr.bf16.mxu0 0
    %1272 = vmatpush1.bf16.msra.mxu0 0
    %1273 = vmatprep.subr.bf16.mxu0 0
    %1274 = vmatpush1.bf16.msra.mxu0 0
    %1275 = vmatprep.subr.bf16.mxu0 0
    %1276 = vmatpush1.bf16.msra.mxu0 0
    %1277 = vmatprep.subr.bf16.mxu0 0
    %1278 = vmatpush1.bf16.msra.mxu0 0
    %1279 = vmatprep.subr.bf16.mxu0 0
    %1280 = vmatpush1.bf16.msra.mxu0 0
    %1281 = vmatprep.subr.bf16.mxu0 0
    %1282 = vmatpush1.bf16.msra.mxu0 0
    %1283 = vmatprep.mubr.bf16.mxu0 0
    %1284 = vmatmul.mubr.bf16.gmra.mrb[0].mxu0 0
    %v1285 = vpop.f32.mrb[0].mxu0
    %v1286 = vadd.f32 %v515, %v1285
    %v1287 = vpop.f32.mrb[0].mxu0
    %v1288 = vpop.f32.mrb[0].mxu0
    %v1289 = vpop.f32.mrb[0].mxu0
    %1290 = vdwg.mxu0
    %v1291 = vxor.u32 %v1141, 2147483648
    %v1292 = vmul.f32 %v1291, 1.442695
    %v1293 = vpow.pop %v1292
    %v1294 = vadd.f32 %v1293, 1.0
    %v1295 = vrcp.pop %v1294
    %v1296 = vmul.f32 1.0, %v1295
    %v1297 = vxor.u32 %v1143, 2147483648
    %v1298 = vmul.f32 %v1297, 1.442695
    %v1299 = vpow.pop %v1298
    %v1300 = vadd.f32 %v1299, 1.0
    %v1301 = vrcp.pop %v1300
    %v1302 = vmul.f32 1.0, %v1301
    %v1303 = vsub.f32 %v1182, %v1286
    %v1304 = vmul.f32 %v1296, %v1286
    %v1305 = vadd.f32 %v1303, %v1304
    %v1306 = vtanh.pop %v1305
    %v1307 = vsub.f32 1.0, %v1302
    %v1308 = vmul.f32 %v1307, %v1306
    %v1309 = vmul.f32 %v1302, 0.0
    %v1310 = vadd.f32 %v1308, %v1309
    %v1311 = vsel %vm520, %v1310, 0.0
    %v1312 = vld [vmem:[#allocation2 + $0x18] sm:$0xff]
    %v1313 = vld [vmem:[#allocation2 + $0x20] sm:$0xff]
    %v1314 = vld [vmem:[#allocation2 + $0x28] sm:$0xff]
    %v1315 = vld [vmem:[%s0 + $0x8] sm:$0xff]
    %vm1316 = vcmp.ne.s32.totalorder %v1315, 0
    %1317 = vmatprep.subr.bf16.mxu0 %v634
    %1318 = vmatpush1.bf16.msra.mxu0 %v633
    %1319 = vmatprep.subr.bf16.mxu0 %v637
    %1320 = vmatpush1.bf16.msra.mxu0 %v636
    %1321 = vmatprep.subr.bf16.mxu0 %v640
    %1322 = vmatpush1.bf16.msra.mxu0 %v639
    %1323 = vmatprep.subr.bf16.mxu0 %v643
    %1324 = vmatpush1.bf16.msra.mxu0 %v642
    %1325 = vmatprep.subr.bf16.mxu0 %v646
    %1326 = vmatpush1.bf16.msra.mxu0 %v645
    %1327 = vmatprep.subr.bf16.mxu0 %v649
    %1328 = vmatpush1.bf16.msra.mxu0 %v648
    %1329 = vmatprep.subr.bf16.mxu0 %v652
    %1330 = vmatpush1.bf16.msra.mxu0 %v651
    %1331 = vmatprep.subr.bf16.mxu0 %v655
    %1332 = vmatpush1.bf16.msra.mxu0 %v654
    %1333 = vmatprep.subr.bf16.mxu0 0
    %1334 = vmatpush1.bf16.msra.mxu0 0
    %1335 = vmatprep.subr.bf16.mxu0 0
    %1336 = vmatpush1.bf16.msra.mxu0 0
    %1337 = vmatprep.subr.bf16.mxu0 0
    %1338 = vmatpush1.bf16.msra.mxu0 0
    %1339 = vmatprep.subr.bf16.mxu0 0
    %1340 = vmatpush1.bf16.msra.mxu0 0
    %1341 = vmatprep.subr.bf16.mxu0 0
    %1342 = vmatpush1.bf16.msra.mxu0 0
    %1343 = vmatprep.subr.bf16.mxu0 0
    %1344 = vmatpush1.bf16.msra.mxu0 0
    %1345 = vmatprep.subr.bf16.mxu0 0
    %1346 = vmatpush1.bf16.msra.mxu0 0
    %1347 = vmatprep.subr.bf16.mxu0 0
    %1348 = vmatpush1.bf16.msra.mxu0 0
    %1349 = vmatprep.mubr.bf16.mxu0 0
    %1350 = vmatmul.mubr.bf16.gmra.mrb[0].mxu0 %v848
    %v1351 = vpop.f32.mrb[0].mxu0
    %v1352 = vadd.f32 %v509, %v1351
    %v1353 = vpop.f32.mrb[0].mxu0
    %v1354 = vadd.f32 %v510, %v1353
    %v1355 = vpop.f32.mrb[0].mxu0
    %v1356 = vpop.f32.mrb[0].mxu0
    %1357 = vdwg.mxu0
    %1358 = vmatprep.subr.bf16.mxu0 0
    %1359 = vmatpush1.bf16.msra.mxu0 %v635
    %1360 = vmatprep.subr.bf16.mxu0 0
    %1361 = vmatpush1.bf16.msra.mxu0 %v638
    %1362 = vmatprep.subr.bf16.mxu0 0
    %1363 = vmatpush1.bf16.msra.mxu0 %v641
    %1364 = vmatprep.subr.bf16.mxu0 0
    %1365 = vmatpush1.bf16.msra.mxu0 %v644
    %1366 = vmatprep.subr.bf16.mxu0 0
    %1367 = vmatpush1.bf16.msra.mxu0 %v647
    %1368 = vmatprep.subr.bf16.mxu0 0
    %1369 = vmatpush1.bf16.msra.mxu0 %v650
    %1370 = vmatprep.subr.bf16.mxu0 0
    %1371 = vmatpush1.bf16.msra.mxu0 %v653
    %1372 = vmatprep.subr.bf16.mxu0 0
    %1373 = vmatpush1.bf16.msra.mxu0 %v656
    %1374 = vmatprep.subr.bf16.mxu0 0
    %1375 = vmatpush1.bf16.msra.mxu0 0
    %1376 = vmatprep.subr.bf16.mxu0 0
    %1377 = vmatpush1.bf16.msra.mxu0 0
    %1378 = vmatprep.subr.bf16.mxu0 0
    %1379 = vmatpush1.bf16.msra.mxu0 0
    %1380 = vmatprep.subr.bf16.mxu0 0
    %1381 = vmatpush1.bf16.msra.mxu0 0
    %1382 = vmatprep.subr.bf16.mxu0 0
    %1383 = vmatpush1.bf16.msra.mxu0 0
    %1384 = vmatprep.subr.bf16.mxu0 0
    %1385 = vmatpush1.bf16.msra.mxu0 0
    %1386 = vmatprep.subr.bf16.mxu0 0
    %1387 = vmatpush1.bf16.msra.mxu0 0
    %1388 = vmatprep.subr.bf16.mxu0 0
    %1389 = vmatpush1.bf16.msra.mxu0 0
    %1390 = vmatprep.mubr.bf16.mxu0 0
    %1391 = vmatmul.mubr.bf16.gmra.mrb[0].mxu0 %v848
    %v1392 = vpop.f32.mrb[0].mxu0
    %v1393 = vadd.f32 %v511, %v1392
    %v1394 = vpop.f32.mrb[0].mxu0
    %v1395 = vpop.f32.mrb[0].mxu0
    %v1396 = vpop.f32.mrb[0].mxu0
    %1397 = vdwg.mxu0
    %v1398 = vadd.f32 %v1312, %v1352
    %v1399 = vxor.u32 %v1398, 2147483648
    %v1400 = vmul.f32 %v1399, 1.442695
    %v1401 = vpow.pop %v1400
    %v1402 = vadd.f32 %v1401, 1.0
    %v1403 = vrcp.pop %v1402
    %v1404 = vmul.f32 1.0, %v1403
    %v1405 = vadd.f32 %v1313, %v1354
    %v1406 = vxor.u32 %v1405, 2147483648
    %v1407 = vmul.f32 %v1406, 1.442695
    %v1408 = vpow.pop %v1407
    %v1409 = vadd.f32 %v1408, 1.0
    %v1410 = vrcp.pop %v1409
    %v1411 = vmul.f32 1.0, %v1410
    %v1412 = vmul.f32 %v1404, %v1393
    %v1413 = vadd.f32 %v1314, %v1412
    %v1414 = vtanh.pop %v1413
    %v1415 = vsub.f32 1.0, %v1411
    %v1416 = vmul.f32 %v1415, %v1414
    %v1417 = vmul.f32 %v1411, %v783
    %v1418 = vadd.f32 %v1416, %v1417
    %v1419 = vsel %vm1316, %v1418, %v783
    %v1420 = vpack.c.bf16 %v1419, %v1419
    %v1421 = vpack.c.bf16 %v1311, %v1311
    %1422 = vmatprep.subr.bf16.mxu0 %v1011
    %1423 = vmatpush1.bf16.msra.mxu0 %v1010
    %1424 = vmatprep.subr.bf16.mxu0 %v1014
    %1425 = vmatpush1.bf16.msra.mxu0 %v1013
    %1426 = vmatprep.subr.bf16.mxu0 %v1017
    %1427 = vmatpush1.bf16.msra.mxu0 %v1016
    %1428 = vmatprep.subr.bf16.mxu0 %v1020
    %1429 = vmatpush1.bf16.msra.mxu0 %v1019
    %1430 = vmatprep.subr.bf16.mxu0 %v1023
    %1431 = vmatpush1.bf16.msra.mxu0 %v1022
    %1432 = vmatprep.subr.bf16.mxu0 %v1026
    %1433 = vmatpush1.bf16.msra.mxu0 %v1025
    %1434 = vmatprep.subr.bf16.mxu0 %v1029
    %1435 = vmatpush1.bf16.msra.mxu0 %v1028
    %1436 = vmatprep.subr.bf16.mxu0 %v1032
    %1437 = vmatpush1.bf16.msra.mxu0 %v1031
    %1438 = vmatprep.subr.bf16.mxu0 %v1035
    %1439 = vmatpush1.bf16.msra.mxu0 %v1034
    %1440 = vmatprep.subr.bf16.mxu0 %v1038
    %1441 = vmatpush1.bf16.msra.mxu0 %v1037
    %1442 = vmatprep.subr.bf16.mxu0 %v1041
    %1443 = vmatpush1.bf16.msra.mxu0 %v1040
    %1444 = vmatprep.subr.bf16.mxu0 %v1044
    %1445 = vmatpush1.bf16.msra.mxu0 %v1043
    %1446 = vmatprep.subr.bf16.mxu0 %v1047
    %1447 = vmatpush1.bf16.msra.mxu0 %v1046
    %1448 = vmatprep.subr.bf16.mxu0 %v1050
    %1449 = vmatpush1.bf16.msra.mxu0 %v1049
    %1450 = vmatprep.subr.bf16.mxu0 %v1053
    %1451 = vmatpush1.bf16.msra.mxu0 %v1052
    %1452 = vmatprep.subr.bf16.mxu0 %v1056
    %1453 = vmatpush1.bf16.msra.mxu0 %v1055
    %1454 = vmatprep.mubr.bf16.mxu0 %v1421
    %1455 = vmatmul.mubr.bf16.gmra.mrb[0].mxu0 %v1420
    %v1456 = vpop.f32.mrb[0].mxu0
    %v1457 = vadd.f32 %v512, %v1456
    %v1458 = vpop.f32.mrb[0].mxu0
    %v1459 = vadd.f32 %v513, %v1458
    %v1460 = vpop.f32.mrb[0].mxu0
    %v1461 = vpop.f32.mrb[0].mxu0
    %1462 = vdwg.mxu0
    %1463 = vmatprep.subr.bf16.mxu0 0
    %1464 = vmatpush1.bf16.msra.mxu0 %v1012
    %1465 = vmatprep.subr.bf16.mxu0 0
    %1466 = vmatpush1.bf16.msra.mxu0 %v1015
    %1467 = vmatprep.subr.bf16.mxu0 0
    %1468 = vmatpush1.bf16.msra.mxu0 %v1018
    %1469 = vmatprep.subr.bf16.mxu0 0
    %1470 = vmatpush1.bf16.msra.mxu0 %v1021
    %1471 = vmatprep.subr.bf16.mxu0 0
    %1472 = vmatpush1.bf16.msra.mxu0 %v1024
    %1473 = vmatprep.subr.bf16.mxu0 0
    %1474 = vmatpush1.bf16.msra.mxu0 %v1027
    %1475 = vmatprep.subr.bf16.mxu0 0
    %1476 = vmatpush1.bf16.msra.mxu0 %v1030
    %1477 = vmatprep.subr.bf16.mxu0 0
    %1478 = vmatpush1.bf16.msra.mxu0 %v1033
    %1479 = vmatprep.subr.bf16.mxu0 0
    %1480 = vmatpush1.bf16.msra.mxu0 %v1036
    %1481 = vmatprep.subr.bf16.mxu0 0
    %1482 = vmatpush1.bf16.msra.mxu0 %v1039
    %1483 = vmatprep.subr.bf16.mxu0 0
    %1484 = vmatpush1.bf16.msra.mxu0 %v1042
    %1485 = vmatprep.subr.bf16.mxu0 0
    %1486 = vmatpush1.bf16.msra.mxu0 %v1045
    %1487 = vmatprep.subr.bf16.mxu0 0
    %1488 = vmatpush1.bf16.msra.mxu0 %v1048
    %1489 = vmatprep.subr.bf16.mxu0 0
    %1490 = vmatpush1.bf16.msra.mxu0 %v1051
    %1491 = vmatprep.subr.bf16.mxu0 0
    %1492 = vmatpush1.bf16.msra.mxu0 %v1054
    %1493 = vmatprep.subr.bf16.mxu0 0
    %1494 = vmatpush1.bf16.msra.mxu0 %v1057
    %1495 = vmatprep.mubr.bf16.mxu0 %v1421
    %1496 = vmatmul.mubr.bf16.gmra.mrb[0].mxu0 %v1420
    %v1497 = vpop.f32.mrb[0].mxu0
    %v1498 = vadd.f32 %v514, %v1497
    %v1499 = vpop.f32.mrb[0].mxu0
    %v1500 = vpop.f32.mrb[0].mxu0
    %v1501 = vpop.f32.mrb[0].mxu0
    %1502 = vdwg.mxu0
    %1503 = vmatprep.subr.bf16.mxu0 0
    %1504 = vmatpush1.bf16.msra.mxu0 %v1235
    %1505 = vmatprep.subr.bf16.mxu0 0
    %1506 = vmatpush1.bf16.msra.mxu0 %v1236
    %1507 = vmatprep.subr.bf16.mxu0 0
    %1508 = vmatpush1.bf16.msra.mxu0 %v1237
    %1509 = vmatprep.subr.bf16.mxu0 0
    %1510 = vmatpush1.bf16.msra.mxu0 %v1238
    %1511 = vmatprep.subr.bf16.mxu0 0
    %1512 = vmatpush1.bf16.msra.mxu0 %v1239
    %1513 = vmatprep.subr.bf16.mxu0 0
    %1514 = vmatpush1.bf16.msra.mxu0 %v1240
    %1515 = vmatprep.subr.bf16.mxu0 0
    %1516 = vmatpush1.bf16.msra.mxu0 %v1241
    %1517 = vmatprep.subr.bf16.mxu0 0
    %1518 = vmatpush1.bf16.msra.mxu0 %v1242
    %1519 = vmatprep.subr.bf16.mxu0 0
    %1520 = vmatpush1.bf16.msra.mxu0 0
    %1521 = vmatprep.subr.bf16.mxu0 0
    %1522 = vmatpush1.bf16.msra.mxu0 0
    %1523 = vmatprep.subr.bf16.mxu0 0
    %1524 = vmatpush1.bf16.msra.mxu0 0
    %1525 = vmatprep.subr.bf16.mxu0 0
    %1526 = vmatpush1.bf16.msra.mxu0 0
    %1527 = vmatprep.subr.bf16.mxu0 0
    %1528 = vmatpush1.bf16.msra.mxu0 0
    %1529 = vmatprep.subr.bf16.mxu0 0
    %1530 = vmatpush1.bf16.msra.mxu0 0
    %1531 = vmatprep.subr.bf16.mxu0 0
    %1532 = vmatpush1.bf16.msra.mxu0 0
    %1533 = vmatprep.subr.bf16.mxu0 0
    %1534 = vmatpush1.bf16.msra.mxu0 0
    %1535 = vmatprep.mubr.bf16.mxu0 0
    %1536 = vmatmul.mubr.bf16.gmra.mrb[0].mxu0 %v1421
    %v1537 = vpop.f32.mrb[0].mxu0
    %v1538 = vadd.f32 %v515, %v1537
    %v1539 = vpop.f32.mrb[0].mxu0
    %v1540 = vpop.f32.mrb[0].mxu0
    %v1541 = vpop.f32.mrb[0].mxu0
    %1542 = vdwg.mxu0
    %v1543 = vxor.u32 %v1457, 2147483648
    %v1544 = vmul.f32 %v1543, 1.442695
    %v1545 = vpow.pop %v1544
    %v1546 = vadd.f32 %v1545, 1.0
    %v1547 = vrcp.pop %v1546
    %v1548 = vmul.f32 1.0, %v1547
    %v1549 = vxor.u32 %v1459, 2147483648
    %v1550 = vmul.f32 %v1549, 1.442695
    %v1551 = vpow.pop %v1550
    %v1552 = vadd.f32 %v1551, 1.0
    %v1553 = vrcp.pop %v1552
    %v1554 = vmul.f32 1.0, %v1553
    %v1555 = vsub.f32 %v1498, %v1538
    %v1556 = vmul.f32 %v1548, %v1538
    %v1557 = vadd.f32 %v1555, %v1556
    %v1558 = vtanh.pop %v1557
    %v1559 = vsub.f32 1.0, %v1554
    %v1560 = vmul.f32 %v1559, %v1558
    %v1561 = vmul.f32 %v1554, %v1311
    %v1562 = vadd.f32 %v1560, %v1561
    %v1563 = vsel %vm1316, %v1562, %v1311
    %v1564 = vld [vmem:[#allocation2 + $0x30] sm:$0xff]
    %v1565 = vld [vmem:[#allocation2 + $0x38] sm:$0xff]
    %v1566 = vld [vmem:[#allocation2 + $0x40] sm:$0xff]
    %v1567 = vld [vmem:[%s0 + $0x10] sm:$0xff]
    %vm1568 = vcmp.ne.s32.totalorder %v1567, 0
    %1569 = vmatprep.subr.bf16.mxu0 %v634
    %1570 = vmatpush1.bf16.msra.mxu0 %v633
    %1571 = vmatprep.subr.bf16.mxu0 %v637
    %1572 = vmatpush1.bf16.msra.mxu0 %v636
    %1573 = vmatprep.subr.bf16.mxu0 %v640
    %1574 = vmatpush1.bf16.msra.mxu0 %v639
    %1575 = vmatprep.subr.bf16.mxu0 %v643
    %1576 = vmatpush1.bf16.msra.mxu0 %v642
    %1577 = vmatprep.subr.bf16.mxu0 %v646
    %1578 = vmatpush1.bf16.msra.mxu0 %v645
    %1579 = vmatprep.subr.bf16.mxu0 %v649
    %1580 = vmatpush1.bf16.msra.mxu0 %v648
    %1581 = vmatprep.subr.bf16.mxu0 %v652
    %1582 = vmatpush1.bf16.msra.mxu0 %v651
    %1583 = vmatprep.subr.bf16.mxu0 %v655
    %1584 = vmatpush1.bf16.msra.mxu0 %v654
    %1585 = vmatprep.subr.bf16.mxu0 0
    %1586 = vmatpush1.bf16.msra.mxu0 0
    %1587 = vmatprep.subr.bf16.mxu0 0
    %1588 = vmatpush1.bf16.msra.mxu0 0
    %1589 = vmatprep.subr.bf16.mxu0 0
    %1590 = vmatpush1.bf16.msra.mxu0 0
    %1591 = vmatprep.subr.bf16.mxu0 0
    %1592 = vmatpush1.bf16.msra.mxu0 0
    %1593 = vmatprep.subr.bf16.mxu0 0
    %1594 = vmatpush1.bf16.msra.mxu0 0
    %1595 = vmatprep.subr.bf16.mxu0 0
    %1596 = vmatpush1.bf16.msra.mxu0 0
    %1597 = vmatprep.subr.bf16.mxu0 0
    %1598 = vmatpush1.bf16.msra.mxu0 0
    %1599 = vmatprep.subr.bf16.mxu0 0
    %1600 = vmatpush1.bf16.msra.mxu0 0
    %1601 = vmatprep.mubr.bf16.mxu0 0
    %1602 = vmatmul.mubr.bf16.gmra.mrb[0].mxu0 %v1420
    %v1603 = vpop.f32.mrb[0].mxu0
    %v1604 = vadd.f32 %v509, %v1603
    %v1605 = vpop.f32.mrb[0].mxu0
    %v1606 = vadd.f32 %v510, %v1605
    %v1607 = vpop.f32.mrb[0].mxu0
    %v1608 = vpop.f32.mrb[0].mxu0
    %1609 = vdwg.mxu0
    %1610 = vmatprep.subr.bf16.mxu0 0
    %1611 = vmatpush1.bf16.msra.mxu0 %v635
    %1612 = vmatprep.subr.bf16.mxu0 0
    %1613 = vmatpush1.bf16.msra.mxu0 %v638
    %1614 = vmatprep.subr.bf16.mxu0 0
    %1615 = vmatpush1.bf16.msra.mxu0 %v641
    %1616 = vmatprep.subr.bf16.mxu0 0
    %1617 = vmatpush1.bf16.msra.mxu0 %v644
    %1618 = vmatprep.subr.bf16.mxu0 0
    %1619 = vmatpush1.bf16.msra.mxu0 %v647
    %1620 = vmatprep.subr.bf16.mxu0 0
    %1621 = vmatpush1.bf16.msra.mxu0 %v650
    %1622 = vmatprep.subr.bf16.mxu0 0
    %1623 = vmatpush1.bf16.msra.mxu0 %v653
    %1624 = vmatprep.subr.bf16.mxu0 0
    %1625 = vmatpush1.bf16.msra.mxu0 %v656
    %1626 = vmatprep.subr.bf16.mxu0 0
    %1627 = vmatpush1.bf16.msra.mxu0 0
    %1628 = vmatprep.subr.bf16.mxu0 0
    %1629 = vmatpush1.bf16.msra.mxu0 0
    %1630 = vmatprep.subr.bf16.mxu0 0
    %1631 = vmatpush1.bf16.msra.mxu0 0
    %1632 = vmatprep.subr.bf16.mxu0 0
    %1633 = vmatpush1.bf16.msra.mxu0 0
    %1634 = vmatprep.subr.bf16.mxu0 0
    %1635 = vmatpush1.bf16.msra.mxu0 0
    %1636 = vmatprep.subr.bf16.mxu0 0
    %1637 = vmatpush1.bf16.msra.mxu0 0
    %1638 = vmatprep.subr.bf16.mxu0 0
    %1639 = vmatpush1.bf16.msra.mxu0 0
    %1640 = vmatprep.subr.bf16.mxu0 0
    %1641 = vmatpush1.bf16.msra.mxu0 0
    %1642 = vmatprep.mubr.bf16.mxu0 0
    %1643 = vmatmul.mubr.bf16.gmra.mrb[0].mxu0 %v1420
    %v1644 = vpop.f32.mrb[0].mxu0
    %v1645 = vadd.f32 %v511, %v1644
    %v1646 = vpop.f32.mrb[0].mxu0
    %v1647 = vpop.f32.mrb[0].mxu0
    %v1648 = vpop.f32.mrb[0].mxu0
    %1649 = vdwg.mxu0
    %v1650 = vadd.f32 %v1564, %v1604
    %v1651 = vxor.u32 %v1650, 2147483648
    %v1652 = vmul.f32 %v1651, 1.442695
    %v1653 = vpow.pop %v1652
    %v1654 = vadd.f32 %v1653, 1.0
    %v1655 = vrcp.pop %v1654
    %v1656 = vmul.f32 1.0, %v1655
    %v1657 = vadd.f32 %v1565, %v1606
    %v1658 = vxor.u32 %v1657, 2147483648
    %v1659 = vmul.f32 %v1658, 1.442695
    %v1660 = vpow.pop %v1659
    %v1661 = vadd.f32 %v1660, 1.0
    %v1662 = vrcp.pop %v1661
    %v1663 = vmul.f32 1.0, %v1662
    %v1664 = vmul.f32 %v1656, %v1645
    %v1665 = vadd.f32 %v1566, %v1664
    %v1666 = vtanh.pop %v1665
    %v1667 = vsub.f32 1.0, %v1663
    %v1668 = vmul.f32 %v1667, %v1666
    %v1669 = vmul.f32 %v1663, %v1419
    %v1670 = vadd.f32 %v1668, %v1669
    %v1671 = vsel %vm1568, %v1670, %v1419
    %v1672 = vpack.c.bf16 %v1671, %v1671
    %v1673 = vpack.c.bf16 %v1563, %v1563
    %1674 = vmatprep.subr.bf16.mxu0 %v1011
    %1675 = vmatpush1.bf16.msra.mxu0 %v1010
    %1676 = vmatprep.subr.bf16.mxu0 %v1014
    %1677 = vmatpush1.bf16.msra.mxu0 %v1013
    %1678 = vmatprep.subr.bf16.mxu0 %v1017
    %1679 = vmatpush1.bf16.msra.mxu0 %v1016
    %1680 = vmatprep.subr.bf16.mxu0 %v1020
    %1681 = vmatpush1.bf16.msra.mxu0 %v1019
    %1682 = vmatprep.subr.bf16.mxu0 %v1023
    %1683 = vmatpush1.bf16.msra.mxu0 %v1022
    %1684 = vmatprep.subr.bf16.mxu0 %v1026
    %1685 = vmatpush1.bf16.msra.mxu0 %v1025
    %1686 = vmatprep.subr.bf16.mxu0 %v1029
    %1687 = vmatpush1.bf16.msra.mxu0 %v1028
    %1688 = vmatprep.subr.bf16.mxu0 %v1032
    %1689 = vmatpush1.bf16.msra.mxu0 %v1031
    %1690 = vmatprep.subr.bf16.mxu0 %v1035
    %1691 = vmatpush1.bf16.msra.mxu0 %v1034
    %1692 = vmatprep.subr.bf16.mxu0 %v1038
    %1693 = vmatpush1.bf16.msra.mxu0 %v1037
    %1694 = vmatprep.subr.bf16.mxu0 %v1041
    %1695 = vmatpush1.bf16.msra.mxu0 %v1040
    %1696 = vmatprep.subr.bf16.mxu0 %v1044
    %1697 = vmatpush1.bf16.msra.mxu0 %v1043
    %1698 = vmatprep.subr.bf16.mxu0 %v1047
    %1699 = vmatpush1.bf16.msra.mxu0 %v1046
    %1700 = vmatprep.subr.bf16.mxu0 %v1050
    %1701 = vmatpush1.bf16.msra.mxu0 %v1049
    %1702 = vmatprep.subr.bf16.mxu0 %v1053
    %1703 = vmatpush1.bf16.msra.mxu0 %v1052
    %1704 = vmatprep.subr.bf16.mxu0 %v1056
    %1705 = vmatpush1.bf16.msra.mxu0 %v1055
    %1706 = vmatprep.mubr.bf16.mxu0 %v1673
    %1707 = vmatmul.mubr.bf16.gmra.mrb[0].mxu0 %v1672
    %v1708 = vpop.f32.mrb[0].mxu0
    %v1709 = vadd.f32 %v512, %v1708
    %v1710 = vpop.f32.mrb[0].mxu0
    %v1711 = vadd.f32 %v513, %v1710
    %v1712 = vpop.f32.mrb[0].mxu0
    %v1713 = vpop.f32.mrb[0].mxu0
    %1714 = vdwg.mxu0
    %1715 = vmatprep.subr.bf16.mxu0 0
    %1716 = vmatpush1.bf16.msra.mxu0 %v1012
    %1717 = vmatprep.subr.bf16.mxu0 0
    %1718 = vmatpush1.bf16.msra.mxu0 %v1015
    %1719 = vmatprep.subr.bf16.mxu0 0
    %1720 = vmatpush1.bf16.msra.mxu0 %v1018
    %1721 = vmatprep.subr.bf16.mxu0 0
    %1722 = vmatpush1.bf16.msra.mxu0 %v1021
    %1723 = vmatprep.subr.bf16.mxu0 0
    %1724 = vmatpush1.bf16.msra.mxu0 %v1024
    %1725 = vmatprep.subr.bf16.mxu0 0
    %1726 = vmatpush1.bf16.msra.mxu0 %v1027
    %1727 = vmatprep.subr.bf16.mxu0 0
    %1728 = vmatpush1.bf16.msra.mxu0 %v1030
    %1729 = vmatprep.subr.bf16.mxu0 0
    %1730 = vmatpush1.bf16.msra.mxu0 %v1033
    %1731 = vmatprep.subr.bf16.mxu0 0
    %1732 = vmatpush1.bf16.msra.mxu0 %v1036
    %1733 = vmatprep.subr.bf16.mxu0 0
    %1734 = vmatpush1.bf16.msra.mxu0 %v1039
    %1735 = vmatprep.subr.bf16.mxu0 0
    %1736 = vmatpush1.bf16.msra.mxu0 %v1042
    %1737 = vmatprep.subr.bf16.mxu0 0
    %1738 = vmatpush1.bf16.msra.mxu0 %v1045
    %1739 = vmatprep.subr.bf16.mxu0 0
    %1740 = vmatpush1.bf16.msra.mxu0 %v1048
    %1741 = vmatprep.subr.bf16.mxu0 0
    %1742 = vmatpush1.bf16.msra.mxu0 %v1051
    %1743 = vmatprep.subr.bf16.mxu0 0
    %1744 = vmatpush1.bf16.msra.mxu0 %v1054
    %1745 = vmatprep.subr.bf16.mxu0 0
    %1746 = vmatpush1.bf16.msra.mxu0 %v1057
    %1747 = vmatprep.mubr.bf16.mxu0 %v1673
    %1748 = vmatmul.mubr.bf16.gmra.mrb[0].mxu0 %v1672
    %v1749 = vpop.f32.mrb[0].mxu0
    %v1750 = vadd.f32 %v514, %v1749
    %v1751 = vpop.f32.mrb[0].mxu0
    %v1752 = vpop.f32.mrb[0].mxu0
    %v1753 = vpop.f32.mrb[0].mxu0
    %1754 = vdwg.mxu0
    %1755 = vmatprep.subr.bf16.mxu0 0
    %1756 = vmatpush1.bf16.msra.mxu0 %v1235
    %1757 = vmatprep.subr.bf16.mxu0 0
    %1758 = vmatpush1.bf16.msra.mxu0 %v1236
    %1759 = vmatprep.subr.bf16.mxu0 0
    %1760 = vmatpush1.bf16.msra.mxu0 %v1237
    %1761 = vmatprep.subr.bf16.mxu0 0
    %1762 = vmatpush1.bf16.msra.mxu0 %v1238
    %1763 = vmatprep.subr.bf16.mxu0 0
    %1764 = vmatpush1.bf16.msra.mxu0 %v1239
    %1765 = vmatprep.subr.bf16.mxu0 0
    %1766 = vmatpush1.bf16.msra.mxu0 %v1240
    %1767 = vmatprep.subr.bf16.mxu0 0
    %1768 = vmatpush1.bf16.msra.mxu0 %v1241
    %1769 = vmatprep.subr.bf16.mxu0 0
    %1770 = vmatpush1.bf16.msra.mxu0 %v1242
    %1771 = vmatprep.subr.bf16.mxu0 0
    %1772 = vmatpush1.bf16.msra.mxu0 0
    %1773 = vmatprep.subr.bf16.mxu0 0
    %1774 = vmatpush1.bf16.msra.mxu0 0
    %1775 = vmatprep.subr.bf16.mxu0 0
    %1776 = vmatpush1.bf16.msra.mxu0 0
    %1777 = vmatprep.subr.bf16.mxu0 0
    %1778 = vmatpush1.bf16.msra.mxu0 0
    %1779 = vmatprep.subr.bf16.mxu0 0
    %1780 = vmatpush1.bf16.msra.mxu0 0
    %1781 = vmatprep.subr.bf16.mxu0 0
    %1782 = vmatpush1.bf16.msra.mxu0 0
    %1783 = vmatprep.subr.bf16.mxu0 0
    %1784 = vmatpush1.bf16.msra.mxu0 0
    %1785 = vmatprep.subr.bf16.mxu0 0
    %1786 = vmatpush1.bf16.msra.mxu0 0
    %1787 = vmatprep.mubr.bf16.mxu0 0
    %1788 = vmatmul.mubr.bf16.gmra.mrb[0].mxu0 %v1673
    %v1789 = vpop.f32.mrb[0].mxu0
    %v1790 = vadd.f32 %v515, %v1789
    %v1791 = vpop.f32.mrb[0].mxu0
    %v1792 = vpop.f32.mrb[0].mxu0
    %v1793 = vpop.f32.mrb[0].mxu0
    %1794 = vdwg.mxu0
    %v1795 = vxor.u32 %v1709, 2147483648
    %v1796 = vmul.f32 %v1795, 1.442695
    %v1797 = vpow.pop %v1796
    %v1798 = vadd.f32 %v1797, 1.0
    %v1799 = vrcp.pop %v1798
    %v1800 = vmul.f32 1.0, %v1799
    %v1801 = vxor.u32 %v1711, 2147483648
    %v1802 = vmul.f32 %v1801, 1.442695
    %v1803 = vpow.pop %v1802
    %v1804 = vadd.f32 %v1803, 1.0
    %v1805 = vrcp.pop %v1804
    %v1806 = vmul.f32 1.0, %v1805
    %v1807 = vsub.f32 %v1750, %v1790
    %v1808 = vmul.f32 %v1800, %v1790
    %v1809 = vadd.f32 %v1807, %v1808
    %v1810 = vtanh.pop %v1809
    %v1811 = vsub.f32 1.0, %v1806
    %v1812 = vmul.f32 %v1811, %v1810
    %v1813 = vmul.f32 %v1806, %v1563
    %v1814 = vadd.f32 %v1812, %v1813
    %v1815 = vsel %vm1568, %v1814, %v1563
    %v1816 = vld [vmem:[#allocation2 + $0x48] sm:$0xff]
    %v1817 = vld [vmem:[#allocation2 + $0x50] sm:$0xff]
    %v1818 = vld [vmem:[#allocation2 + $0x58] sm:$0xff]
    %v1819 = vld [vmem:[%s0 + $0x18] sm:$0xff]
    %vm1820 = vcmp.ne.s32.totalorder %v1819, 0
    %1821 = vmatprep.subr.bf16.mxu0 %v634
    %1822 = vmatpush1.bf16.msra.mxu0 %v633
    %1823 = vmatprep.subr.bf16.mxu0 %v637
    %1824 = vmatpush1.bf16.msra.mxu0 %v636
    %1825 = vmatprep.subr.bf16.mxu0 %v640
    %1826 = vmatpush1.bf16.msra.mxu0 %v639
    %1827 = vmatprep.subr.bf16.mxu0 %v643
    %1828 = vmatpush1.bf16.msra.mxu0 %v642
    %1829 = vmatprep.subr.bf16.mxu0 %v646
    %1830 = vmatpush1.bf16.msra.mxu0 %v645
    %1831 = vmatprep.subr.bf16.mxu0 %v649
    %1832 = vmatpush1.bf16.msra.mxu0 %v648
    %1833 = vmatprep.subr.bf16.mxu0 %v652
    %1834 = vmatpush1.bf16.msra.mxu0 %v651
    %1835 = vmatprep.subr.bf16.mxu0 %v655
    %1836 = vmatpush1.bf16.msra.mxu0 %v654
    %1837 = vmatprep.subr.bf16.mxu0 0
    %1838 = vmatpush1.bf16.msra.mxu0 0
    %1839 = vmatprep.subr.bf16.mxu0 0
    %1840 = vmatpush1.bf16.msra.mxu0 0
    %1841 = vmatprep.subr.bf16.mxu0 0
    %1842 = vmatpush1.bf16.msra.mxu0 0
    %1843 = vmatprep.subr.bf16.mxu0 0
    %1844 = vmatpush1.bf16.msra.mxu0 0
    %1845 = vmatprep.subr.bf16.mxu0 0
    %1846 = vmatpush1.bf16.msra.mxu0 0
    %1847 = vmatprep.subr.bf16.mxu0 0
    %1848 = vmatpush1.bf16.msra.mxu0 0
    %1849 = vmatprep.subr.bf16.mxu0 0
    %1850 = vmatpush1.bf16.msra.mxu0 0
    %1851 = vmatprep.subr.bf16.mxu0 0
    %1852 = vmatpush1.bf16.msra.mxu0 0
    %1853 = vmatprep.mubr.bf16.mxu0 0
    %1854 = vmatmul.mubr.bf16.gmra.mrb[0].mxu0 %v1672
    %v1855 = vpop.f32.mrb[0].mxu0
    %v1856 = vadd.f32 %v509, %v1855
    %v1857 = vpop.f32.mrb[0].mxu0
    %v1858 = vadd.f32 %v510, %v1857
    %v1859 = vpop.f32.mrb[0].mxu0
    %v1860 = vpop.f32.mrb[0].mxu0
    %1861 = vdwg.mxu0
    %1862 = vmatprep.subr.bf16.mxu0 0
    %1863 = vmatpush1.bf16.msra.mxu0 %v635
    %1864 = vmatprep.subr.bf16.mxu0 0
    %1865 = vmatpush1.bf16.msra.mxu0 %v638
    %1866 = vmatprep.subr.bf16.mxu0 0
    %1867 = vmatpush1.bf16.msra.mxu0 %v641
    %1868 = vmatprep.subr.bf16.mxu0 0
    %1869 = vmatpush1.bf16.msra.mxu0 %v644
    %1870 = vmatprep.subr.bf16.mxu0 0
    %1871 = vmatpush1.bf16.msra.mxu0 %v647
    %1872 = vmatprep.subr.bf16.mxu0 0
    %1873 = vmatpush1.bf16.msra.mxu0 %v650
    %1874 = vmatprep.subr.bf16.mxu0 0
    %1875 = vmatpush1.bf16.msra.mxu0 %v653
    %1876 = vmatprep.subr.bf16.mxu0 0
    %1877 = vmatpush1.bf16.msra.mxu0 %v656
    %1878 = vmatprep.subr.bf16.mxu0 0
    %1879 = vmatpush1.bf16.msra.mxu0 0
    %1880 = vmatprep.subr.bf16.mxu0 0
    %1881 = vmatpush1.bf16.msra.mxu0 0
    %1882 = vmatprep.subr.bf16.mxu0 0
    %1883 = vmatpush1.bf16.msra.mxu0 0
    %1884 = vmatprep.subr.bf16.mxu0 0
    %1885 = vmatpush1.bf16.msra.mxu0 0
    %1886 = vmatprep.subr.bf16.mxu0 0
    %1887 = vmatpush1.bf16.msra.mxu0 0
    %1888 = vmatprep.subr.bf16.mxu0 0
    %1889 = vmatpush1.bf16.msra.mxu0 0
    %1890 = vmatprep.subr.bf16.mxu0 0
    %1891 = vmatpush1.bf16.msra.mxu0 0
    %1892 = vmatprep.subr.bf16.mxu0 0
    %1893 = vmatpush1.bf16.msra.mxu0 0
    %1894 = vmatprep.mubr.bf16.mxu0 0
    %1895 = vmatmul.mubr.bf16.gmra.mrb[0].mxu0 %v1672
    %v1896 = vpop.f32.mrb[0].mxu0
    %v1897 = vadd.f32 %v511, %v1896
    %v1898 = vpop.f32.mrb[0].mxu0
    %v1899 = vpop.f32.mrb[0].mxu0
    %v1900 = vpop.f32.mrb[0].mxu0
    %1901 = vdwg.mxu0
    %v1902 = vadd.f32 %v1816, %v1856
    %v1903 = vxor.u32 %v1902, 2147483648
    %v1904 = vmul.f32 %v1903, 1.442695
    %v1905 = vpow.pop %v1904
    %v1906 = vadd.f32 %v1905, 1.0
    %v1907 = vrcp.pop %v1906
    %v1908 = vmul.f32 1.0, %v1907
    %v1909 = vadd.f32 %v1817, %v1858
    %v1910 = vxor.u32 %v1909, 2147483648
    %v1911 = vmul.f32 %v1910, 1.442695
    %v1912 = vpow.pop %v1911
    %v1913 = vadd.f32 %v1912, 1.0
    %v1914 = vrcp.pop %v1913
    %v1915 = vmul.f32 1.0, %v1914
    %v1916 = vmul.f32 %v1908, %v1897
    %v1917 = vadd.f32 %v1818, %v1916
    %v1918 = vtanh.pop %v1917
    %v1919 = vsub.f32 1.0, %v1915
    %v1920 = vmul.f32 %v1919, %v1918
    %v1921 = vmul.f32 %v1915, %v1671
    %v1922 = vadd.f32 %v1920, %v1921
    %v1923 = vsel %vm1820, %v1922, %v1671
    %v1924 = vpack.c.bf16 %v1923, %v1923
    %v1925 = vpack.c.bf16 %v1815, %v1815
    %1926 = vmatprep.subr.bf16.mxu0 %v1011
    %1927 = vmatpush1.bf16.msra.mxu0 %v1010
    %1928 = vmatprep.subr.bf16.mxu0 %v1014
    %1929 = vmatpush1.bf16.msra.mxu0 %v1013
    %1930 = vmatprep.subr.bf16.mxu0 %v1017
    %1931 = vmatpush1.bf16.msra.mxu0 %v1016
    %1932 = vmatprep.subr.bf16.mxu0 %v1020
    %1933 = vmatpush1.bf16.msra.mxu0 %v1019
    %1934 = vmatprep.subr.bf16.mxu0 %v1023
    %1935 = vmatpush1.bf16.msra.mxu0 %v1022
    %1936 = vmatprep.subr.bf16.mxu0 %v1026
    %1937 = vmatpush1.bf16.msra.mxu0 %v1025
    %1938 = vmatprep.subr.bf16.mxu0 %v1029
    %1939 = vmatpush1.bf16.msra.mxu0 %v1028
    %1940 = vmatprep.subr.bf16.mxu0 %v1032
    %1941 = vmatpush1.bf16.msra.mxu0 %v1031
    %1942 = vmatprep.subr.bf16.mxu0 %v1035
    %1943 = vmatpush1.bf16.msra.mxu0 %v1034
    %1944 = vmatprep.subr.bf16.mxu0 %v1038
    %1945 = vmatpush1.bf16.msra.mxu0 %v1037
    %1946 = vmatprep.subr.bf16.mxu0 %v1041
    %1947 = vmatpush1.bf16.msra.mxu0 %v1040
    %1948 = vmatprep.subr.bf16.mxu0 %v1044
    %1949 = vmatpush1.bf16.msra.mxu0 %v1043
    %1950 = vmatprep.subr.bf16.mxu0 %v1047
    %1951 = vmatpush1.bf16.msra.mxu0 %v1046
    %1952 = vmatprep.subr.bf16.mxu0 %v1050
    %1953 = vmatpush1.bf16.msra.mxu0 %v1049
    %1954 = vmatprep.subr.bf16.mxu0 %v1053
    %1955 = vmatpush1.bf16.msra.mxu0 %v1052
    %1956 = vmatprep.subr.bf16.mxu0 %v1056
    %1957 = vmatpush1.bf16.msra.mxu0 %v1055
    %1958 = vmatprep.mubr.bf16.mxu0 %v1925
    %1959 = vmatmul.mubr.bf16.gmra.mrb[0].mxu0 %v1924
    %v1960 = vpop.f32.mrb[0].mxu0
    %v1961 = vadd.f32 %v512, %v1960
    %v1962 = vpop.f32.mrb[0].mxu0
    %v1963 = vadd.f32 %v513, %v1962
    %v1964 = vpop.f32.mrb[0].mxu0
    %v1965 = vpop.f32.mrb[0].mxu0
    %1966 = vdwg.mxu0
    %1967 = vmatprep.subr.bf16.mxu0 0
    %1968 = vmatpush1.bf16.msra.mxu0 %v1012
    %1969 = vmatprep.subr.bf16.mxu0 0
    %1970 = vmatpush1.bf16.msra.mxu0 %v1015
    %1971 = vmatprep.subr.bf16.mxu0 0
    %1972 = vmatpush1.bf16.msra.mxu0 %v1018
    %1973 = vmatprep.subr.bf16.mxu0 0
    %1974 = vmatpush1.bf16.msra.mxu0 %v1021
    %1975 = vmatprep.subr.bf16.mxu0 0
    %1976 = vmatpush1.bf16.msra.mxu0 %v1024
    %1977 = vmatprep.subr.bf16.mxu0 0
    %1978 = vmatpush1.bf16.msra.mxu0 %v1027
    %1979 = vmatprep.subr.bf16.mxu0 0
    %1980 = vmatpush1.bf16.msra.mxu0 %v1030
    %1981 = vmatprep.subr.bf16.mxu0 0
    %1982 = vmatpush1.bf16.msra.mxu0 %v1033
    %1983 = vmatprep.subr.bf16.mxu0 0
    %1984 = vmatpush1.bf16.msra.mxu0 %v1036
    %1985 = vmatprep.subr.bf16.mxu0 0
    %1986 = vmatpush1.bf16.msra.mxu0 %v1039
    %1987 = vmatprep.subr.bf16.mxu0 0
    %1988 = vmatpush1.bf16.msra.mxu0 %v1042
    %1989 = vmatprep.subr.bf16.mxu0 0
    %1990 = vmatpush1.bf16.msra.mxu0 %v1045
    %1991 = vmatprep.subr.bf16.mxu0 0
    %1992 = vmatpush1.bf16.msra.mxu0 %v1048
    %1993 = vmatprep.subr.bf16.mxu0 0
    %1994 = vmatpush1.bf16.msra.mxu0 %v1051
    %1995 = vmatprep.subr.bf16.mxu0 0
    %1996 = vmatpush1.bf16.msra.mxu0 %v1054
    %1997 = vmatprep.subr.bf16.mxu0 0
    %1998 = vmatpush1.bf16.msra.mxu0 %v1057
    %1999 = vmatprep.mubr.bf16.mxu0 %v1925
    %2000 = vmatmul.mubr.bf16.gmra.mrb[0].mxu0 %v1924
    %v2001 = vpop.f32.mrb[0].mxu0
    %v2002 = vadd.f32 %v514, %v2001
    %v2003 = vpop.f32.mrb[0].mxu0
    %v2004 = vpop.f32.mrb[0].mxu0
    %v2005 = vpop.f32.mrb[0].mxu0
    %2006 = vdwg.mxu0
    %2007 = vmatprep.subr.bf16.mxu0 0
    %2008 = vmatpush1.bf16.msra.mxu0 %v1235
    %2009 = vmatprep.subr.bf16.mxu0 0
    %2010 = vmatpush1.bf16.msra.mxu0 %v1236
    %2011 = vmatprep.subr.bf16.mxu0 0
    %2012 = vmatpush1.bf16.msra.mxu0 %v1237
    %2013 = vmatprep.subr.bf16.mxu0 0
    %2014 = vmatpush1.bf16.msra.mxu0 %v1238
    %2015 = vmatprep.subr.bf16.mxu0 0
    %2016 = vmatpush1.bf16.msra.mxu0 %v1239
    %2017 = vmatprep.subr.bf16.mxu0 0
    %2018 = vmatpush1.bf16.msra.mxu0 %v1240
    %2019 = vmatprep.subr.bf16.mxu0 0
    %2020 = vmatpush1.bf16.msra.mxu0 %v1241
    %2021 = vmatprep.subr.bf16.mxu0 0
    %2022 = vmatpush1.bf16.msra.mxu0 %v1242
    %2023 = vmatprep.subr.bf16.mxu0 0
    %2024 = vmatpush1.bf16.msra.mxu0 0
    %2025 = vmatprep.subr.bf16.mxu0 0
    %2026 = vmatpush1.bf16.msra.mxu0 0
    %2027 = vmatprep.subr.bf16.mxu0 0
    %2028 = vmatpush1.bf16.msra.mxu0 0
    %2029 = vmatprep.subr.bf16.mxu0 0
    %2030 = vmatpush1.bf16.msra.mxu0 0
    %2031 = vmatprep.subr.bf16.mxu0 0
    %2032 = vmatpush1.bf16.msra.mxu0 0
    %2033 = vmatprep.subr.bf16.mxu0 0
    %2034 = vmatpush1.bf16.msra.mxu0 0
    %2035 = vmatprep.subr.bf16.mxu0 0
    %2036 = vmatpush1.bf16.msra.mxu0 0
    %2037 = vmatprep.subr.bf16.mxu0 0
    %2038 = vmatpush1.bf16.msra.mxu0 0
    %2039 = vmatprep.mubr.bf16.mxu0 0
    %2040 = vmatmul.mubr.bf16.gmra.mrb[0].mxu0 %v1925
    %v2041 = vpop.f32.mrb[0].mxu0
    %v2042 = vadd.f32 %v515, %v2041
    %v2043 = vpop.f32.mrb[0].mxu0
    %v2044 = vpop.f32.mrb[0].mxu0
    %v2045 = vpop.f32.mrb[0].mxu0
    %2046 = vdwg.mxu0
    %v2047 = vxor.u32 %v1961, 2147483648
    %v2048 = vmul.f32 %v2047, 1.442695
    %v2049 = vpow.pop %v2048
    %v2050 = vadd.f32 %v2049, 1.0
    %v2051 = vrcp.pop %v2050
    %v2052 = vmul.f32 1.0, %v2051
    %v2053 = vxor.u32 %v1963, 2147483648
    %v2054 = vmul.f32 %v2053, 1.442695
    %v2055 = vpow.pop %v2054
    %v2056 = vadd.f32 %v2055, 1.0
    %v2057 = vrcp.pop %v2056
    %v2058 = vmul.f32 1.0, %v2057
    %v2059 = vsub.f32 %v2002, %v2042
    %v2060 = vmul.f32 %v2052, %v2042
    %v2061 = vadd.f32 %v2059, %v2060
    %v2062 = vtanh.pop %v2061
    %v2063 = vsub.f32 1.0, %v2058
    %v2064 = vmul.f32 %v2063, %v2062
    %v2065 = vmul.f32 %v2058, %v1815
    %v2066 = vadd.f32 %v2064, %v2065
    %v2067 = vsel %vm1820, %v2066, %v1815
    %v2068 = vld [vmem:[#allocation2 + $0x60] sm:$0xff]
    %v2069 = vld [vmem:[#allocation2 + $0x68] sm:$0xff]
    %v2070 = vld [vmem:[#allocation2 + $0x70] sm:$0xff]
    %v2071 = vld [vmem:[%s0 + $0x20] sm:$0xff]
    %vm2072 = vcmp.ne.s32.totalorder %v2071, 0
    %2073 = vmatprep.subr.bf16.mxu0 %v634
    %2074 = vmatpush1.bf16.msra.mxu0 %v633
    %2075 = vmatprep.subr.bf16.mxu0 %v637
    %2076 = vmatpush1.bf16.msra.mxu0 %v636
    %2077 = vmatprep.subr.bf16.mxu0 %v640
    %2078 = vmatpush1.bf16.msra.mxu0 %v639
    %2079 = vmatprep.subr.bf16.mxu0 %v643
    %2080 = vmatpush1.bf16.msra.mxu0 %v642
    %2081 = vmatprep.subr.bf16.mxu0 %v646
    %2082 = vmatpush1.bf16.msra.mxu0 %v645
    %2083 = vmatprep.subr.bf16.mxu0 %v649
    %2084 = vmatpush1.bf16.msra.mxu0 %v648
    %2085 = vmatprep.subr.bf16.mxu0 %v652
    %2086 = vmatpush1.bf16.msra.mxu0 %v651
    %2087 = vmatprep.subr.bf16.mxu0 %v655
    %2088 = vmatpush1.bf16.msra.mxu0 %v654
    %2089 = vmatprep.subr.bf16.mxu0 0
    %2090 = vmatpush1.bf16.msra.mxu0 0
    %2091 = vmatprep.subr.bf16.mxu0 0
    %2092 = vmatpush1.bf16.msra.mxu0 0
    %2093 = vmatprep.subr.bf16.mxu0 0
    %2094 = vmatpush1.bf16.msra.mxu0 0
    %2095 = vmatprep.subr.bf16.mxu0 0
    %2096 = vmatpush1.bf16.msra.mxu0 0
    %2097 = vmatprep.subr.bf16.mxu0 0
    %2098 = vmatpush1.bf16.msra.mxu0 0
    %2099 = vmatprep.subr.bf16.mxu0 0
    %2100 = vmatpush1.bf16.msra.mxu0 0
    %2101 = vmatprep.subr.bf16.mxu0 0
    %2102 = vmatpush1.bf16.msra.mxu0 0
    %2103 = vmatprep.subr.bf16.mxu0 0
    %2104 = vmatpush1.bf16.msra.mxu0 0
    %2105 = vmatprep.mubr.bf16.mxu0 0
    %2106 = vmatmul.mubr.bf16.gmra.mrb[0].mxu0 %v1924
    %v2107 = vpop.f32.mrb[0].mxu0
    %v2108 = vadd.f32 %v509, %v2107
    %v2109 = vpop.f32.mrb[0].mxu0
    %v2110 = vadd.f32 %v510, %v2109
    %v2111 = vpop.f32.mrb[0].mxu0
    %v2112 = vpop.f32.mrb[0].mxu0
    %2113 = vdwg.mxu0
    %2114 = vmatprep.subr.bf16.mxu0 0
    %2115 = vmatpush1.bf16.msra.mxu0 %v635
    %2116 = vmatprep.subr.bf16.mxu0 0
    %2117 = vmatpush1.bf16.msra.mxu0 %v638
    %2118 = vmatprep.subr.bf16.mxu0 0
    %2119 = vmatpush1.bf16.msra.mxu0 %v641
    %2120 = vmatprep.subr.bf16.mxu0 0
    %2121 = vmatpush1.bf16.msra.mxu0 %v644
    %2122 = vmatprep.subr.bf16.mxu0 0
    %2123 = vmatpush1.bf16.msra.mxu0 %v647
    %2124 = vmatprep.subr.bf16.mxu0 0
    %2125 = vmatpush1.bf16.msra.mxu0 %v650
    %2126 = vmatprep.subr.bf16.mxu0 0
    %2127 = vmatpush1.bf16.msra.mxu0 %v653
    %2128 = vmatprep.subr.bf16.mxu0 0
    %2129 = vmatpush1.bf16.msra.mxu0 %v656
    %2130 = vmatprep.subr.bf16.mxu0 0
    %2131 = vmatpush1.bf16.msra.mxu0 0
    %2132 = vmatprep.subr.bf16.mxu0 0
    %2133 = vmatpush1.bf16.msra.mxu0 0
    %2134 = vmatprep.subr.bf16.mxu0 0
    %2135 = vmatpush1.bf16.msra.mxu0 0
    %2136 = vmatprep.subr.bf16.mxu0 0
    %2137 = vmatpush1.bf16.msra.mxu0 0
    %2138 = vmatprep.subr.bf16.mxu0 0
    %2139 = vmatpush1.bf16.msra.mxu0 0
    %2140 = vmatprep.subr.bf16.mxu0 0
    %2141 = vmatpush1.bf16.msra.mxu0 0
    %2142 = vmatprep.subr.bf16.mxu0 0
    %2143 = vmatpush1.bf16.msra.mxu0 0
    %2144 = vmatprep.subr.bf16.mxu0 0
    %2145 = vmatpush1.bf16.msra.mxu0 0
    %2146 = vmatprep.mubr.bf16.mxu0 0
    %2147 = vmatmul.mubr.bf16.gmra.mrb[0].mxu0 %v1924
    %v2148 = vpop.f32.mrb[0].mxu0
    %v2149 = vadd.f32 %v511, %v2148
    %v2150 = vpop.f32.mrb[0].mxu0
    %v2151 = vpop.f32.mrb[0].mxu0
    %v2152 = vpop.f32.mrb[0].mxu0
    %2153 = vdwg.mxu0
    %v2154 = vadd.f32 %v2068, %v2108
    %v2155 = vxor.u32 %v2154, 2147483648
    %v2156 = vmul.f32 %v2155, 1.442695
    %v2157 = vpow.pop %v2156
    %v2158 = vadd.f32 %v2157, 1.0
    %v2159 = vrcp.pop %v2158
    %v2160 = vmul.f32 1.0, %v2159
    %v2161 = vadd.f32 %v2069, %v2110
    %v2162 = vxor.u32 %v2161, 2147483648
    %v2163 = vmul.f32 %v2162, 1.442695
    %v2164 = vpow.pop %v2163
    %v2165 = vadd.f32 %v2164, 1.0
    %v2166 = vrcp.pop %v2165
    %v2167 = vmul.f32 1.0, %v2166
    %v2168 = vmul.f32 %v2160, %v2149
    %v2169 = vadd.f32 %v2070, %v2168
    %v2170 = vtanh.pop %v2169
    %v2171 = vsub.f32 1.0, %v2167
    %v2172 = vmul.f32 %v2171, %v2170
    %v2173 = vmul.f32 %v2167, %v1923
    %v2174 = vadd.f32 %v2172, %v2173
    %v2175 = vsel %vm2072, %v2174, %v1923
    %v2176 = vpack.c.bf16 %v2175, %v2175
    %v2177 = vpack.c.bf16 %v2067, %v2067
    %2178 = vmatprep.subr.bf16.mxu0 %v1011
    %2179 = vmatpush1.bf16.msra.mxu0 %v1010
    %2180 = vmatprep.subr.bf16.mxu0 %v1014
    %2181 = vmatpush1.bf16.msra.mxu0 %v1013
    %2182 = vmatprep.subr.bf16.mxu0 %v1017
    %2183 = vmatpush1.bf16.msra.mxu0 %v1016
    %2184 = vmatprep.subr.bf16.mxu0 %v1020
    %2185 = vmatpush1.bf16.msra.mxu0 %v1019
    %2186 = vmatprep.subr.bf16.mxu0 %v1023
    %2187 = vmatpush1.bf16.msra.mxu0 %v1022
    %2188 = vmatprep.subr.bf16.mxu0 %v1026
    %2189 = vmatpush1.bf16.msra.mxu0 %v1025
    %2190 = vmatprep.subr.bf16.mxu0 %v1029
    %2191 = vmatpush1.bf16.msra.mxu0 %v1028
    %2192 = vmatprep.subr.bf16.mxu0 %v1032
    %2193 = vmatpush1.bf16.msra.mxu0 %v1031
    %2194 = vmatprep.subr.bf16.mxu0 %v1035
    %2195 = vmatpush1.bf16.msra.mxu0 %v1034
    %2196 = vmatprep.subr.bf16.mxu0 %v1038
    %2197 = vmatpush1.bf16.msra.mxu0 %v1037
    %2198 = vmatprep.subr.bf16.mxu0 %v1041
    %2199 = vmatpush1.bf16.msra.mxu0 %v1040
    %2200 = vmatprep.subr.bf16.mxu0 %v1044
    %2201 = vmatpush1.bf16.msra.mxu0 %v1043
    %2202 = vmatprep.subr.bf16.mxu0 %v1047
    %2203 = vmatpush1.bf16.msra.mxu0 %v1046
    %2204 = vmatprep.subr.bf16.mxu0 %v1050
    %2205 = vmatpush1.bf16.msra.mxu0 %v1049
    %2206 = vmatprep.subr.bf16.mxu0 %v1053
    %2207 = vmatpush1.bf16.msra.mxu0 %v1052
    %2208 = vmatprep.subr.bf16.mxu0 %v1056
    %2209 = vmatpush1.bf16.msra.mxu0 %v1055
    %2210 = vmatprep.mubr.bf16.mxu0 %v2177
    %2211 = vmatmul.mubr.bf16.gmra.mrb[0].mxu0 %v2176
    %v2212 = vpop.f32.mrb[0].mxu0
    %v2213 = vadd.f32 %v512, %v2212
    %v2214 = vpop.f32.mrb[0].mxu0
    %v2215 = vadd.f32 %v513, %v2214
    %v2216 = vpop.f32.mrb[0].mxu0
    %v2217 = vpop.f32.mrb[0].mxu0
    %2218 = vdwg.mxu0
    %2219 = vmatprep.subr.bf16.mxu0 0
    %2220 = vmatpush1.bf16.msra.mxu0 %v1012
    %2221 = vmatprep.subr.bf16.mxu0 0
    %2222 = vmatpush1.bf16.msra.mxu0 %v1015
    %2223 = vmatprep.subr.bf16.mxu0 0
    %2224 = vmatpush1.bf16.msra.mxu0 %v1018
    %2225 = vmatprep.subr.bf16.mxu0 0
    %2226 = vmatpush1.bf16.msra.mxu0 %v1021
    %2227 = vmatprep.subr.bf16.mxu0 0
    %2228 = vmatpush1.bf16.msra.mxu0 %v1024
    %2229 = vmatprep.subr.bf16.mxu0 0
    %2230 = vmatpush1.bf16.msra.mxu0 %v1027
    %2231 = vmatprep.subr.bf16.mxu0 0
    %2232 = vmatpush1.bf16.msra.mxu0 %v1030
    %2233 = vmatprep.subr.bf16.mxu0 0
    %2234 = vmatpush1.bf16.msra.mxu0 %v1033
    %2235 = vmatprep.subr.bf16.mxu0 0
    %2236 = vmatpush1.bf16.msra.mxu0 %v1036
    %2237 = vmatprep.subr.bf16.mxu0 0
    %2238 = vmatpush1.bf16.msra.mxu0 %v1039
    %2239 = vmatprep.subr.bf16.mxu0 0
    %2240 = vmatpush1.bf16.msra.mxu0 %v1042
    %2241 = vmatprep.subr.bf16.mxu0 0
    %2242 = vmatpush1.bf16.msra.mxu0 %v1045
    %2243 = vmatprep.subr.bf16.mxu0 0
    %2244 = vmatpush1.bf16.msra.mxu0 %v1048
    %2245 = vmatprep.subr.bf16.mxu0 0
    %2246 = vmatpush1.bf16.msra.mxu0 %v1051
    %2247 = vmatprep.subr.bf16.mxu0 0
    %2248 = vmatpush1.bf16.msra.mxu0 %v1054
    %2249 = vmatprep.subr.bf16.mxu0 0
    %2250 = vmatpush1.bf16.msra.mxu0 %v1057
    %2251 = vmatprep.mubr.bf16.mxu0 %v2177
    %2252 = vmatmul.mubr.bf16.gmra.mrb[0].mxu0 %v2176
    %v2253 = vpop.f32.mrb[0].mxu0
    %v2254 = vadd.f32 %v514, %v2253
    %v2255 = vpop.f32.mrb[0].mxu0
    %v2256 = vpop.f32.mrb[0].mxu0
    %v2257 = vpop.f32.mrb[0].mxu0
    %2258 = vdwg.mxu0
    %2259 = vmatprep.subr.bf16.mxu0 0
    %2260 = vmatpush1.bf16.msra.mxu0 %v1235
    %2261 = vmatprep.subr.bf16.mxu0 0
    %2262 = vmatpush1.bf16.msra.mxu0 %v1236
    %2263 = vmatprep.subr.bf16.mxu0 0
    %2264 = vmatpush1.bf16.msra.mxu0 %v1237
    %2265 = vmatprep.subr.bf16.mxu0 0
    %2266 = vmatpush1.bf16.msra.mxu0 %v1238
    %2267 = vmatprep.subr.bf16.mxu0 0
    %2268 = vmatpush1.bf16.msra.mxu0 %v1239
    %2269 = vmatprep.subr.bf16.mxu0 0
    %2270 = vmatpush1.bf16.msra.mxu0 %v1240
    %2271 = vmatprep.subr.bf16.mxu0 0
    %2272 = vmatpush1.bf16.msra.mxu0 %v1241
    %2273 = vmatprep.subr.bf16.mxu0 0
    %2274 = vmatpush1.bf16.msra.mxu0 %v1242
    %2275 = vmatprep.subr.bf16.mxu0 0
    %2276 = vmatpush1.bf16.msra.mxu0 0
    %2277 = vmatprep.subr.bf16.mxu0 0
    %2278 = vmatpush1.bf16.msra.mxu0 0
    %2279 = vmatprep.subr.bf16.mxu0 0
    %2280 = vmatpush1.bf16.msra.mxu0 0
    %2281 = vmatprep.subr.bf16.mxu0 0
    %2282 = vmatpush1.bf16.msra.mxu0 0
    %2283 = vmatprep.subr.bf16.mxu0 0
    %2284 = vmatpush1.bf16.msra.mxu0 0
    %2285 = vmatprep.subr.bf16.mxu0 0
    %2286 = vmatpush1.bf16.msra.mxu0 0
    %2287 = vmatprep.subr.bf16.mxu0 0
    %2288 = vmatpush1.bf16.msra.mxu0 0
    %2289 = vmatprep.subr.bf16.mxu0 0
    %2290 = vmatpush1.bf16.msra.mxu0 0
    %2291 = vmatprep.mubr.bf16.mxu0 0
    %2292 = vmatmul.mubr.bf16.gmra.mrb[0].mxu0 %v2177
    %v2293 = vpop.f32.mrb[0].mxu0
    %v2294 = vadd.f32 %v515, %v2293
    %v2295 = vpop.f32.mrb[0].mxu0
    %v2296 = vpop.f32.mrb[0].mxu0
    %v2297 = vpop.f32.mrb[0].mxu0
    %2298 = vdwg.mxu0
    %v2299 = vxor.u32 %v2213, 2147483648
    %v2300 = vmul.f32 %v2299, 1.442695
    %v2301 = vpow.pop %v2300
    %v2302 = vadd.f32 %v2301, 1.0
    %v2303 = vrcp.pop %v2302
    %v2304 = vmul.f32 1.0, %v2303
    %v2305 = vxor.u32 %v2215, 2147483648
    %v2306 = vmul.f32 %v2305, 1.442695
    %v2307 = vpow.pop %v2306
    %v2308 = vadd.f32 %v2307, 1.0
    %v2309 = vrcp.pop %v2308
    %v2310 = vmul.f32 1.0, %v2309
    %v2311 = vsub.f32 %v2254, %v2294
    %v2312 = vmul.f32 %v2304, %v2294
    %v2313 = vadd.f32 %v2311, %v2312
    %v2314 = vtanh.pop %v2313
    %v2315 = vsub.f32 1.0, %v2310
    %v2316 = vmul.f32 %v2315, %v2314
    %v2317 = vmul.f32 %v2310, %v2067
    %v2318 = vadd.f32 %v2316, %v2317
    %v2319 = vsel %vm2072, %v2318, %v2067
    %v2320 = vld [vmem:[#allocation2 + $0x78] sm:$0xff]
    %v2321 = vld [vmem:[#allocation2 + $0x80] sm:$0xff]
    %v2322 = vld [vmem:[#allocation2 + $0x88] sm:$0xff]
    %v2323 = vld [vmem:[%s0 + $0x28] sm:$0xff]
    %vm2324 = vcmp.ne.s32.totalorder %v2323, 0
    %2325 = vmatprep.subr.bf16.mxu0 %v634
    %2326 = vmatpush1.bf16.msra.mxu0 %v633
    %2327 = vmatprep.subr.bf16.mxu0 %v637
    %2328 = vmatpush1.bf16.msra.mxu0 %v636
    %2329 = vmatprep.subr.bf16.mxu0 %v640
    %2330 = vmatpush1.bf16.msra.mxu0 %v639
    %2331 = vmatprep.subr.bf16.mxu0 %v643
    %2332 = vmatpush1.bf16.msra.mxu0 %v642
    %2333 = vmatprep.subr.bf16.mxu0 %v646
    %2334 = vmatpush1.bf16.msra.mxu0 %v645
    %2335 = vmatprep.subr.bf16.mxu0 %v649
    %2336 = vmatpush1.bf16.msra.mxu0 %v648
    %2337 = vmatprep.subr.bf16.mxu0 %v652
    %2338 = vmatpush1.bf16.msra.mxu0 %v651
    %2339 = vmatprep.subr.bf16.mxu0 %v655
    %2340 = vmatpush1.bf16.msra.mxu0 %v654
    %2341 = vmatprep.subr.bf16.mxu0 0
    %2342 = vmatpush1.bf16.msra.mxu0 0
    %2343 = vmatprep.subr.bf16.mxu0 0
    %2344 = vmatpush1.bf16.msra.mxu0 0
    %2345 = vmatprep.subr.bf16.mxu0 0
    %2346 = vmatpush1.bf16.msra.mxu0 0
    %2347 = vmatprep.subr.bf16.mxu0 0
    %2348 = vmatpush1.bf16.msra.mxu0 0
    %2349 = vmatprep.subr.bf16.mxu0 0
    %2350 = vmatpush1.bf16.msra.mxu0 0
    %2351 = vmatprep.subr.bf16.mxu0 0
    %2352 = vmatpush1.bf16.msra.mxu0 0
    %2353 = vmatprep.subr.bf16.mxu0 0
    %2354 = vmatpush1.bf16.msra.mxu0 0
    %2355 = vmatprep.subr.bf16.mxu0 0
    %2356 = vmatpush1.bf16.msra.mxu0 0
    %2357 = vmatprep.mubr.bf16.mxu0 0
    %2358 = vmatmul.mubr.bf16.gmra.mrb[0].mxu0 %v2176
    %v2359 = vpop.f32.mrb[0].mxu0
    %v2360 = vadd.f32 %v509, %v2359
    %v2361 = vpop.f32.mrb[0].mxu0
    %v2362 = vadd.f32 %v510, %v2361
    %v2363 = vpop.f32.mrb[0].mxu0
    %v2364 = vpop.f32.mrb[0].mxu0
    %2365 = vdwg.mxu0
    %2366 = vmatprep.subr.bf16.mxu0 0
    %2367 = vmatpush1.bf16.msra.mxu0 %v635
    %2368 = vmatprep.subr.bf16.mxu0 0
    %2369 = vmatpush1.bf16.msra.mxu0 %v638
    %2370 = vmatprep.subr.bf16.mxu0 0
    %2371 = vmatpush1.bf16.msra.mxu0 %v641
    %2372 = vmatprep.subr.bf16.mxu0 0
    %2373 = vmatpush1.bf16.msra.mxu0 %v644
    %2374 = vmatprep.subr.bf16.mxu0 0
    %2375 = vmatpush1.bf16.msra.mxu0 %v647
    %2376 = vmatprep.subr.bf16.mxu0 0
    %2377 = vmatpush1.bf16.msra.mxu0 %v650
    %2378 = vmatprep.subr.bf16.mxu0 0
    %2379 = vmatpush1.bf16.msra.mxu0 %v653
    %2380 = vmatprep.subr.bf16.mxu0 0
    %2381 = vmatpush1.bf16.msra.mxu0 %v656
    %2382 = vmatprep.subr.bf16.mxu0 0
    %2383 = vmatpush1.bf16.msra.mxu0 0
    %2384 = vmatprep.subr.bf16.mxu0 0
    %2385 = vmatpush1.bf16.msra.mxu0 0
    %2386 = vmatprep.subr.bf16.mxu0 0
    %2387 = vmatpush1.bf16.msra.mxu0 0
    %2388 = vmatprep.subr.bf16.mxu0 0
    %2389 = vmatpush1.bf16.msra.mxu0 0
    %2390 = vmatprep.subr.bf16.mxu0 0
    %2391 = vmatpush1.bf16.msra.mxu0 0
    %2392 = vmatprep.subr.bf16.mxu0 0
    %2393 = vmatpush1.bf16.msra.mxu0 0
    %2394 = vmatprep.subr.bf16.mxu0 0
    %2395 = vmatpush1.bf16.msra.mxu0 0
    %2396 = vmatprep.subr.bf16.mxu0 0
    %2397 = vmatpush1.bf16.msra.mxu0 0
    %2398 = vmatprep.mubr.bf16.mxu0 0
    %2399 = vmatmul.mubr.bf16.gmra.mrb[0].mxu0 %v2176
    %v2400 = vpop.f32.mrb[0].mxu0
    %v2401 = vadd.f32 %v511, %v2400
    %v2402 = vpop.f32.mrb[0].mxu0
    %v2403 = vpop.f32.mrb[0].mxu0
    %v2404 = vpop.f32.mrb[0].mxu0
    %2405 = vdwg.mxu0
    %v2406 = vadd.f32 %v2320, %v2360
    %v2407 = vxor.u32 %v2406, 2147483648
    %v2408 = vmul.f32 %v2407, 1.442695
    %v2409 = vpow.pop %v2408
    %v2410 = vadd.f32 %v2409, 1.0
    %v2411 = vrcp.pop %v2410
    %v2412 = vmul.f32 1.0, %v2411
    %v2413 = vadd.f32 %v2321, %v2362
    %v2414 = vxor.u32 %v2413, 2147483648
    %v2415 = vmul.f32 %v2414, 1.442695
    %v2416 = vpow.pop %v2415
    %v2417 = vadd.f32 %v2416, 1.0
    %v2418 = vrcp.pop %v2417
    %v2419 = vmul.f32 1.0, %v2418
    %v2420 = vmul.f32 %v2412, %v2401
    %v2421 = vadd.f32 %v2322, %v2420
    %v2422 = vtanh.pop %v2421
    %v2423 = vsub.f32 1.0, %v2419
    %v2424 = vmul.f32 %v2423, %v2422
    %v2425 = vmul.f32 %v2419, %v2175
    %v2426 = vadd.f32 %v2424, %v2425
    %v2427 = vsel %vm2324, %v2426, %v2175
    %v2428 = vpack.c.bf16 %v2427, %v2427
    %v2429 = vpack.c.bf16 %v2319, %v2319
    %2430 = vmatprep.subr.bf16.mxu0 %v1011
    %2431 = vmatpush1.bf16.msra.mxu0 %v1010
    %2432 = vmatprep.subr.bf16.mxu0 %v1014
    %2433 = vmatpush1.bf16.msra.mxu0 %v1013
    %2434 = vmatprep.subr.bf16.mxu0 %v1017
    %2435 = vmatpush1.bf16.msra.mxu0 %v1016
    %2436 = vmatprep.subr.bf16.mxu0 %v1020
    %2437 = vmatpush1.bf16.msra.mxu0 %v1019
    %2438 = vmatprep.subr.bf16.mxu0 %v1023
    %2439 = vmatpush1.bf16.msra.mxu0 %v1022
    %2440 = vmatprep.subr.bf16.mxu0 %v1026
    %2441 = vmatpush1.bf16.msra.mxu0 %v1025
    %2442 = vmatprep.subr.bf16.mxu0 %v1029
    %2443 = vmatpush1.bf16.msra.mxu0 %v1028
    %2444 = vmatprep.subr.bf16.mxu0 %v1032
    %2445 = vmatpush1.bf16.msra.mxu0 %v1031
    %2446 = vmatprep.subr.bf16.mxu0 %v1035
    %2447 = vmatpush1.bf16.msra.mxu0 %v1034
    %2448 = vmatprep.subr.bf16.mxu0 %v1038
    %2449 = vmatpush1.bf16.msra.mxu0 %v1037
    %2450 = vmatprep.subr.bf16.mxu0 %v1041
    %2451 = vmatpush1.bf16.msra.mxu0 %v1040
    %2452 = vmatprep.subr.bf16.mxu0 %v1044
    %2453 = vmatpush1.bf16.msra.mxu0 %v1043
    %2454 = vmatprep.subr.bf16.mxu0 %v1047
    %2455 = vmatpush1.bf16.msra.mxu0 %v1046
    %2456 = vmatprep.subr.bf16.mxu0 %v1050
    %2457 = vmatpush1.bf16.msra.mxu0 %v1049
    %2458 = vmatprep.subr.bf16.mxu0 %v1053
    %2459 = vmatpush1.bf16.msra.mxu0 %v1052
    %2460 = vmatprep.subr.bf16.mxu0 %v1056
    %2461 = vmatpush1.bf16.msra.mxu0 %v1055
    %2462 = vmatprep.mubr.bf16.mxu0 %v2429
    %2463 = vmatmul.mubr.bf16.gmra.mrb[0].mxu0 %v2428
    %v2464 = vpop.f32.mrb[0].mxu0
    %v2465 = vadd.f32 %v512, %v2464
    %v2466 = vpop.f32.mrb[0].mxu0
    %v2467 = vadd.f32 %v513, %v2466
    %v2468 = vpop.f32.mrb[0].mxu0
    %v2469 = vpop.f32.mrb[0].mxu0
    %2470 = vdwg.mxu0
    %2471 = vmatprep.subr.bf16.mxu0 0
    %2472 = vmatpush1.bf16.msra.mxu0 %v1012
    %2473 = vmatprep.subr.bf16.mxu0 0
    %2474 = vmatpush1.bf16.msra.mxu0 %v1015
    %2475 = vmatprep.subr.bf16.mxu0 0
    %2476 = vmatpush1.bf16.msra.mxu0 %v1018
    %2477 = vmatprep.subr.bf16.mxu0 0
    %2478 = vmatpush1.bf16.msra.mxu0 %v1021
    %2479 = vmatprep.subr.bf16.mxu0 0
    %2480 = vmatpush1.bf16.msra.mxu0 %v1024
    %2481 = vmatprep.subr.bf16.mxu0 0
    %2482 = vmatpush1.bf16.msra.mxu0 %v1027
    %2483 = vmatprep.subr.bf16.mxu0 0
    %2484 = vmatpush1.bf16.msra.mxu0 %v1030
    %2485 = vmatprep.subr.bf16.mxu0 0
    %2486 = vmatpush1.bf16.msra.mxu0 %v1033
    %2487 = vmatprep.subr.bf16.mxu0 0
    %2488 = vmatpush1.bf16.msra.mxu0 %v1036
    %2489 = vmatprep.subr.bf16.mxu0 0
    %2490 = vmatpush1.bf16.msra.mxu0 %v1039
    %2491 = vmatprep.subr.bf16.mxu0 0
    %2492 = vmatpush1.bf16.msra.mxu0 %v1042
    %2493 = vmatprep.subr.bf16.mxu0 0
    %2494 = vmatpush1.bf16.msra.mxu0 %v1045
    %2495 = vmatprep.subr.bf16.mxu0 0
    %2496 = vmatpush1.bf16.msra.mxu0 %v1048
    %2497 = vmatprep.subr.bf16.mxu0 0
    %2498 = vmatpush1.bf16.msra.mxu0 %v1051
    %2499 = vmatprep.subr.bf16.mxu0 0
    %2500 = vmatpush1.bf16.msra.mxu0 %v1054
    %2501 = vmatprep.subr.bf16.mxu0 0
    %2502 = vmatpush1.bf16.msra.mxu0 %v1057
    %2503 = vmatprep.mubr.bf16.mxu0 %v2429
    %2504 = vmatmul.mubr.bf16.gmra.mrb[0].mxu0 %v2428
    %v2505 = vpop.f32.mrb[0].mxu0
    %v2506 = vadd.f32 %v514, %v2505
    %v2507 = vpop.f32.mrb[0].mxu0
    %v2508 = vpop.f32.mrb[0].mxu0
    %v2509 = vpop.f32.mrb[0].mxu0
    %2510 = vdwg.mxu0
    %2511 = vmatprep.subr.bf16.mxu0 0
    %2512 = vmatpush1.bf16.msra.mxu0 %v1235
    %2513 = vmatprep.subr.bf16.mxu0 0
    %2514 = vmatpush1.bf16.msra.mxu0 %v1236
    %2515 = vmatprep.subr.bf16.mxu0 0
    %2516 = vmatpush1.bf16.msra.mxu0 %v1237
    %2517 = vmatprep.subr.bf16.mxu0 0
    %2518 = vmatpush1.bf16.msra.mxu0 %v1238
    %2519 = vmatprep.subr.bf16.mxu0 0
    %2520 = vmatpush1.bf16.msra.mxu0 %v1239
    %2521 = vmatprep.subr.bf16.mxu0 0
    %2522 = vmatpush1.bf16.msra.mxu0 %v1240
    %2523 = vmatprep.subr.bf16.mxu0 0
    %2524 = vmatpush1.bf16.msra.mxu0 %v1241
    %2525 = vmatprep.subr.bf16.mxu0 0
    %2526 = vmatpush1.bf16.msra.mxu0 %v1242
    %2527 = vmatprep.subr.bf16.mxu0 0
    %2528 = vmatpush1.bf16.msra.mxu0 0
    %2529 = vmatprep.subr.bf16.mxu0 0
    %2530 = vmatpush1.bf16.msra.mxu0 0
    %2531 = vmatprep.subr.bf16.mxu0 0
    %2532 = vmatpush1.bf16.msra.mxu0 0
    %2533 = vmatprep.subr.bf16.mxu0 0
    %2534 = vmatpush1.bf16.msra.mxu0 0
    %2535 = vmatprep.subr.bf16.mxu0 0
    %2536 = vmatpush1.bf16.msra.mxu0 0
    %2537 = vmatprep.subr.bf16.mxu0 0
    %2538 = vmatpush1.bf16.msra.mxu0 0
    %2539 = vmatprep.subr.bf16.mxu0 0
    %2540 = vmatpush1.bf16.msra.mxu0 0
    %2541 = vmatprep.subr.bf16.mxu0 0
    %2542 = vmatpush1.bf16.msra.mxu0 0
    %2543 = vmatprep.mubr.bf16.mxu0 0
    %2544 = vmatmul.mubr.bf16.gmra.mrb[0].mxu0 %v2429
    %v2545 = vpop.f32.mrb[0].mxu0
    %v2546 = vadd.f32 %v515, %v2545
    %v2547 = vpop.f32.mrb[0].mxu0
    %v2548 = vpop.f32.mrb[0].mxu0
    %v2549 = vpop.f32.mrb[0].mxu0
    %2550 = vdwg.mxu0
    %v2551 = vxor.u32 %v2465, 2147483648
    %v2552 = vmul.f32 %v2551, 1.442695
    %v2553 = vpow.pop %v2552
    %v2554 = vadd.f32 %v2553, 1.0
    %v2555 = vrcp.pop %v2554
    %v2556 = vmul.f32 1.0, %v2555
    %v2557 = vxor.u32 %v2467, 2147483648
    %v2558 = vmul.f32 %v2557, 1.442695
    %v2559 = vpow.pop %v2558
    %v2560 = vadd.f32 %v2559, 1.0
    %v2561 = vrcp.pop %v2560
    %v2562 = vmul.f32 1.0, %v2561
    %v2563 = vsub.f32 %v2506, %v2546
    %v2564 = vmul.f32 %v2556, %v2546
    %v2565 = vadd.f32 %v2563, %v2564
    %v2566 = vtanh.pop %v2565
    %v2567 = vsub.f32 1.0, %v2562
    %v2568 = vmul.f32 %v2567, %v2566
    %v2569 = vmul.f32 %v2562, %v2319
    %v2570 = vadd.f32 %v2568, %v2569
    %v2571 = vsel %vm2324, %v2570, %v2319
    %v2572 = vld [vmem:[#allocation2 + $0x90] sm:$0xff]
    %v2573 = vld [vmem:[#allocation2 + $0x98] sm:$0xff]
    %v2574 = vld [vmem:[#allocation2 + $0xa0] sm:$0xff]
    %v2575 = vld [vmem:[%s0 + $0x30] sm:$0xff]
    %vm2576 = vcmp.ne.s32.totalorder %v2575, 0
    %2577 = vmatprep.subr.bf16.mxu0 %v634
    %2578 = vmatpush1.bf16.msra.mxu0 %v633
    %2579 = vmatprep.subr.bf16.mxu0 %v637
    %2580 = vmatpush1.bf16.msra.mxu0 %v636
    %2581 = vmatprep.subr.bf16.mxu0 %v640
    %2582 = vmatpush1.bf16.msra.mxu0 %v639
    %2583 = vmatprep.subr.bf16.mxu0 %v643
    %2584 = vmatpush1.bf16.msra.mxu0 %v642
    %2585 = vmatprep.subr.bf16.mxu0 %v646
    %2586 = vmatpush1.bf16.msra.mxu0 %v645
    %2587 = vmatprep.subr.bf16.mxu0 %v649
    %2588 = vmatpush1.bf16.msra.mxu0 %v648
    %2589 = vmatprep.subr.bf16.mxu0 %v652
    %2590 = vmatpush1.bf16.msra.mxu0 %v651
    %2591 = vmatprep.subr.bf16.mxu0 %v655
    %2592 = vmatpush1.bf16.msra.mxu0 %v654
    %2593 = vmatprep.subr.bf16.mxu0 0
    %2594 = vmatpush1.bf16.msra.mxu0 0
    %2595 = vmatprep.subr.bf16.mxu0 0
    %2596 = vmatpush1.bf16.msra.mxu0 0
    %2597 = vmatprep.subr.bf16.mxu0 0
    %2598 = vmatpush1.bf16.msra.mxu0 0
    %2599 = vmatprep.subr.bf16.mxu0 0
    %2600 = vmatpush1.bf16.msra.mxu0 0
    %2601 = vmatprep.subr.bf16.mxu0 0
    %2602 = vmatpush1.bf16.msra.mxu0 0
    %2603 = vmatprep.subr.bf16.mxu0 0
    %2604 = vmatpush1.bf16.msra.mxu0 0
    %2605 = vmatprep.subr.bf16.mxu0 0
    %2606 = vmatpush1.bf16.msra.mxu0 0
    %2607 = vmatprep.subr.bf16.mxu0 0
    %2608 = vmatpush1.bf16.msra.mxu0 0
    %2609 = vmatprep.mubr.bf16.mxu0 0
    %2610 = vmatmul.mubr.bf16.gmra.mrb[0].mxu0 %v2428
    %v2611 = vpop.f32.mrb[0].mxu0
    %v2612 = vadd.f32 %v509, %v2611
    %v2613 = vpop.f32.mrb[0].mxu0
    %v2614 = vadd.f32 %v510, %v2613
    %v2615 = vpop.f32.mrb[0].mxu0
    %v2616 = vpop.f32.mrb[0].mxu0
    %2617 = vdwg.mxu0
    %2618 = vmatprep.subr.bf16.mxu0 0
    %2619 = vmatpush1.bf16.msra.mxu0 %v635
    %2620 = vmatprep.subr.bf16.mxu0 0
    %2621 = vmatpush1.bf16.msra.mxu0 %v638
    %2622 = vmatprep.subr.bf16.mxu0 0
    %2623 = vmatpush1.bf16.msra.mxu0 %v641
    %2624 = vmatprep.subr.bf16.mxu0 0
    %2625 = vmatpush1.bf16.msra.mxu0 %v644
    %2626 = vmatprep.subr.bf16.mxu0 0
    %2627 = vmatpush1.bf16.msra.mxu0 %v647
    %2628 = vmatprep.subr.bf16.mxu0 0
    %2629 = vmatpush1.bf16.msra.mxu0 %v650
    %2630 = vmatprep.subr.bf16.mxu0 0
    %2631 = vmatpush1.bf16.msra.mxu0 %v653
    %2632 = vmatprep.subr.bf16.mxu0 0
    %2633 = vmatpush1.bf16.msra.mxu0 %v656
    %2634 = vmatprep.subr.bf16.mxu0 0
    %2635 = vmatpush1.bf16.msra.mxu0 0
    %2636 = vmatprep.subr.bf16.mxu0 0
    %2637 = vmatpush1.bf16.msra.mxu0 0
    %2638 = vmatprep.subr.bf16.mxu0 0
    %2639 = vmatpush1.bf16.msra.mxu0 0
    %2640 = vmatprep.subr.bf16.mxu0 0
    %2641 = vmatpush1.bf16.msra.mxu0 0
    %2642 = vmatprep.subr.bf16.mxu0 0
    %2643 = vmatpush1.bf16.msra.mxu0 0
    %2644 = vmatprep.subr.bf16.mxu0 0
    %2645 = vmatpush1.bf16.msra.mxu0 0
    %2646 = vmatprep.subr.bf16.mxu0 0
    %2647 = vmatpush1.bf16.msra.mxu0 0
    %2648 = vmatprep.subr.bf16.mxu0 0
    %2649 = vmatpush1.bf16.msra.mxu0 0
    %2650 = vmatprep.mubr.bf16.mxu0 0
    %2651 = vmatmul.mubr.bf16.gmra.mrb[0].mxu0 %v2428
    %v2652 = vpop.f32.mrb[0].mxu0
    %v2653 = vadd.f32 %v511, %v2652
    %v2654 = vpop.f32.mrb[0].mxu0
    %v2655 = vpop.f32.mrb[0].mxu0
    %v2656 = vpop.f32.mrb[0].mxu0
    %2657 = vdwg.mxu0
    %v2658 = vadd.f32 %v2572, %v2612
    %v2659 = vxor.u32 %v2658, 2147483648
    %v2660 = vmul.f32 %v2659, 1.442695
    %v2661 = vpow.pop %v2660
    %v2662 = vadd.f32 %v2661, 1.0
    %v2663 = vrcp.pop %v2662
    %v2664 = vmul.f32 1.0, %v2663
    %v2665 = vadd.f32 %v2573, %v2614
    %v2666 = vxor.u32 %v2665, 2147483648
    %v2667 = vmul.f32 %v2666, 1.442695
    %v2668 = vpow.pop %v2667
    %v2669 = vadd.f32 %v2668, 1.0
    %v2670 = vrcp.pop %v2669
    %v2671 = vmul.f32 1.0, %v2670
    %v2672 = vmul.f32 %v2664, %v2653
    %v2673 = vadd.f32 %v2574, %v2672
    %v2674 = vtanh.pop %v2673
    %v2675 = vsub.f32 1.0, %v2671
    %v2676 = vmul.f32 %v2675, %v2674
    %v2677 = vmul.f32 %v2671, %v2427
    %v2678 = vadd.f32 %v2676, %v2677
    %v2679 = vsel %vm2576, %v2678, %v2427
    %v2680 = vpack.c.bf16 %v2679, %v2679
    %v2681 = vpack.c.bf16 %v2571, %v2571
    %2682 = vmatprep.subr.bf16.mxu0 %v1011
    %2683 = vmatpush1.bf16.msra.mxu0 %v1010
    %2684 = vmatprep.subr.bf16.mxu0 %v1014
    %2685 = vmatpush1.bf16.msra.mxu0 %v1013
    %2686 = vmatprep.subr.bf16.mxu0 %v1017
    %2687 = vmatpush1.bf16.msra.mxu0 %v1016
    %2688 = vmatprep.subr.bf16.mxu0 %v1020
    %2689 = vmatpush1.bf16.msra.mxu0 %v1019
    %2690 = vmatprep.subr.bf16.mxu0 %v1023
    %2691 = vmatpush1.bf16.msra.mxu0 %v1022
    %2692 = vmatprep.subr.bf16.mxu0 %v1026
    %2693 = vmatpush1.bf16.msra.mxu0 %v1025
    %2694 = vmatprep.subr.bf16.mxu0 %v1029
    %2695 = vmatpush1.bf16.msra.mxu0 %v1028
    %2696 = vmatprep.subr.bf16.mxu0 %v1032
    %2697 = vmatpush1.bf16.msra.mxu0 %v1031
    %2698 = vmatprep.subr.bf16.mxu0 %v1035
    %2699 = vmatpush1.bf16.msra.mxu0 %v1034
    %2700 = vmatprep.subr.bf16.mxu0 %v1038
    %2701 = vmatpush1.bf16.msra.mxu0 %v1037
    %2702 = vmatprep.subr.bf16.mxu0 %v1041
    %2703 = vmatpush1.bf16.msra.mxu0 %v1040
    %2704 = vmatprep.subr.bf16.mxu0 %v1044
    %2705 = vmatpush1.bf16.msra.mxu0 %v1043
    %2706 = vmatprep.subr.bf16.mxu0 %v1047
    %2707 = vmatpush1.bf16.msra.mxu0 %v1046
    %2708 = vmatprep.subr.bf16.mxu0 %v1050
    %2709 = vmatpush1.bf16.msra.mxu0 %v1049
    %2710 = vmatprep.subr.bf16.mxu0 %v1053
    %2711 = vmatpush1.bf16.msra.mxu0 %v1052
    %2712 = vmatprep.subr.bf16.mxu0 %v1056
    %2713 = vmatpush1.bf16.msra.mxu0 %v1055
    %2714 = vmatprep.mubr.bf16.mxu0 %v2681
    %2715 = vmatmul.mubr.bf16.gmra.mrb[0].mxu0 %v2680
    %v2716 = vpop.f32.mrb[0].mxu0
    %v2717 = vadd.f32 %v512, %v2716
    %v2718 = vpop.f32.mrb[0].mxu0
    %v2719 = vadd.f32 %v513, %v2718
    %v2720 = vpop.f32.mrb[0].mxu0
    %v2721 = vpop.f32.mrb[0].mxu0
    %2722 = vdwg.mxu0
    %2723 = vmatprep.subr.bf16.mxu0 0
    %2724 = vmatpush1.bf16.msra.mxu0 %v1012
    %2725 = vmatprep.subr.bf16.mxu0 0
    %2726 = vmatpush1.bf16.msra.mxu0 %v1015
    %2727 = vmatprep.subr.bf16.mxu0 0
    %2728 = vmatpush1.bf16.msra.mxu0 %v1018
    %2729 = vmatprep.subr.bf16.mxu0 0
    %2730 = vmatpush1.bf16.msra.mxu0 %v1021
    %2731 = vmatprep.subr.bf16.mxu0 0
    %2732 = vmatpush1.bf16.msra.mxu0 %v1024
    %2733 = vmatprep.subr.bf16.mxu0 0
    %2734 = vmatpush1.bf16.msra.mxu0 %v1027
    %2735 = vmatprep.subr.bf16.mxu0 0
    %2736 = vmatpush1.bf16.msra.mxu0 %v1030
    %2737 = vmatprep.subr.bf16.mxu0 0
    %2738 = vmatpush1.bf16.msra.mxu0 %v1033
    %2739 = vmatprep.subr.bf16.mxu0 0
    %2740 = vmatpush1.bf16.msra.mxu0 %v1036
    %2741 = vmatprep.subr.bf16.mxu0 0
    %2742 = vmatpush1.bf16.msra.mxu0 %v1039
    %2743 = vmatprep.subr.bf16.mxu0 0
    %2744 = vmatpush1.bf16.msra.mxu0 %v1042
    %2745 = vmatprep.subr.bf16.mxu0 0
    %2746 = vmatpush1.bf16.msra.mxu0 %v1045
    %2747 = vmatprep.subr.bf16.mxu0 0
    %2748 = vmatpush1.bf16.msra.mxu0 %v1048
    %2749 = vmatprep.subr.bf16.mxu0 0
    %2750 = vmatpush1.bf16.msra.mxu0 %v1051
    %2751 = vmatprep.subr.bf16.mxu0 0
    %2752 = vmatpush1.bf16.msra.mxu0 %v1054
    %2753 = vmatprep.subr.bf16.mxu0 0
    %2754 = vmatpush1.bf16.msra.mxu0 %v1057
    %2755 = vmatprep.mubr.bf16.mxu0 %v2681
    %2756 = vmatmul.mubr.bf16.gmra.mrb[0].mxu0 %v2680
    %v2757 = vpop.f32.mrb[0].mxu0
    %v2758 = vadd.f32 %v514, %v2757
    %v2759 = vpop.f32.mrb[0].mxu0
    %v2760 = vpop.f32.mrb[0].mxu0
    %v2761 = vpop.f32.mrb[0].mxu0
    %2762 = vdwg.mxu0
    %2763 = vmatprep.subr.bf16.mxu0 0
    %2764 = vmatpush1.bf16.msra.mxu0 %v1235
    %2765 = vmatprep.subr.bf16.mxu0 0
    %2766 = vmatpush1.bf16.msra.mxu0 %v1236
    %2767 = vmatprep.subr.bf16.mxu0 0
    %2768 = vmatpush1.bf16.msra.mxu0 %v1237
    %2769 = vmatprep.subr.bf16.mxu0 0
    %2770 = vmatpush1.bf16.msra.mxu0 %v1238
    %2771 = vmatprep.subr.bf16.mxu0 0
    %2772 = vmatpush1.bf16.msra.mxu0 %v1239
    %2773 = vmatprep.subr.bf16.mxu0 0
    %2774 = vmatpush1.bf16.msra.mxu0 %v1240
    %2775 = vmatprep.subr.bf16.mxu0 0
    %2776 = vmatpush1.bf16.msra.mxu0 %v1241
    %2777 = vmatprep.subr.bf16.mxu0 0
    %2778 = vmatpush1.bf16.msra.mxu0 %v1242
    %2779 = vmatprep.subr.bf16.mxu0 0
    %2780 = vmatpush1.bf16.msra.mxu0 0
    %2781 = vmatprep.subr.bf16.mxu0 0
    %2782 = vmatpush1.bf16.msra.mxu0 0
    %2783 = vmatprep.subr.bf16.mxu0 0
    %2784 = vmatpush1.bf16.msra.mxu0 0
    %2785 = vmatprep.subr.bf16.mxu0 0
    %2786 = vmatpush1.bf16.msra.mxu0 0
    %2787 = vmatprep.subr.bf16.mxu0 0
    %2788 = vmatpush1.bf16.msra.mxu0 0
    %2789 = vmatprep.subr.bf16.mxu0 0
    %2790 = vmatpush1.bf16.msra.mxu0 0
    %2791 = vmatprep.subr.bf16.mxu0 0
    %2792 = vmatpush1.bf16.msra.mxu0 0
    %2793 = vmatprep.subr.bf16.mxu0 0
    %2794 = vmatpush1.bf16.msra.mxu0 0
    %2795 = vmatprep.mubr.bf16.mxu0 0
    %2796 = vmatmul.mubr.bf16.gmra.mrb[0].mxu0 %v2681
    %v2797 = vpop.f32.mrb[0].mxu0
    %v2798 = vadd.f32 %v515, %v2797
    %v2799 = vpop.f32.mrb[0].mxu0
    %v2800 = vpop.f32.mrb[0].mxu0
    %v2801 = vpop.f32.mrb[0].mxu0
    %2802 = vdwg.mxu0
    %v2803 = vxor.u32 %v2717, 2147483648
    %v2804 = vmul.f32 %v2803, 1.442695
    %v2805 = vpow.pop %v2804
    %v2806 = vadd.f32 %v2805, 1.0
    %v2807 = vrcp.pop %v2806
    %v2808 = vmul.f32 1.0, %v2807
    %v2809 = vxor.u32 %v2719, 2147483648
    %v2810 = vmul.f32 %v2809, 1.442695
    %v2811 = vpow.pop %v2810
    %v2812 = vadd.f32 %v2811, 1.0
    %v2813 = vrcp.pop %v2812
    %v2814 = vmul.f32 1.0, %v2813
    %v2815 = vsub.f32 %v2758, %v2798
    %v2816 = vmul.f32 %v2808, %v2798
    %v2817 = vadd.f32 %v2815, %v2816
    %v2818 = vtanh.pop %v2817
    %v2819 = vsub.f32 1.0, %v2814
    %v2820 = vmul.f32 %v2819, %v2818
    %v2821 = vmul.f32 %v2814, %v2571
    %v2822 = vadd.f32 %v2820, %v2821
    %v2823 = vsel %vm2576, %v2822, %v2571
    %v2824 = vld [vmem:[#allocation2 + $0xa8] sm:$0xff]
    %v2825 = vld [vmem:[#allocation2 + $0xb0] sm:$0xff]
    %v2826 = vld [vmem:[#allocation2 + $0xb8] sm:$0xff]
    %v2827 = vld [vmem:[%s0 + $0x38] sm:$0xff]
    %vm2828 = vcmp.ne.s32.totalorder %v2827, 0
    %2829 = vmatprep.subr.bf16.mxu0 %v634
    %2830 = vmatpush1.bf16.msra.mxu0 %v633
    %2831 = vmatprep.subr.bf16.mxu0 %v637
    %2832 = vmatpush1.bf16.msra.mxu0 %v636
    %2833 = vmatprep.subr.bf16.mxu0 %v640
    %2834 = vmatpush1.bf16.msra.mxu0 %v639
    %2835 = vmatprep.subr.bf16.mxu0 %v643
    %2836 = vmatpush1.bf16.msra.mxu0 %v642
    %2837 = vmatprep.subr.bf16.mxu0 %v646
    %2838 = vmatpush1.bf16.msra.mxu0 %v645
    %2839 = vmatprep.subr.bf16.mxu0 %v649
    %2840 = vmatpush1.bf16.msra.mxu0 %v648
    %2841 = vmatprep.subr.bf16.mxu0 %v652
    %2842 = vmatpush1.bf16.msra.mxu0 %v651
    %2843 = vmatprep.subr.bf16.mxu0 %v655
    %2844 = vmatpush1.bf16.msra.mxu0 %v654
    %2845 = vmatprep.subr.bf16.mxu0 0
    %2846 = vmatpush1.bf16.msra.mxu0 0
    %2847 = vmatprep.subr.bf16.mxu0 0
    %2848 = vmatpush1.bf16.msra.mxu0 0
    %2849 = vmatprep.subr.bf16.mxu0 0
    %2850 = vmatpush1.bf16.msra.mxu0 0
    %2851 = vmatprep.subr.bf16.mxu0 0
    %2852 = vmatpush1.bf16.msra.mxu0 0
    %2853 = vmatprep.subr.bf16.mxu0 0
    %2854 = vmatpush1.bf16.msra.mxu0 0
    %2855 = vmatprep.subr.bf16.mxu0 0
    %2856 = vmatpush1.bf16.msra.mxu0 0
    %2857 = vmatprep.subr.bf16.mxu0 0
    %2858 = vmatpush1.bf16.msra.mxu0 0
    %2859 = vmatprep.subr.bf16.mxu0 0
    %2860 = vmatpush1.bf16.msra.mxu0 0
    %2861 = vmatprep.mubr.bf16.mxu0 0
    %2862 = vmatmul.mubr.bf16.gmra.mrb[0].mxu0 %v2680
    %v2863 = vpop.f32.mrb[0].mxu0
    %v2864 = vadd.f32 %v509, %v2863
    %v2865 = vpop.f32.mrb[0].mxu0
    %v2866 = vadd.f32 %v510, %v2865
    %v2867 = vpop.f32.mrb[0].mxu0
    %v2868 = vpop.f32.mrb[0].mxu0
    %2869 = vdwg.mxu0
    %2870 = vmatprep.subr.bf16.mxu0 0
    %2871 = vmatpush1.bf16.msra.mxu0 %v635
    %2872 = vmatprep.subr.bf16.mxu0 0
    %2873 = vmatpush1.bf16.msra.mxu0 %v638
    %2874 = vmatprep.subr.bf16.mxu0 0
    %2875 = vmatpush1.bf16.msra.mxu0 %v641
    %2876 = vmatprep.subr.bf16.mxu0 0
    %2877 = vmatpush1.bf16.msra.mxu0 %v644
    %2878 = vmatprep.subr.bf16.mxu0 0
    %2879 = vmatpush1.bf16.msra.mxu0 %v647
    %2880 = vmatprep.subr.bf16.mxu0 0
    %2881 = vmatpush1.bf16.msra.mxu0 %v650
    %2882 = vmatprep.subr.bf16.mxu0 0
    %2883 = vmatpush1.bf16.msra.mxu0 %v653
    %2884 = vmatprep.subr.bf16.mxu0 0
    %2885 = vmatpush1.bf16.msra.mxu0 %v656
    %2886 = vmatprep.subr.bf16.mxu0 0
    %2887 = vmatpush1.bf16.msra.mxu0 0
    %2888 = vmatprep.subr.bf16.mxu0 0
    %2889 = vmatpush1.bf16.msra.mxu0 0
    %2890 = vmatprep.subr.bf16.mxu0 0
    %2891 = vmatpush1.bf16.msra.mxu0 0
    %2892 = vmatprep.subr.bf16.mxu0 0
    %2893 = vmatpush1.bf16.msra.mxu0 0
    %2894 = vmatprep.subr.bf16.mxu0 0
    %2895 = vmatpush1.bf16.msra.mxu0 0
    %2896 = vmatprep.subr.bf16.mxu0 0
    %2897 = vmatpush1.bf16.msra.mxu0 0
    %2898 = vmatprep.subr.bf16.mxu0 0
    %2899 = vmatpush1.bf16.msra.mxu0 0
    %2900 = vmatprep.subr.bf16.mxu0 0
    %2901 = vmatpush1.bf16.msra.mxu0 0
    %2902 = vmatprep.mubr.bf16.mxu0 0
    %2903 = vmatmul.mubr.bf16.gmra.mrb[0].mxu0 %v2680
    %v2904 = vpop.f32.mrb[0].mxu0
    %v2905 = vadd.f32 %v511, %v2904
    %v2906 = vpop.f32.mrb[0].mxu0
    %v2907 = vpop.f32.mrb[0].mxu0
    %v2908 = vpop.f32.mrb[0].mxu0
    %2909 = vdwg.mxu0
    %v2910 = vadd.f32 %v2824, %v2864
    %v2911 = vxor.u32 %v2910, 2147483648
    %v2912 = vmul.f32 %v2911, 1.442695
    %v2913 = vpow.pop %v2912
    %v2914 = vadd.f32 %v2913, 1.0
    %v2915 = vrcp.pop %v2914
    %v2916 = vmul.f32 1.0, %v2915
    %v2917 = vadd.f32 %v2825, %v2866
    %v2918 = vxor.u32 %v2917, 2147483648
    %v2919 = vmul.f32 %v2918, 1.442695
    %v2920 = vpow.pop %v2919
    %v2921 = vadd.f32 %v2920, 1.0
    %v2922 = vrcp.pop %v2921
    %v2923 = vmul.f32 1.0, %v2922
    %v2924 = vmul.f32 %v2916, %v2905
    %v2925 = vadd.f32 %v2826, %v2924
    %v2926 = vtanh.pop %v2925
    %v2927 = vsub.f32 1.0, %v2923
    %v2928 = vmul.f32 %v2927, %v2926
    %v2929 = vmul.f32 %v2923, %v2679
    %v2930 = vadd.f32 %v2928, %v2929
    %v2931 = vsel %vm2828, %v2930, %v2679
    %v2932 = vpack.c.bf16 %v2931, %v2931
    %v2933 = vpack.c.bf16 %v2823, %v2823
    %2934 = vmatprep.subr.bf16.mxu0 %v1011
    %2935 = vmatpush1.bf16.msra.mxu0 %v1010
    %2936 = vmatprep.subr.bf16.mxu0 %v1014
    %2937 = vmatpush1.bf16.msra.mxu0 %v1013
    %2938 = vmatprep.subr.bf16.mxu0 %v1017
    %2939 = vmatpush1.bf16.msra.mxu0 %v1016
    %2940 = vmatprep.subr.bf16.mxu0 %v1020
    %2941 = vmatpush1.bf16.msra.mxu0 %v1019
    %2942 = vmatprep.subr.bf16.mxu0 %v1023
    %2943 = vmatpush1.bf16.msra.mxu0 %v1022
    %2944 = vmatprep.subr.bf16.mxu0 %v1026
    %2945 = vmatpush1.bf16.msra.mxu0 %v1025
    %2946 = vmatprep.subr.bf16.mxu0 %v1029
    %2947 = vmatpush1.bf16.msra.mxu0 %v1028
    %2948 = vmatprep.subr.bf16.mxu0 %v1032
    %2949 = vmatpush1.bf16.msra.mxu0 %v1031
    %2950 = vmatprep.subr.bf16.mxu0 %v1035
    %2951 = vmatpush1.bf16.msra.mxu0 %v1034
    %2952 = vmatprep.subr.bf16.mxu0 %v1038
    %2953 = vmatpush1.bf16.msra.mxu0 %v1037
    %2954 = vmatprep.subr.bf16.mxu0 %v1041
    %2955 = vmatpush1.bf16.msra.mxu0 %v1040
    %2956 = vmatprep.subr.bf16.mxu0 %v1044
    %2957 = vmatpush1.bf16.msra.mxu0 %v1043
    %2958 = vmatprep.subr.bf16.mxu0 %v1047
    %2959 = vmatpush1.bf16.msra.mxu0 %v1046
    %2960 = vmatprep.subr.bf16.mxu0 %v1050
    %2961 = vmatpush1.bf16.msra.mxu0 %v1049
    %2962 = vmatprep.subr.bf16.mxu0 %v1053
    %2963 = vmatpush1.bf16.msra.mxu0 %v1052
    %2964 = vmatprep.subr.bf16.mxu0 %v1056
    %2965 = vmatpush1.bf16.msra.mxu0 %v1055
    %2966 = vmatprep.mubr.bf16.mxu0 %v2933
    %2967 = vmatmul.mubr.bf16.gmra.mrb[0].mxu0 %v2932
    %v2968 = vpop.f32.mrb[0].mxu0
    %v2969 = vadd.f32 %v512, %v2968
    %v2970 = vpop.f32.mrb[0].mxu0
    %v2971 = vadd.f32 %v513, %v2970
    %v2972 = vpop.f32.mrb[0].mxu0
    %v2973 = vpop.f32.mrb[0].mxu0
    %2974 = vdwg.mxu0
    %2975 = vmatprep.subr.bf16.mxu0 0
    %2976 = vmatpush1.bf16.msra.mxu0 %v1012
    %2977 = vmatprep.subr.bf16.mxu0 0
    %2978 = vmatpush1.bf16.msra.mxu0 %v1015
    %2979 = vmatprep.subr.bf16.mxu0 0
    %2980 = vmatpush1.bf16.msra.mxu0 %v1018
    %2981 = vmatprep.subr.bf16.mxu0 0
    %2982 = vmatpush1.bf16.msra.mxu0 %v1021
    %2983 = vmatprep.subr.bf16.mxu0 0
    %2984 = vmatpush1.bf16.msra.mxu0 %v1024
    %2985 = vmatprep.subr.bf16.mxu0 0
    %2986 = vmatpush1.bf16.msra.mxu0 %v1027
    %2987 = vmatprep.subr.bf16.mxu0 0
    %2988 = vmatpush1.bf16.msra.mxu0 %v1030
    %2989 = vmatprep.subr.bf16.mxu0 0
    %2990 = vmatpush1.bf16.msra.mxu0 %v1033
    %2991 = vmatprep.subr.bf16.mxu0 0
    %2992 = vmatpush1.bf16.msra.mxu0 %v1036
    %2993 = vmatprep.subr.bf16.mxu0 0
    %2994 = vmatpush1.bf16.msra.mxu0 %v1039
    %2995 = vmatprep.subr.bf16.mxu0 0
    %2996 = vmatpush1.bf16.msra.mxu0 %v1042
    %2997 = vmatprep.subr.bf16.mxu0 0
    %2998 = vmatpush1.bf16.msra.mxu0 %v1045
    %2999 = vmatprep.subr.bf16.mxu0 0
    %3000 = vmatpush1.bf16.msra.mxu0 %v1048
    %3001 = vmatprep.subr.bf16.mxu0 0
    %3002 = vmatpush1.bf16.msra.mxu0 %v1051
    %3003 = vmatprep.subr.bf16.mxu0 0
    %3004 = vmatpush1.bf16.msra.mxu0 %v1054
    %3005 = vmatprep.subr.bf16.mxu0 0
    %3006 = vmatpush1.bf16.msra.mxu0 %v1057
    %3007 = vmatprep.mubr.bf16.mxu0 %v2933
    %3008 = vmatmul.mubr.bf16.gmra.mrb[0].mxu0 %v2932
    %v3009 = vpop.f32.mrb[0].mxu0
    %v3010 = vadd.f32 %v514, %v3009
    %v3011 = vpop.f32.mrb[0].mxu0
    %v3012 = vpop.f32.mrb[0].mxu0
    %v3013 = vpop.f32.mrb[0].mxu0
    %3014 = vdwg.mxu0
    %3015 = vmatprep.subr.bf16.mxu0 0
    %3016 = vmatpush1.bf16.msra.mxu0 %v1235
    %3017 = vmatprep.subr.bf16.mxu0 0
    %3018 = vmatpush1.bf16.msra.mxu0 %v1236
    %3019 = vmatprep.subr.bf16.mxu0 0
    %3020 = vmatpush1.bf16.msra.mxu0 %v1237
    %3021 = vmatprep.subr.bf16.mxu0 0
    %3022 = vmatpush1.bf16.msra.mxu0 %v1238
    %3023 = vmatprep.subr.bf16.mxu0 0
    %3024 = vmatpush1.bf16.msra.mxu0 %v1239
    %3025 = vmatprep.subr.bf16.mxu0 0
    %3026 = vmatpush1.bf16.msra.mxu0 %v1240
    %3027 = vmatprep.subr.bf16.mxu0 0
    %3028 = vmatpush1.bf16.msra.mxu0 %v1241
    %3029 = vmatprep.subr.bf16.mxu0 0
    %3030 = vmatpush1.bf16.msra.mxu0 %v1242
    %3031 = vmatprep.subr.bf16.mxu0 0
    %3032 = vmatpush1.bf16.msra.mxu0 0
    %3033 = vmatprep.subr.bf16.mxu0 0
    %3034 = vmatpush1.bf16.msra.mxu0 0
    %3035 = vmatprep.subr.bf16.mxu0 0
    %3036 = vmatpush1.bf16.msra.mxu0 0
    %3037 = vmatprep.subr.bf16.mxu0 0
    %3038 = vmatpush1.bf16.msra.mxu0 0
    %3039 = vmatprep.subr.bf16.mxu0 0
    %3040 = vmatpush1.bf16.msra.mxu0 0
    %3041 = vmatprep.subr.bf16.mxu0 0
    %3042 = vmatpush1.bf16.msra.mxu0 0
    %3043 = vmatprep.subr.bf16.mxu0 0
    %3044 = vmatpush1.bf16.msra.mxu0 0
    %3045 = vmatprep.subr.bf16.mxu0 0
    %3046 = vmatpush1.bf16.msra.mxu0 0
    %3047 = vmatprep.mubr.bf16.mxu0 0
    %3048 = vmatmul.mubr.bf16.gmra.mrb[0].mxu0 %v2933
    %v3049 = vpop.f32.mrb[0].mxu0
    %v3050 = vadd.f32 %v515, %v3049
    %v3051 = vpop.f32.mrb[0].mxu0
    %v3052 = vpop.f32.mrb[0].mxu0
    %v3053 = vpop.f32.mrb[0].mxu0
    %3054 = vdwg.mxu0
    %v3055 = vxor.u32 %v2969, 2147483648
    %v3056 = vmul.f32 %v3055, 1.442695
    %v3057 = vpow.pop %v3056
    %v3058 = vadd.f32 %v3057, 1.0
    %v3059 = vrcp.pop %v3058
    %v3060 = vmul.f32 1.0, %v3059
    %v3061 = vxor.u32 %v2971, 2147483648
    %v3062 = vmul.f32 %v3061, 1.442695
    %v3063 = vpow.pop %v3062
    %v3064 = vadd.f32 %v3063, 1.0
    %v3065 = vrcp.pop %v3064
    %v3066 = vmul.f32 1.0, %v3065
    %v3067 = vsub.f32 %v3010, %v3050
    %v3068 = vmul.f32 %v3060, %v3050
    %v3069 = vadd.f32 %v3067, %v3068
    %v3070 = vtanh.pop %v3069
    %v3071 = vsub.f32 1.0, %v3066
    %v3072 = vmul.f32 %v3071, %v3070
    %v3073 = vmul.f32 %v3066, %v2823
    %v3074 = vadd.f32 %v3072, %v3073
    %v3075 = vsel %vm2828, %v3074, %v2823
    %v3076 = vld [vmem:[#allocation18] sm:$0xf]
    %v3077 = vld [vmem:[#allocation18 + $0x4] sm:$0xf]
    %v3078 = vld [vmem:[#allocation18 + $0x8] sm:$0xf]
    %v3079 = vld [vmem:[#allocation18 + $0xc] sm:$0xf]
    %v3080 = vld [vmem:[#allocation18 + $0x10] sm:$0xf]
    %v3081 = vld [vmem:[#allocation18 + $0x14] sm:$0xf]
    %v3082 = vld [vmem:[#allocation18 + $0x18] sm:$0xf]
    %v3083 = vld [vmem:[#allocation18 + $0x1c] sm:$0xf]
    %v3084 = vld [vmem:[#allocation18 + $0x20] sm:$0xf]
    %v3085 = vld [vmem:[#allocation18 + $0x24] sm:$0xf]
    %v3086 = vld [vmem:[#allocation18 + $0x28] sm:$0xf]
    %v3087 = vld [vmem:[#allocation18 + $0x2c] sm:$0xf]
    %v3088 = vld [vmem:[#allocation18 + $0x30] sm:$0xf]
    %v3089 = vld [vmem:[#allocation18 + $0x34] sm:$0xf]
    %v3090 = vld [vmem:[#allocation18 + $0x38] sm:$0xf]
    %v3091 = vld [vmem:[#allocation18 + $0x3c] sm:$0xf]
    %v3092 = vpack.c.bf16 %v3075, %v3075
    %v3093 = vld [vmem:[#allocation20] sm:$0xff]
    %v3110 = vunpack.c.l.b16 %v3076
    %v3111 = vunpack.c.l.b16 %v3077
    %v3112 = vunpack.c.l.b16 %v3078
    %v3113 = vunpack.c.l.b16 %v3079
    %v3114 = vunpack.c.l.b16 %v3080
    %v3115 = vunpack.c.l.b16 %v3081
    %v3116 = vunpack.c.l.b16 %v3082
    %v3117 = vunpack.c.l.b16 %v3083
    %v3118 = vunpack.c.l.b16 %v3084
    %v3119 = vunpack.c.l.b16 %v3085
    %v3120 = vunpack.c.l.b16 %v3086
    %v3121 = vunpack.c.l.b16 %v3087
    %v3122 = vunpack.c.l.b16 %v3088
    %v3123 = vunpack.c.l.b16 %v3089
    %v3124 = vunpack.c.l.b16 %v3090
    %v3125 = vunpack.c.l.b16 %v3091
    %v3126 = vpack.c.b16 %v3111, %v3110
    %v3127 = vpack.c.b16 %v3113, %v3112
    %v3128 = vpack.c.b16 %v3115, %v3114
    %v3129 = vpack.c.b16 %v3117, %v3116
    %v3130 = vpack.c.b16 %v3119, %v3118
    %v3131 = vpack.c.b16 %v3121, %v3120
    %v3132 = vpack.c.b16 %v3123, %v3122
    %v3133 = vpack.c.b16 %v3125, %v3124
    %3142 = vmatprep.subr.bf16.mxu0 0
    %3143 = vmatpush1.bf16.msra.mxu0 %v3126
    %3144 = vmatprep.subr.bf16.mxu0 0
    %3145 = vmatpush1.bf16.msra.mxu0 %v3127
    %3146 = vmatprep.subr.bf16.mxu0 0
    %3147 = vmatpush1.bf16.msra.mxu0 %v3128
    %3148 = vmatprep.subr.bf16.mxu0 0
    %3149 = vmatpush1.bf16.msra.mxu0 %v3129
    %3150 = vmatprep.subr.bf16.mxu0 0
    %3151 = vmatpush1.bf16.msra.mxu0 %v3130
    %3152 = vmatprep.subr.bf16.mxu0 0
    %3153 = vmatpush1.bf16.msra.mxu0 %v3131
    %3154 = vmatprep.subr.bf16.mxu0 0
    %3155 = vmatpush1.bf16.msra.mxu0 %v3132
    %3156 = vmatprep.subr.bf16.mxu0 0
    %3157 = vmatpush1.bf16.msra.mxu0 %v3133
    %3158 = vmatprep.subr.bf16.mxu0 0
    %3159 = vmatpush1.bf16.msra.mxu0 0
    %3160 = vmatprep.subr.bf16.mxu0 0
    %3161 = vmatpush1.bf16.msra.mxu0 0
    %3162 = vmatprep.subr.bf16.mxu0 0
    %3163 = vmatpush1.bf16.msra.mxu0 0
    %3164 = vmatprep.subr.bf16.mxu0 0
    %3165 = vmatpush1.bf16.msra.mxu0 0
    %3166 = vmatprep.subr.bf16.mxu0 0
    %3167 = vmatpush1.bf16.msra.mxu0 0
    %3168 = vmatprep.subr.bf16.mxu0 0
    %3169 = vmatpush1.bf16.msra.mxu0 0
    %3170 = vmatprep.subr.bf16.mxu0 0
    %3171 = vmatpush1.bf16.msra.mxu0 0
    %3172 = vmatprep.subr.bf16.mxu0 0
    %3173 = vmatpush1.bf16.msra.mxu0 0
    %3174 = vmatprep.mubr.bf16.mxu0 0
    %3175 = vmatmul.mubr.bf16.gmra.mrb[0].mxu0 %v3092
    %v3176 = vpop.f32.mrb[0].mxu0
    %v3177 = vadd.f32 %v3093, %v3176
    %v3178 = vpop.f32.mrb[0].mxu0
    %v3179 = vpop.f32.mrb[0].mxu0
    %v3180 = vpop.f32.mrb[0].mxu0
    %3181 = vdwg.mxu0
    %v3182 = vtanh.pop %v3177
    %v3183 = vld [vmem:[#allocation3] sm:$0xff]
    %v3184 = vld [vmem:[#allocation21] sm:$0xf]
    %v3185 = vld [vmem:[#allocation21 + $0x4] sm:$0xf]
    %v3186 = vld [vmem:[#allocation21 + $0x8] sm:$0xf]
    %v3187 = vpack.c.bf16 %v3183, %v3183
    %v3188 = vld [vmem:[#allocation23] sm:$0xff]
    %v3192 = vunpack.c.l.b16 %v3184
    %v3193 = vunpack.c.l.b16 %v3185
    %v3194 = vunpack.c.l.b16 %v3186
    %v3195 = vpack.c.b16 %v3193, %v3192
    %v3196 = vpack.c.b16 %v3194, %v3194
    %vm3198 = vcmask 195584
    %v3200 = vsel %vm3198, %v3187, 0
    %v3203 = vsel %vm337, %v3196, 0
    %3205 = vmatprep.subr.bf16.mxu0 0
    %3206 = vmatpush1.bf16.msra.mxu0 %v3195
    %3207 = vmatprep.subr.bf16.mxu0 0
    %3208 = vmatpush1.bf16.msra.mxu0 %v3203
    %3209 = vmatprep.subr.bf16.mxu0 0
    %3210 = vmatpush1.bf16.msra.mxu0 0
    %3211 = vmatprep.subr.bf16.mxu0 0
    %3212 = vmatpush1.bf16.msra.mxu0 0
    %3213 = vmatprep.subr.bf16.mxu0 0
    %3214 = vmatpush1.bf16.msra.mxu0 0
    %3215 = vmatprep.subr.bf16.mxu0 0
    %3216 = vmatpush1.bf16.msra.mxu0 0
    %3217 = vmatprep.subr.bf16.mxu0 0
    %3218 = vmatpush1.bf16.msra.mxu0 0
    %3219 = vmatprep.subr.bf16.mxu0 0
    %3220 = vmatpush1.bf16.msra.mxu0 0
    %3221 = vmatprep.subr.bf16.mxu0 0
    %3222 = vmatpush1.bf16.msra.mxu0 0
    %3223 = vmatprep.subr.bf16.mxu0 0
    %3224 = vmatpush1.bf16.msra.mxu0 0
    %3225 = vmatprep.subr.bf16.mxu0 0
    %3226 = vmatpush1.bf16.msra.mxu0 0
    %3227 = vmatprep.subr.bf16.mxu0 0
    %3228 = vmatpush1.bf16.msra.mxu0 0
    %3229 = vmatprep.subr.bf16.mxu0 0
    %3230 = vmatpush1.bf16.msra.mxu0 0
    %3231 = vmatprep.subr.bf16.mxu0 0
    %3232 = vmatpush1.bf16.msra.mxu0 0
    %3233 = vmatprep.subr.bf16.mxu0 0
    %3234 = vmatpush1.bf16.msra.mxu0 0
    %3235 = vmatprep.subr.bf16.mxu0 0
    %3236 = vmatpush1.bf16.msra.mxu0 0
    %3237 = vmatprep.mubr.bf16.mxu0 0
    %3238 = vmatmul.mubr.bf16.gmra.mrb[0].mxu0 %v3200
    %v3239 = vpop.f32.mrb[0].mxu0
    %v3240 = vadd.f32 %v3188, %v3239
    %v3241 = vpop.f32.mrb[0].mxu0
    %v3242 = vpop.f32.mrb[0].mxu0
    %v3243 = vpop.f32.mrb[0].mxu0
    %3244 = vdwg.mxu0
    %v3245 = vtanh.pop %v3240
    %v3246 = vld [vmem:[%s15] sm:$0xf]
    %v3247 = vld [vmem:[%s15 + $0x4] sm:$0xf]
    %v3248 = vld [vmem:[%s15 + $0x8] sm:$0xf]
    %v3249 = vld [vmem:[%s15 + $0xc] sm:$0xf]
    %v3250 = vld [vmem:[%s15 + $0x10] sm:$0xf]
    %v3251 = vld [vmem:[%s15 + $0x14] sm:$0xf]
    %v3252 = vld [vmem:[%s15 + $0x18] sm:$0xf]
    %v3253 = vld [vmem:[%s15 + $0x1c] sm:$0xf]
    %v3254 = vld [vmem:[%s15 + $0x20] sm:$0xf]
    %v3255 = vld [vmem:[%s15 + $0x24] sm:$0xf]
    %v3256 = vld [vmem:[%s15 + $0x28] sm:$0xf]
    %v3257 = vld [vmem:[%s15 + $0x2c] sm:$0xf]
    %v3258 = vld [vmem:[%s15 + $0x30] sm:$0xf]
    %v3259 = vld [vmem:[%s15 + $0x34] sm:$0xf]
    %v3260 = vld [vmem:[%s15 + $0x38] sm:$0xf]
    %v3261 = vld [vmem:[%s15 + $0x3c] sm:$0xf]
    %v3262 = vpack.c.bf16 %v3182, %v3182
    %v3263 = vld [vmem:[#allocation24] sm:$0xf]
    %v3264 = vld [vmem:[#allocation24 + $0x4] sm:$0xf]
    %v3265 = vld [vmem:[#allocation24 + $0x8] sm:$0xf]
    %v3266 = vld [vmem:[#allocation24 + $0xc] sm:$0xf]
    %v3267 = vld [vmem:[#allocation24 + $0x10] sm:$0xf]
    %v3268 = vld [vmem:[#allocation24 + $0x14] sm:$0xf]
    %v3269 = vld [vmem:[#allocation24 + $0x18] sm:$0xf]
    %v3270 = vld [vmem:[#allocation24 + $0x1c] sm:$0xf]
    %v3271 = vld [vmem:[#allocation24 + $0x20] sm:$0xf]
    %v3272 = vld [vmem:[#allocation24 + $0x24] sm:$0xf]
    %v3273 = vld [vmem:[#allocation24 + $0x28] sm:$0xf]
    %v3274 = vld [vmem:[#allocation24 + $0x2c] sm:$0xf]
    %v3275 = vld [vmem:[#allocation24 + $0x30] sm:$0xf]
    %v3276 = vld [vmem:[#allocation24 + $0x34] sm:$0xf]
    %v3277 = vld [vmem:[#allocation24 + $0x38] sm:$0xf]
    %v3278 = vld [vmem:[#allocation24 + $0x3c] sm:$0xf]
    %v3279 = vpack.c.bf16 %v3245, %v3245
    %v3296 = vunpack.c.l.b16 %v3263
    %v3297 = vunpack.c.l.b16 %v3264
    %v3298 = vunpack.c.l.b16 %v3265
    %v3299 = vunpack.c.l.b16 %v3266
    %v3300 = vunpack.c.l.b16 %v3267
    %v3301 = vunpack.c.l.b16 %v3268
    %v3302 = vunpack.c.l.b16 %v3269
    %v3303 = vunpack.c.l.b16 %v3270
    %v3304 = vunpack.c.l.b16 %v3271
    %v3305 = vunpack.c.l.b16 %v3272
    %v3306 = vunpack.c.l.b16 %v3273
    %v3307 = vunpack.c.l.b16 %v3274
    %v3308 = vunpack.c.l.b16 %v3275
    %v3309 = vunpack.c.l.b16 %v3276
    %v3310 = vunpack.c.l.b16 %v3277
    %v3311 = vunpack.c.l.b16 %v3278
    %v3312 = vpack.c.b16 %v3297, %v3296
    %v3313 = vpack.c.b16 %v3299, %v3298
    %v3314 = vpack.c.b16 %v3301, %v3300
    %v3315 = vpack.c.b16 %v3303, %v3302
    %v3316 = vpack.c.b16 %v3305, %v3304
    %v3317 = vpack.c.b16 %v3307, %v3306
    %v3318 = vpack.c.b16 %v3309, %v3308
    %v3319 = vpack.c.b16 %v3311, %v3310
    %3328 = vmatprep.subr.bf16.mxu0 0
    %3329 = vmatpush1.bf16.msra.mxu0 %v3312
    %3330 = vmatprep.subr.bf16.mxu0 0
    %3331 = vmatpush1.bf16.msra.mxu0 %v3313
    %3332 = vmatprep.subr.bf16.mxu0 0
    %3333 = vmatpush1.bf16.msra.mxu0 %v3314
    %3334 = vmatprep.subr.bf16.mxu0 0
    %3335 = vmatpush1.bf16.msra.mxu0 %v3315
    %3336 = vmatprep.subr.bf16.mxu0 0
    %3337 = vmatpush1.bf16.msra.mxu0 %v3316
    %3338 = vmatprep.subr.bf16.mxu0 0
    %3339 = vmatpush1.bf16.msra.mxu0 %v3317
    %3340 = vmatprep.subr.bf16.mxu0 0
    %3341 = vmatpush1.bf16.msra.mxu0 %v3318
    %3342 = vmatprep.subr.bf16.mxu0 0
    %3343 = vmatpush1.bf16.msra.mxu0 %v3319
    %3344 = vmatprep.subr.bf16.mxu0 0
    %3345 = vmatpush1.bf16.msra.mxu0 0
    %3346 = vmatprep.subr.bf16.mxu0 0
    %3347 = vmatpush1.bf16.msra.mxu0 0
    %3348 = vmatprep.subr.bf16.mxu0 0
    %3349 = vmatpush1.bf16.msra.mxu0 0
    %3350 = vmatprep.subr.bf16.mxu0 0
    %3351 = vmatpush1.bf16.msra.mxu0 0
    %3352 = vmatprep.subr.bf16.mxu0 0
    %3353 = vmatpush1.bf16.msra.mxu0 0
    %3354 = vmatprep.subr.bf16.mxu0 0
    %3355 = vmatpush1.bf16.msra.mxu0 0
    %3356 = vmatprep.subr.bf16.mxu0 0
    %3357 = vmatpush1.bf16.msra.mxu0 0
    %3358 = vmatprep.subr.bf16.mxu0 0
    %3359 = vmatpush1.bf16.msra.mxu0 0
    %3360 = vmatprep.mubr.bf16.mxu0 0
    %3361 = vmatmul.mubr.bf16.gmra.mrb[0].mxu0 %v3279
    %v3362 = vpop.f32.mrb[0].mxu0
    %v3363 = vadd.f32 0.0, %v3362
    %v3364 = vpop.f32.mrb[0].mxu0
    %v3365 = vpop.f32.mrb[0].mxu0
    %v3366 = vpop.f32.mrb[0].mxu0
    %3367 = vdwg.mxu0
    %v3384 = vunpack.c.l.b16 %v3246
    %v3385 = vunpack.c.l.b16 %v3247
    %v3386 = vunpack.c.l.b16 %v3248
    %v3387 = vunpack.c.l.b16 %v3249
    %v3388 = vunpack.c.l.b16 %v3250
    %v3389 = vunpack.c.l.b16 %v3251
    %v3390 = vunpack.c.l.b16 %v3252
    %v3391 = vunpack.c.l.b16 %v3253
    %v3392 = vunpack.c.l.b16 %v3254
    %v3393 = vunpack.c.l.b16 %v3255
    %v3394 = vunpack.c.l.b16 %v3256
    %v3395 = vunpack.c.l.b16 %v3257
    %v3396 = vunpack.c.l.b16 %v3258
    %v3397 = vunpack.c.l.b16 %v3259
    %v3398 = vunpack.c.l.b16 %v3260
    %v3399 = vunpack.c.l.b16 %v3261
    %v3400 = vpack.c.b16 %v3385, %v3384
    %v3401 = vpack.c.b16 %v3387, %v3386
    %v3402 = vpack.c.b16 %v3389, %v3388
    %v3403 = vpack.c.b16 %v3391, %v3390
    %v3404 = vpack.c.b16 %v3393, %v3392
    %v3405 = vpack.c.b16 %v3395, %v3394
    %v3406 = vpack.c.b16 %v3397, %v3396
    %v3407 = vpack.c.b16 %v3399, %v3398
    %3416 = vmatprep.subr.bf16.mxu0 0
    %3417 = vmatpush1.bf16.msra.mxu0 %v3400
    %3418 = vmatprep.subr.bf16.mxu0 0
    %3419 = vmatpush1.bf16.msra.mxu0 %v3401
    %3420 = vmatprep.subr.bf16.mxu0 0
    %3421 = vmatpush1.bf16.msra.mxu0 %v3402
    %3422 = vmatprep.subr.bf16.mxu0 0
    %3423 = vmatpush1.bf16.msra.mxu0 %v3403
    %3424 = vmatprep.subr.bf16.mxu0 0
    %3425 = vmatpush1.bf16.msra.mxu0 %v3404
    %3426 = vmatprep.subr.bf16.mxu0 0
    %3427 = vmatpush1.bf16.msra.mxu0 %v3405
    %3428 = vmatprep.subr.bf16.mxu0 0
    %3429 = vmatpush1.bf16.msra.mxu0 %v3406
    %3430 = vmatprep.subr.bf16.mxu0 0
    %3431 = vmatpush1.bf16.msra.mxu0 %v3407
    %3432 = vmatprep.subr.bf16.mxu0 0
    %3433 = vmatpush1.bf16.msra.mxu0 0
    %3434 = vmatprep.subr.bf16.mxu0 0
    %3435 = vmatpush1.bf16.msra.mxu0 0
    %3436 = vmatprep.subr.bf16.mxu0 0
    %3437 = vmatpush1.bf16.msra.mxu0 0
    %3438 = vmatprep.subr.bf16.mxu0 0
    %3439 = vmatpush1.bf16.msra.mxu0 0
    %3440 = vmatprep.subr.bf16.mxu0 0
    %3441 = vmatpush1.bf16.msra.mxu0 0
    %3442 = vmatprep.subr.bf16.mxu0 0
    %3443 = vmatpush1.bf16.msra.mxu0 0
    %3444 = vmatprep.subr.bf16.mxu0 0
    %3445 = vmatpush1.bf16.msra.mxu0 0
    %3446 = vmatprep.subr.bf16.mxu0 0
    %3447 = vmatpush1.bf16.msra.mxu0 0
    %3448 = vmatprep.mubr.bf16.mxu0 0
    %3449 = vmatmul.mubr.bf16.gmra.mrb[0].mxu0 %v3262
    %v3450 = vpop.f32.mrb[0].mxu0
    %v3451 = vadd.f32 %v3363, %v3450
    %v3452 = vpop.f32.mrb[0].mxu0
    %v3453 = vpop.f32.mrb[0].mxu0
    %v3454 = vpop.f32.mrb[0].mxu0
    %3455 = vdwg.mxu0
    %v3456 = vld [vmem:[%s17] sm:$0xff]
    %v3457 = vadd.f32 %v3451, %v3456
    %v3458 = vmax.f32 %v3457, 0.0
    %v3459 = vld [vmem:[#allocation26] sm:$0xf]
    %v3460 = vld [vmem:[#allocation26 + $0x4] sm:$0xf]
    %v3461 = vld [vmem:[#allocation26 + $0x8] sm:$0xf]
    %v3462 = vld [vmem:[#allocation26 + $0xc] sm:$0xf]
    %v3463 = vld [vmem:[#allocation26 + $0x10] sm:$0xf]
    %v3464 = vld [vmem:[#allocation26 + $0x14] sm:$0xf]
    %v3465 = vld [vmem:[#allocation26 + $0x18] sm:$0xf]
    %v3466 = vld [vmem:[#allocation26 + $0x1c] sm:$0xf]
    %v3467 = vld [vmem:[#allocation26 + $0x20] sm:$0xf]
    %v3468 = vld [vmem:[#allocation26 + $0x24] sm:$0xf]
    %v3469 = vld [vmem:[#allocation26 + $0x28] sm:$0xf]
    %v3470 = vld [vmem:[#allocation26 + $0x2c] sm:$0xf]
    %v3471 = vld [vmem:[#allocation26 + $0x30] sm:$0xf]
    %v3472 = vld [vmem:[#allocation26 + $0x34] sm:$0xf]
    %v3473 = vld [vmem:[#allocation26 + $0x38] sm:$0xf]
    %v3474 = vld [vmem:[#allocation26 + $0x3c] sm:$0xf]
    %v3475 = vpack.c.bf16 %v3458, %v3458
    %v3476 = vld [vmem:[#allocation27] sm:$0xff]
    %v3493 = vunpack.c.l.b16 %v3459
    %v3494 = vunpack.c.l.b16 %v3460
    %v3495 = vunpack.c.l.b16 %v3461
    %v3496 = vunpack.c.l.b16 %v3462
    %v3497 = vunpack.c.l.b16 %v3463
    %v3498 = vunpack.c.l.b16 %v3464
    %v3499 = vunpack.c.l.b16 %v3465
    %v3500 = vunpack.c.l.b16 %v3466
    %v3501 = vunpack.c.l.b16 %v3467
    %v3502 = vunpack.c.l.b16 %v3468
    %v3503 = vunpack.c.l.b16 %v3469
    %v3504 = vunpack.c.l.b16 %v3470
    %v3505 = vunpack.c.l.b16 %v3471
    %v3506 = vunpack.c.l.b16 %v3472
    %v3507 = vunpack.c.l.b16 %v3473
    %v3508 = vunpack.c.l.b16 %v3474
    %v3509 = vpack.c.b16 %v3494, %v3493
    %v3510 = vpack.c.b16 %v3496, %v3495
    %v3511 = vpack.c.b16 %v3498, %v3497
    %v3512 = vpack.c.b16 %v3500, %v3499
    %v3513 = vpack.c.b16 %v3502, %v3501
    %v3514 = vpack.c.b16 %v3504, %v3503
    %v3515 = vpack.c.b16 %v3506, %v3505
    %v3516 = vpack.c.b16 %v3508, %v3507
    %3525 = vmatprep.subr.bf16.mxu0 0
    %3526 = vmatpush1.bf16.msra.mxu0 %v3509
    %3527 = vmatprep.subr.bf16.mxu0 0
    %3528 = vmatpush1.bf16.msra.mxu0 %v3510
    %3529 = vmatprep.subr.bf16.mxu0 0
    %3530 = vmatpush1.bf16.msra.mxu0 %v3511
    %3531 = vmatprep.subr.bf16.mxu0 0
    %3532 = vmatpush1.bf16.msra.mxu0 %v3512
    %3533 = vmatprep.subr.bf16.mxu0 0
    %3534 = vmatpush1.bf16.msra.mxu0 %v3513
    %3535 = vmatprep.subr.bf16.mxu0 0
    %3536 = vmatpush1.bf16.msra.mxu0 %v3514
    %3537 = vmatprep.subr.bf16.mxu0 0
    %3538 = vmatpush1.bf16.msra.mxu0 %v3515
    %3539 = vmatprep.subr.bf16.mxu0 0
    %3540 = vmatpush1.bf16.msra.mxu0 %v3516
    %3541 = vmatprep.subr.bf16.mxu0 0
    %3542 = vmatpush1.bf16.msra.mxu0 0
    %3543 = vmatprep.subr.bf16.mxu0 0
    %3544 = vmatpush1.bf16.msra.mxu0 0
    %3545 = vmatprep.subr.bf16.mxu0 0
    %3546 = vmatpush1.bf16.msra.mxu0 0
    %3547 = vmatprep.subr.bf16.mxu0 0
    %3548 = vmatpush1.bf16.msra.mxu0 0
    %3549 = vmatprep.subr.bf16.mxu0 0
    %3550 = vmatpush1.bf16.msra.mxu0 0
    %3551 = vmatprep.subr.bf16.mxu0 0
    %3552 = vmatpush1.bf16.msra.mxu0 0
    %3553 = vmatprep.subr.bf16.mxu0 0
    %3554 = vmatpush1.bf16.msra.mxu0 0
    %3555 = vmatprep.subr.bf16.mxu0 0
    %3556 = vmatpush1.bf16.msra.mxu0 0
    %3557 = vmatprep.mubr.bf16.mxu0 0
    %3558 = vmatmul.mubr.bf16.gmra.mrb[0].mxu0 %v3475
    %v3559 = vpop.f32.mrb[0].mxu0
    %v3560 = vadd.f32 %v3476, %v3559
    %v3561 = vpop.f32.mrb[0].mxu0
    %v3562 = vpop.f32.mrb[0].mxu0
    %v3563 = vpop.f32.mrb[0].mxu0
    %3564 = vdwg.mxu0
    %v3565 = vmax.f32 %v3560, 0.0
    %v3566 = vld [vmem:[#allocation29] sm:$0xf]
    %v3567 = vld [vmem:[#allocation29 + $0x4] sm:$0xf]
    %v3568 = vld [vmem:[#allocation29 + $0x8] sm:$0xf]
    %v3569 = vld [vmem:[#allocation29 + $0xc] sm:$0xf]
    %v3570 = vld [vmem:[#allocation29 + $0x10] sm:$0xf]
    %v3571 = vld [vmem:[#allocation29 + $0x14] sm:$0xf]
    %v3572 = vld [vmem:[#allocation29 + $0x18] sm:$0xf]
    %v3573 = vld [vmem:[#allocation29 + $0x1c] sm:$0xf]
    %v3574 = vld [vmem:[#allocation29 + $0x20] sm:$0xf]
    %v3575 = vld [vmem:[#allocation29 + $0x24] sm:$0xf]
    %v3576 = vld [vmem:[#allocation29 + $0x28] sm:$0xf]
    %v3577 = vld [vmem:[#allocation29 + $0x2c] sm:$0xf]
    %v3578 = vld [vmem:[#allocation29 + $0x30] sm:$0xf]
    %v3579 = vld [vmem:[#allocation29 + $0x34] sm:$0xf]
    %v3580 = vld [vmem:[#allocation29 + $0x38] sm:$0xf]
    %v3581 = vld [vmem:[#allocation29 + $0x3c] sm:$0xf]
    %v3582 = vpack.c.bf16 %v3565, %v3565
    %v3583 = vld [vmem:[%s21] sm:$0xff]
    %v3600 = vunpack.c.l.b16 %v3566
    %v3601 = vunpack.c.l.b16 %v3567
    %v3602 = vunpack.c.l.b16 %v3568
    %v3603 = vunpack.c.l.b16 %v3569
    %v3604 = vunpack.c.l.b16 %v3570
    %v3605 = vunpack.c.l.b16 %v3571
    %v3606 = vunpack.c.l.b16 %v3572
    %v3607 = vunpack.c.l.b16 %v3573
    %v3608 = vunpack.c.l.b16 %v3574
    %v3609 = vunpack.c.l.b16 %v3575
    %v3610 = vunpack.c.l.b16 %v3576
    %v3611 = vunpack.c.l.b16 %v3577
    %v3612 = vunpack.c.l.b16 %v3578
    %v3613 = vunpack.c.l.b16 %v3579
    %v3614 = vunpack.c.l.b16 %v3580
    %v3615 = vunpack.c.l.b16 %v3581
    %v3616 = vpack.c.b16 %v3601, %v3600
    %v3617 = vpack.c.b16 %v3603, %v3602
    %v3618 = vpack.c.b16 %v3605, %v3604
    %v3619 = vpack.c.b16 %v3607, %v3606
    %v3620 = vpack.c.b16 %v3609, %v3608
    %v3621 = vpack.c.b16 %v3611, %v3610
    %v3622 = vpack.c.b16 %v3613, %v3612
    %v3623 = vpack.c.b16 %v3615, %v3614
    %3632 = vmatprep.subr.bf16.mxu0 0
    %3633 = vmatpush1.bf16.msra.mxu0 %v3616
    %3634 = vmatprep.subr.bf16.mxu0 0
    %3635 = vmatpush1.bf16.msra.mxu0 %v3617
    %3636 = vmatprep.subr.bf16.mxu0 0
    %3637 = vmatpush1.bf16.msra.mxu0 %v3618
    %3638 = vmatprep.subr.bf16.mxu0 0
    %3639 = vmatpush1.bf16.msra.mxu0 %v3619
    %3640 = vmatprep.subr.bf16.mxu0 0
    %3641 = vmatpush1.bf16.msra.mxu0 %v3620
    %3642 = vmatprep.subr.bf16.mxu0 0
    %3643 = vmatpush1.bf16.msra.mxu0 %v3621
    %3644 = vmatprep.subr.bf16.mxu0 0
    %3645 = vmatpush1.bf16.msra.mxu0 %v3622
    %3646 = vmatprep.subr.bf16.mxu0 0
    %3647 = vmatpush1.bf16.msra.mxu0 %v3623
    %3648 = vmatprep.subr.bf16.mxu0 0
    %3649 = vmatpush1.bf16.msra.mxu0 0
    %3650 = vmatprep.subr.bf16.mxu0 0
    %3651 = vmatpush1.bf16.msra.mxu0 0
    %3652 = vmatprep.subr.bf16.mxu0 0
    %3653 = vmatpush1.bf16.msra.mxu0 0
    %3654 = vmatprep.subr.bf16.mxu0 0
    %3655 = vmatpush1.bf16.msra.mxu0 0
    %3656 = vmatprep.subr.bf16.mxu0 0
    %3657 = vmatpush1.bf16.msra.mxu0 0
    %3658 = vmatprep.subr.bf16.mxu0 0
    %3659 = vmatpush1.bf16.msra.mxu0 0
    %3660 = vmatprep.subr.bf16.mxu0 0
    %3661 = vmatpush1.bf16.msra.mxu0 0
    %3662 = vmatprep.subr.bf16.mxu0 0
    %3663 = vmatpush1.bf16.msra.mxu0 0
    %3664 = vmatprep.mubr.bf16.mxu0 0
    %3665 = vmatmul.mubr.bf16.gmra.mrb[0].mxu0 %v3582
    %v3666 = vpop.f32.mrb[0].mxu0
    %v3667 = vadd.f32 %v3583, %v3666
    %v3668 = vpop.f32.mrb[0].mxu0
    %v3669 = vpop.f32.mrb[0].mxu0
    %v3670 = vpop.f32.mrb[0].mxu0
    %3671 = vdwg.mxu0
    %3672 = vst [vmem:[#allocation30] sm:$0xff] %v3667
    // Predicated region
    $region158: #{tpu_custom_call.1} parent=1 // pred_check
      _
    $region159: #{tpu_custom_call.1} parent=1 // pred_check_branch
      %3674 = sbr.rel (0) target = $region161
    $region160: #{tpu_custom_call.1} parent=1 // pred_region
      %s3676 = ssub.s32 128, 128
      %3677 = vsyncadd [#allocation5], %s3676
      %s3679 = sshll.u32 [#allocation30], 4
      %s3680 = int_to_ptr.vmem [resolvable:$true] %s3679
      %3682 = dma.vmem_to_hbm [thread:$0]  %s3680, 128, %s22, [#allocation5]
    $region161: #{tpu_custom_call.1} parent=1 // pred_fallthru
      _
    // Predicated region
    $region162: #{tpu_custom_call.1} parent=1 // pred_check
      _
    $region163: #{tpu_custom_call.1} parent=1 // pred_check_branch
      %3684 = sbr.rel (0) target = $region165
    $region164: #{tpu_custom_call.1} parent=1 // pred_region
      %3685 = dma.done [#allocation5], 128
    $region165: #{tpu_custom_call.1} parent=1 // pred_fallthru
      _
    %3686 = vsyncpa [#allocation4], 1
    %3687 = vsyncpa [#allocation7], 1
    %3688 = vsyncpa [#allocation10], 1
    %3689 = vsyncpa [#allocation13], 1
    %3690 = vsyncpa [#allocation16], 1
    %3691 = vsyncpa [#allocation19], 1
    %3692 = vsyncpa [#allocation22], 1
    %3693 = vsyncpa [#allocation25], 1
    %3694 = vsyncpa [#allocation28], 1
    %3695 = vsyncpa [#allocation5], 1

</llo_original>
